<compile_context>
chip_gen: v5e
topology: v5e:2x2
jax: 0.10.0
libtpu: 0.0.40
codegen_flags: <defaults>
</compile_context>

<pallas_src>
import jax
import jax.numpy as jnp
from jax.experimental import pallas as pl
from jax.experimental.pallas import tpu as pltpu

STATE_DIM = 1152            # per-state feature dim
IN_DIM = 2 * STATE_DIM      # 2304 (concat of state1, state2)
HID_DIM = 512
OUT_DIM = 12


def gnet_kernel(s1_ref, s2_ref, w1a_ref, w1b_ref, b1_ref, w2_ref, b2_ref,
                o_ref):
    # Layer 1: h = relu(s1 @ W1a + s2 @ W1b + b1); bf16 operands, f32 MXU acc.
    h = (jnp.dot(s1_ref[...], w1a_ref[...], preferred_element_type=jnp.float32)
         + jnp.dot(s2_ref[...], w1b_ref[...], preferred_element_type=jnp.float32)
         + b1_ref[...])
    h = jnp.maximum(h, 0.0)

    # Layer 2 (tiny, kept in f32) + numerically stable softmax.
    logits = (jnp.dot(h, w2_ref[...], preferred_element_type=jnp.float32)
              + b2_ref[...])
    m = jnp.max(logits, axis=-1, keepdims=True)
    e = jnp.exp(logits - m)
    inv_denom = pl.reciprocal(jnp.sum(e, axis=-1, keepdims=True), approx=True)
    o_ref[...] = (e * inv_denom).astype(o_ref.dtype)


def gnet_forward(state1, state2, w1a, w1b, b1, w2, b2):
    """state1, state2: (B, 1152) f32.  Returns softmax action probs (B, 12) f32."""
    B = state1.shape[0]

    # Hoisted bf16 cast (once per call, not once per grid step).
    s1 = state1.astype(jnp.bfloat16)
    s2 = state2.astype(jnp.bfloat16)

    flops = 2 * B * (IN_DIM * HID_DIM + HID_DIM * OUT_DIM)
    bytes_accessed = (
        IN_DIM * HID_DIM * 2                # bf16 W1 halves
        + HID_DIM * OUT_DIM * 4             # f32 W2
        + (HID_DIM + OUT_DIM) * 4           # f32 biases
        + 2 * B * STATE_DIM * 2             # bf16 states
        + B * OUT_DIM * 4)                  # f32 output

    vmem_spec = pl.BlockSpec(memory_space=pltpu.MemorySpace.VMEM)

    return pl.pallas_call(
        gnet_kernel,
        out_shape=jax.ShapeDtypeStruct((B, OUT_DIM), jnp.float32),
        in_specs=[vmem_spec] * 7,   # everything fully resident in VMEM
        out_specs=vmem_spec,
        cost_estimate=pl.CostEstimate(
            flops=flops,
            transcendentals=B * OUT_DIM,
            bytes_accessed=bytes_accessed,
        ),
    )(s1, s2, w1a, w1b, b1, w2, b2)


def init_params(key):
    """Mimic torch.nn.Linear init (uniform +-1/sqrt(fan_in)).

    W1 is stored split: W1a multiplies state1, W1b multiplies state2
    (== W1[:1152, :] and W1[1152:, :] of the concat-layout weight).
    """
    k1a, k1b, kb1, k2, kb2 = jax.random.split(key, 5)
    bound1 = 1.0 / jnp.sqrt(jnp.float32(IN_DIM))    # fan_in of l1 = 2304
    bound2 = 1.0 / jnp.sqrt(jnp.float32(HID_DIM))   # fan_in of l2 = 512
    w1a = jax.random.uniform(k1a, (STATE_DIM, HID_DIM), jnp.float32,
                             -bound1, bound1).astype(jnp.bfloat16)
    w1b = jax.random.uniform(k1b, (STATE_DIM, HID_DIM), jnp.float32,
                             -bound1, bound1).astype(jnp.bfloat16)
    b1 = jax.random.uniform(kb1, (1, HID_DIM), jnp.float32, -bound1, bound1)
    w2 = jax.random.uniform(k2, (HID_DIM, OUT_DIM), jnp.float32,
                            -bound2, bound2)        # f32 (tiny; better parity)
    b2 = jax.random.uniform(kb2, (1, OUT_DIM), jnp.float32, -bound2, bound2)
    return w1a, w1b, b1, w2, b2


if __name__ == "__main__":
    key = jax.random.PRNGKey(0)
    k_s1, k_s2, k_params = jax.random.split(key, 3)

    B = 16  # small batch; multiple of 16 so bf16 rows pack sublanes cleanly
    state1 = jax.random.normal(k_s1, (B, STATE_DIM), jnp.float32)
    state2 = jax.random.normal(k_s2, (B, STATE_DIM), jnp.float32)
    w1a, w1b, b1, w2, b2 = init_params(k_params)

    y = gnet_forward(state1, state2, w1a, w1b, b1, w2, b2)
    jax.block_until_ready(y)

    # Pure-JAX reference mirroring the kernel's bf16 input/weight casts
    # (layer 2 and softmax are f32 in both).
    s1b = state1.astype(jnp.bfloat16).astype(jnp.float32)
    s2b = state2.astype(jnp.bfloat16).astype(jnp.float32)
    h_ref = jnp.maximum(s1b @ w1a.astype(jnp.float32)
                        + s2b @ w1b.astype(jnp.float32) + b1, 0.0)
    logits_ref = h_ref @ w2 + b2
    y_ref = jax.nn.softmax(logits_ref, axis=1)

    assert y.shape == (B, OUT_DIM)
    # approx reciprocal in the kernel -> slightly looser tolerance than exact div
    assert jnp.allclose(jnp.sum(y, axis=1), 1.0, atol=5e-3)
    assert jnp.allclose(y, y_ref, atol=5e-3, rtol=5e-3)

    print("KERNEL_OK")
</pallas_src>

<mosaic_0001>
module attributes {stable_mosaic.version = 11 : i64} {
  func.func @gnet_kernel(%arg0: memref<16x1152xbf16, #tpu.memory_space<vmem>>, %arg1: memref<16x1152xbf16, #tpu.memory_space<vmem>>, %arg2: memref<1152x512xbf16, #tpu.memory_space<vmem>>, %arg3: memref<1152x512xbf16, #tpu.memory_space<vmem>>, %arg4: memref<1x512xf32, #tpu.memory_space<vmem>>, %arg5: memref<512x12xf32, #tpu.memory_space<vmem>>, %arg6: memref<1x12xf32, #tpu.memory_space<vmem>>, %arg7: memref<16x12xf32, #tpu.memory_space<vmem>>) attributes {dimension_semantics = [], scalar_prefetch = 0 : i64, scratch_operands = 0 : i64, tpu.core_type = #tpu.core_type<tc>} {
    %c0 = arith.constant 0 : index
    %c0_0 = arith.constant 0 : index
    %0 = vector.load %arg0[%c0, %c0_0] : memref<16x1152xbf16, #tpu.memory_space<vmem>>, vector<16x1152xbf16>
    %c0_1 = arith.constant 0 : index
    %c0_2 = arith.constant 0 : index
    %1 = vector.load %arg2[%c0_1, %c0_2] : memref<1152x512xbf16, #tpu.memory_space<vmem>>, vector<1152x512xbf16>
    %cst = arith.constant dense<0.000000e+00> : vector<16x512xf32>
    %2 = tpu.matmul %0, %1, %cst {dimension_numbers = #tpu.dot_dimension_numbers<[1], [0], [0], [1], [0, 0, 1, 1], [], []>} : vector<16x1152xbf16>, vector<1152x512xbf16>, vector<16x512xf32> -> vector<16x512xf32>
    %c0_3 = arith.constant 0 : index
    %c0_4 = arith.constant 0 : index
    %3 = vector.load %arg1[%c0_3, %c0_4] : memref<16x1152xbf16, #tpu.memory_space<vmem>>, vector<16x1152xbf16>
    %c0_5 = arith.constant 0 : index
    %c0_6 = arith.constant 0 : index
    %4 = vector.load %arg3[%c0_5, %c0_6] : memref<1152x512xbf16, #tpu.memory_space<vmem>>, vector<1152x512xbf16>
    %cst_7 = arith.constant dense<0.000000e+00> : vector<16x512xf32>
    %5 = tpu.matmul %3, %4, %cst_7 {dimension_numbers = #tpu.dot_dimension_numbers<[1], [0], [0], [1], [0, 0, 1, 1], [], []>} : vector<16x1152xbf16>, vector<1152x512xbf16>, vector<16x512xf32> -> vector<16x512xf32>
    %6 = arith.addf %2, %5 : vector<16x512xf32>
    %c0_8 = arith.constant 0 : index
    %c0_9 = arith.constant 0 : index
    %7 = vector.load %arg4[%c0_8, %c0_9] : memref<1x512xf32, #tpu.memory_space<vmem>>, vector<1x512xf32>
    %8 = vector.broadcast %7 : vector<1x512xf32> to vector<16x512xf32>
    %9 = arith.addf %6, %8 : vector<16x512xf32>
    %cst_10 = arith.constant 0.000000e+00 : f32
    %10 = vector.broadcast %cst_10 : f32 to vector<16x512xf32>
    %11 = arith.maximumf %9, %10 : vector<16x512xf32>
    %c0_11 = arith.constant 0 : index
    %c0_12 = arith.constant 0 : index
    %12 = vector.load %arg5[%c0_11, %c0_12] : memref<512x12xf32, #tpu.memory_space<vmem>>, vector<512x12xf32>
    %cst_13 = arith.constant dense<0.000000e+00> : vector<16x12xf32>
    %13 = tpu.matmul %11, %12, %cst_13 {dimension_numbers = #tpu.dot_dimension_numbers<[1], [0], [0], [1], [0, 0, 1, 1], [], []>} : vector<16x512xf32>, vector<512x12xf32>, vector<16x12xf32> -> vector<16x12xf32>
    %c0_14 = arith.constant 0 : index
    %c0_15 = arith.constant 0 : index
    %14 = vector.load %arg6[%c0_14, %c0_15] : memref<1x12xf32, #tpu.memory_space<vmem>>, vector<1x12xf32>
    %15 = vector.broadcast %14 : vector<1x12xf32> to vector<16x12xf32>
    %16 = arith.addf %13, %15 : vector<16x12xf32>
    %cst_16 = arith.constant dense<0xFF800000> : vector<16xf32>
    %17 = vector.multi_reduction <maximumf>, %16, %cst_16 [1] : vector<16x12xf32> to vector<16xf32>
    %18 = vector.shape_cast %17 : vector<16xf32> to vector<16x1xf32>
    %19 = vector.broadcast %18 : vector<16x1xf32> to vector<16x12xf32>
    %20 = arith.subf %16, %19 : vector<16x12xf32>
    %21 = math.exp %20 : vector<16x12xf32>
    %cst_17 = arith.constant dense<0.000000e+00> : vector<16xf32>
    %22 = vector.multi_reduction <add>, %21, %cst_17 [1] : vector<16x12xf32> to vector<16xf32>
    %23 = vector.shape_cast %22 : vector<16xf32> to vector<16x1xf32>
    %24 = tpu.reciprocal %23 {approx = true} : vector<16x1xf32> -> vector<16x1xf32>
    %25 = vector.broadcast %24 : vector<16x1xf32> to vector<16x12xf32>
    %26 = arith.mulf %21, %25 : vector<16x12xf32>
    %c0_18 = arith.constant 0 : index
    %c0_19 = arith.constant 0 : index
    %27 = vector.load %arg7[%c0_18, %c0_19] : memref<16x12xf32, #tpu.memory_space<vmem>>, vector<16x12xf32>
    tpu.vector_store %arg7[%c0_18, %c0_19], %26 {strides = array<i32>} : memref<16x12xf32, #tpu.memory_space<vmem>>, vector<16x12xf32>,
    return
  }
}

</mosaic_0001>

<llo_original>
// kernel: tpu_custom_call.1
$region0: #{tpu_custom_call.1}
  #allocation0 [shape = 'u32[]', space=smem, size = 0x4, offset = 0x4, fixed_abs, tag = 'smem constant byte address 0x4 - core index']
  #allocation1 [shape = 'u32[72,128]{1,0:T(1,128)}', space=vmem, size = 0x9000, scoped, tag = 'internal scratch']
  %s0 = inlined_call_operand.hbm [shape: bf16[16,1152], index: 0, kind: input, shape index: {}]
  %s1 = inlined_call_operand.hbm [shape: bf16[16,1152], index: 1, kind: input, shape index: {}]
  %s2 = inlined_call_operand.hbm [shape: bf16[1152,512], index: 2, kind: input, shape index: {}]
  %s3 = inlined_call_operand.hbm [shape: bf16[1152,512], index: 3, kind: input, shape index: {}]
  %s4 = inlined_call_operand.hbm [shape: f32[1,512], index: 4, kind: input, shape index: {}]
  %s5 = inlined_call_operand.vmem [shape: f32[512,12], index: 5, kind: input, shape index: {}]
  %s6 = inlined_call_operand.hbm [shape: f32[1,12], index: 6, kind: input, shape index: {}]
  %s7 = inlined_call_operand.hbm [shape: f32[16,12], index: 7, kind: output, shape index: {}]
  %s8 = sld [smem:[#allocation0]]
  $region62: #{tpu_custom_call.1} parent=0
    _
  %s10 = ssub.s32 1, %s8
  %s11 = scalar_select 0, %s10, %s8
  $region1: #{tpu_custom_call.1} parent=0
    #allocation2 [shape = 'u8[36864]{0}', space=vmem, size = 0x9000, scoped, tag = 'input window, operand 0, single buffered']
    #allocation3 [shape = 's32[1]{0}', space=sflag, size = 0x4, scoped, tag = 'scoped memory for tpu_custom_call.1']
    #allocation4 [shape = 's32[1]{0}', space=sflag, size = 0x4, scoped, tag = 'scoped memory for tpu_custom_call.1']
    #allocation5 [shape = 'u8[36864]{0}', space=vmem, size = 0x9000, scoped, tag = 'input window, operand 1, single buffered']
    #allocation6 [shape = 's32[1]{0}', space=sflag, size = 0x4, scoped, tag = 'scoped memory for tpu_custom_call.1']
    #allocation7 [shape = 'u8[1179648]{0}', space=vmem, size = 0x120000, scoped, tag = 'input window, operand 2, single buffered']
    #allocation8 [shape = 'u8[1179648]{0}', space=vmem, size = 0x120000, scoped, tag = 'input window, operand 3, single buffered']
    #allocation9 [shape = 's32[1]{0}', space=sflag, size = 0x4, scoped, tag = 'scoped memory for tpu_custom_call.1']
    #allocation10 [shape = 'u8[2048]{0}', space=vmem, size = 0x800, scoped, tag = 'input window, operand 4, single buffered']
    #allocation11 [shape = 'u8[512]{0}', space=vmem, size = 0x400, scoped, tag = 'input window, operand 6, single buffered']
    #allocation12 [shape = 's32[1]{0}', space=sflag, size = 0x4, scoped, tag = 'scoped memory for tpu_custom_call.1']
    #allocation13 [shape = 'u8[8192]{0}', space=vmem, size = 0x2000, scoped, tag = 'output window, operand 0, single buffered']
    %12 = vsyncpa [#allocation3], 0
    %13 = vsyncpa [#allocation6], 0
    %14 = vsyncpa [#allocation9], 0
    %15 = vsyncpa [#allocation12], 0
    %16 = vsyncpa [#allocation4], 0
    // Predicated region
    $region2: #{tpu_custom_call.1} parent=1 // pred_check
      _
    $region3: #{tpu_custom_call.1} parent=1 // pred_check_branch
      %18 = sbr.rel (0) target = $region5
    $region4: #{tpu_custom_call.1} parent=1 // pred_region
      %20 = vsyncadd [#allocation3], 0
      %s21 = sshll.u32 %s0, 4
      %s22 = int_to_ptr.hbm [resolvable:$true] %s21
      %s23 = sshll.u32 [#allocation2], 4
      %s24 = int_to_ptr.vmem [resolvable:$true] %s23
      %29 = dma.hbm_to_vmem [thread:$0]  %s22, 1152, %s24, [#allocation3], 576, 576, 36
    $region5: #{tpu_custom_call.1} parent=1 // pred_fallthru
      _
    // Predicated region
    $region6: #{tpu_custom_call.1} parent=1 // pred_check
      _
    $region7: #{tpu_custom_call.1} parent=1 // pred_check_branch
      %31 = sbr.rel (0) target = $region9
    $region8: #{tpu_custom_call.1} parent=1 // pred_region
      %33 = vsyncadd [#allocation6], 0
      %s34 = sshll.u32 %s1, 4
      %s35 = int_to_ptr.hbm [resolvable:$true] %s34
      %s36 = sshll.u32 [#allocation5], 4
      %s37 = int_to_ptr.vmem [resolvable:$true] %s36
      %42 = dma.hbm_to_vmem [thread:$0]  %s35, 1152, %s37, [#allocation6], 576, 576, 36
    $region9: #{tpu_custom_call.1} parent=1 // pred_fallthru
      _
    // Predicated region
    $region10: #{tpu_custom_call.1} parent=1 // pred_check
      _
    $region11: #{tpu_custom_call.1} parent=1 // pred_check_branch
      %44 = sbr.rel (0) target = $region13
    $region12: #{tpu_custom_call.1} parent=1 // pred_region
      %46 = vsyncadd [#allocation6], 0
      %s47 = sshll.u32 %s2, 4
      %s48 = int_to_ptr.hbm [resolvable:$true] %s47
      %s49 = sshll.u32 [#allocation7], 4
      %s50 = int_to_ptr.vmem [resolvable:$true] %s49
      %55 = dma.hbm_to_vmem [thread:$0]  %s48, 36864, %s50, [#allocation6], 256, 256, 16
    $region13: #{tpu_custom_call.1} parent=1 // pred_fallthru
      _
    // Predicated region
    $region14: #{tpu_custom_call.1} parent=1 // pred_check
      _
    $region15: #{tpu_custom_call.1} parent=1 // pred_check_branch
      %57 = sbr.rel (0) target = $region17
    $region16: #{tpu_custom_call.1} parent=1 // pred_region
      %59 = vsyncadd [#allocation9], 0
      %s60 = sshll.u32 %s3, 4
      %s61 = int_to_ptr.hbm [resolvable:$true] %s60
      %s62 = sshll.u32 [#allocation8], 4
      %s63 = int_to_ptr.vmem [resolvable:$true] %s62
      %68 = dma.hbm_to_vmem [thread:$0]  %s61, 36864, %s63, [#allocation9], 256, 256, 16
    $region17: #{tpu_custom_call.1} parent=1 // pred_fallthru
      _
    // Predicated region
    $region18: #{tpu_custom_call.1} parent=1 // pred_check
      _
    $region19: #{tpu_custom_call.1} parent=1 // pred_check_branch
      %70 = sbr.rel (0) target = $region21
    $region20: #{tpu_custom_call.1} parent=1 // pred_region
      %72 = vsyncadd [#allocation9], 0
      %s74 = sshll.u32 %s4, 4
      %s75 = int_to_ptr.hbm [resolvable:$true] %s74
      %s76 = sshll.u32 [#allocation10], 4
      %s77 = int_to_ptr.vmem [resolvable:$true] %s76
      %79 = dma.hbm_to_vmem [thread:$0]  %s75, 64, %s77, [#allocation9]
    $region21: #{tpu_custom_call.1} parent=1 // pred_fallthru
      _
    // Predicated region
    $region22: #{tpu_custom_call.1} parent=1 // pred_check
      _
    $region23: #{tpu_custom_call.1} parent=1 // pred_check_branch
      %81 = sbr.rel (0) target = $region25
    $region24: #{tpu_custom_call.1} parent=1 // pred_region
      _
    $region25: #{tpu_custom_call.1} parent=1 // pred_fallthru
      _
    // Predicated region
    $region26: #{tpu_custom_call.1} parent=1 // pred_check
      _
    $region27: #{tpu_custom_call.1} parent=1 // pred_check_branch
      %83 = sbr.rel (0) target = $region29
    $region28: #{tpu_custom_call.1} parent=1 // pred_region
      %85 = vsyncadd [#allocation12], 0
      %s87 = sshll.u32 %s6, 4
      %s88 = int_to_ptr.hbm [resolvable:$true] %s87
      %s89 = sshll.u32 [#allocation11], 4
      %s90 = int_to_ptr.vmem [resolvable:$true] %s89
      %92 = dma.hbm_to_vmem [thread:$0]  %s88, 16, %s90, [#allocation12]
    $region29: #{tpu_custom_call.1} parent=1 // pred_fallthru
      _
    // Predicated region
    $region30: #{tpu_custom_call.1} parent=1 // pred_check
      _
    $region31: #{tpu_custom_call.1} parent=1 // pred_check_branch
      %94 = sbr.rel (0) target = $region33
    $region32: #{tpu_custom_call.1} parent=1 // pred_region
      %96 = dma.done [#allocation3], 1152
    $region33: #{tpu_custom_call.1} parent=1 // pred_fallthru
      _
    // Predicated region
    $region34: #{tpu_custom_call.1} parent=1 // pred_check
      _
    $region35: #{tpu_custom_call.1} parent=1 // pred_check_branch
      %98 = sbr.rel (0) target = $region37
    $region36: #{tpu_custom_call.1} parent=1 // pred_region
      %100 = dma.done [#allocation6], 1152
    $region37: #{tpu_custom_call.1} parent=1 // pred_fallthru
      _
    // Predicated region
    $region38: #{tpu_custom_call.1} parent=1 // pred_check
      _
    $region39: #{tpu_custom_call.1} parent=1 // pred_check_branch
      %102 = sbr.rel (0) target = $region41
    $region40: #{tpu_custom_call.1} parent=1 // pred_region
      %104 = dma.done [#allocation6], 36864
    $region41: #{tpu_custom_call.1} parent=1 // pred_fallthru
      _
    // Predicated region
    $region42: #{tpu_custom_call.1} parent=1 // pred_check
      _
    $region43: #{tpu_custom_call.1} parent=1 // pred_check_branch
      %106 = sbr.rel (0) target = $region45
    $region44: #{tpu_custom_call.1} parent=1 // pred_region
      %108 = dma.done [#allocation9], 36864
    $region45: #{tpu_custom_call.1} parent=1 // pred_fallthru
      _
    // Predicated region
    $region46: #{tpu_custom_call.1} parent=1 // pred_check
      _
    $region47: #{tpu_custom_call.1} parent=1 // pred_check_branch
      %110 = sbr.rel (0) target = $region49
    $region48: #{tpu_custom_call.1} parent=1 // pred_region
      %112 = dma.done [#allocation9], 64
    $region49: #{tpu_custom_call.1} parent=1 // pred_fallthru
      _
    // Predicated region
    $region50: #{tpu_custom_call.1} parent=1 // pred_check
      _
    $region51: #{tpu_custom_call.1} parent=1 // pred_check_branch
      %114 = sbr.rel (0) target = $region53
    $region52: #{tpu_custom_call.1} parent=1 // pred_region
      %116 = dma.done [#allocation12], 16
    $region53: #{tpu_custom_call.1} parent=1 // pred_fallthru
      _
    %v117 = vld [vmem:[#allocation2] sm:$0xff]
    %v118 = vld [vmem:[#allocation2 + $0x8] sm:$0xff]
    %v119 = vld [vmem:[#allocation2 + $0x10] sm:$0xff]
    %v120 = vld [vmem:[#allocation2 + $0x18] sm:$0xff]
    %v121 = vld [vmem:[#allocation2 + $0x20] sm:$0xf]
    %v122 = vld [vmem:[#allocation2 + $0x24] sm:$0xff]
    %v123 = vld [vmem:[#allocation2 + $0x2c] sm:$0xff]
    %v124 = vld [vmem:[#allocation2 + $0x34] sm:$0xff]
    %v125 = vld [vmem:[#allocation2 + $0x3c] sm:$0xff]
    %v126 = vld [vmem:[#allocation2 + $0x44] sm:$0xf]
    %v127 = vld [vmem:[#allocation7] sm:$0xff]
    %v128 = vld [vmem:[#allocation7 + $0x8] sm:$0xff]
    %v129 = vld [vmem:[#allocation7 + $0x10] sm:$0xff]
    %v130 = vld [vmem:[#allocation7 + $0x18] sm:$0xff]
    %v131 = vld [vmem:[#allocation7 + $0x20] sm:$0xff]
    %v132 = vld [vmem:[#allocation7 + $0x28] sm:$0xff]
    %v133 = vld [vmem:[#allocation7 + $0x30] sm:$0xff]
    %v134 = vld [vmem:[#allocation7 + $0x38] sm:$0xff]
    %v135 = vld [vmem:[#allocation7 + $0x40] sm:$0xff]
    %v136 = vld [vmem:[#allocation7 + $0x48] sm:$0xff]
    %v137 = vld [vmem:[#allocation7 + $0x50] sm:$0xff]
    %v138 = vld [vmem:[#allocation7 + $0x58] sm:$0xff]
    %v139 = vld [vmem:[#allocation7 + $0x60] sm:$0xff]
    %v140 = vld [vmem:[#allocation7 + $0x68] sm:$0xff]
    %v141 = vld [vmem:[#allocation7 + $0x70] sm:$0xff]
    %v142 = vld [vmem:[#allocation7 + $0x78] sm:$0xff]
    %v143 = vld [vmem:[#allocation7 + $0x80] sm:$0xff]
    %v144 = vld [vmem:[#allocation7 + $0x88] sm:$0xff]
    %v145 = vld [vmem:[#allocation7 + $0x90] sm:$0xff]
    %v146 = vld [vmem:[#allocation7 + $0x98] sm:$0xff]
    %v147 = vld [vmem:[#allocation7 + $0xa0] sm:$0xff]
    %v148 = vld [vmem:[#allocation7 + $0xa8] sm:$0xff]
    %v149 = vld [vmem:[#allocation7 + $0xb0] sm:$0xff]
    %v150 = vld [vmem:[#allocation7 + $0xb8] sm:$0xff]
    %v151 = vld [vmem:[#allocation7 + $0xc0] sm:$0xff]
    %v152 = vld [vmem:[#allocation7 + $0xc8] sm:$0xff]
    %v153 = vld [vmem:[#allocation7 + $0xd0] sm:$0xff]
    %v154 = vld [vmem:[#allocation7 + $0xd8] sm:$0xff]
    %v155 = vld [vmem:[#allocation7 + $0xe0] sm:$0xff]
    %v156 = vld [vmem:[#allocation7 + $0xe8] sm:$0xff]
    %v157 = vld [vmem:[#allocation7 + $0xf0] sm:$0xff]
    %v158 = vld [vmem:[#allocation7 + $0xf8] sm:$0xff]
    %v159 = vld [vmem:[#allocation7 + $0x100] sm:$0xff]
    %v160 = vld [vmem:[#allocation7 + $0x108] sm:$0xff]
    %v161 = vld [vmem:[#allocation7 + $0x110] sm:$0xff]
    %v162 = vld [vmem:[#allocation7 + $0x118] sm:$0xff]
    %v163 = vld [vmem:[#allocation7 + $0x120] sm:$0xff]
    %v164 = vld [vmem:[#allocation7 + $0x128] sm:$0xff]
    %v165 = vld [vmem:[#allocation7 + $0x130] sm:$0xff]
    %v166 = vld [vmem:[#allocation7 + $0x138] sm:$0xff]
    %v167 = vld [vmem:[#allocation7 + $0x140] sm:$0xff]
    %v168 = vld [vmem:[#allocation7 + $0x148] sm:$0xff]
    %v169 = vld [vmem:[#allocation7 + $0x150] sm:$0xff]
    %v170 = vld [vmem:[#allocation7 + $0x158] sm:$0xff]
    %v171 = vld [vmem:[#allocation7 + $0x160] sm:$0xff]
    %v172 = vld [vmem:[#allocation7 + $0x168] sm:$0xff]
    %v173 = vld [vmem:[#allocation7 + $0x170] sm:$0xff]
    %v174 = vld [vmem:[#allocation7 + $0x178] sm:$0xff]
    %v175 = vld [vmem:[#allocation7 + $0x180] sm:$0xff]
    %v176 = vld [vmem:[#allocation7 + $0x188] sm:$0xff]
    %v177 = vld [vmem:[#allocation7 + $0x190] sm:$0xff]
    %v178 = vld [vmem:[#allocation7 + $0x198] sm:$0xff]
    %v179 = vld [vmem:[#allocation7 + $0x1a0] sm:$0xff]
    %v180 = vld [vmem:[#allocation7 + $0x1a8] sm:$0xff]
    %v181 = vld [vmem:[#allocation7 + $0x1b0] sm:$0xff]
    %v182 = vld [vmem:[#allocation7 + $0x1b8] sm:$0xff]
    %v183 = vld [vmem:[#allocation7 + $0x1c0] sm:$0xff]
    %v184 = vld [vmem:[#allocation7 + $0x1c8] sm:$0xff]
    %v185 = vld [vmem:[#allocation7 + $0x1d0] sm:$0xff]
    %v186 = vld [vmem:[#allocation7 + $0x1d8] sm:$0xff]
    %v187 = vld [vmem:[#allocation7 + $0x1e0] sm:$0xff]
    %v188 = vld [vmem:[#allocation7 + $0x1e8] sm:$0xff]
    %v189 = vld [vmem:[#allocation7 + $0x1f0] sm:$0xff]
    %v190 = vld [vmem:[#allocation7 + $0x1f8] sm:$0xff]
    %v191 = vld [vmem:[#allocation7 + $0x200] sm:$0xff]
    %v192 = vld [vmem:[#allocation7 + $0x208] sm:$0xff]
    %v193 = vld [vmem:[#allocation7 + $0x210] sm:$0xff]
    %v194 = vld [vmem:[#allocation7 + $0x218] sm:$0xff]
    %v195 = vld [vmem:[#allocation7 + $0x220] sm:$0xff]
    %v196 = vld [vmem:[#allocation7 + $0x228] sm:$0xff]
    %v197 = vld [vmem:[#allocation7 + $0x230] sm:$0xff]
    %v198 = vld [vmem:[#allocation7 + $0x238] sm:$0xff]
    %v199 = vld [vmem:[#allocation7 + $0x240] sm:$0xff]
    %v200 = vld [vmem:[#allocation7 + $0x248] sm:$0xff]
    %v201 = vld [vmem:[#allocation7 + $0x250] sm:$0xff]
    %v202 = vld [vmem:[#allocation7 + $0x258] sm:$0xff]
    %v203 = vld [vmem:[#allocation7 + $0x260] sm:$0xff]
    %v204 = vld [vmem:[#allocation7 + $0x268] sm:$0xff]
    %v205 = vld [vmem:[#allocation7 + $0x270] sm:$0xff]
    %v206 = vld [vmem:[#allocation7 + $0x278] sm:$0xff]
    %v207 = vld [vmem:[#allocation7 + $0x280] sm:$0xff]
    %v208 = vld [vmem:[#allocation7 + $0x288] sm:$0xff]
    %v209 = vld [vmem:[#allocation7 + $0x290] sm:$0xff]
    %v210 = vld [vmem:[#allocation7 + $0x298] sm:$0xff]
    %v211 = vld [vmem:[#allocation7 + $0x2a0] sm:$0xff]
    %v212 = vld [vmem:[#allocation7 + $0x2a8] sm:$0xff]
    %v213 = vld [vmem:[#allocation7 + $0x2b0] sm:$0xff]
    %v214 = vld [vmem:[#allocation7 + $0x2b8] sm:$0xff]
    %v215 = vld [vmem:[#allocation7 + $0x2c0] sm:$0xff]
    %v216 = vld [vmem:[#allocation7 + $0x2c8] sm:$0xff]
    %v217 = vld [vmem:[#allocation7 + $0x2d0] sm:$0xff]
    %v218 = vld [vmem:[#allocation7 + $0x2d8] sm:$0xff]
    %v219 = vld [vmem:[#allocation7 + $0x2e0] sm:$0xff]
    %v220 = vld [vmem:[#allocation7 + $0x2e8] sm:$0xff]
    %v221 = vld [vmem:[#allocation7 + $0x2f0] sm:$0xff]
    %v222 = vld [vmem:[#allocation7 + $0x2f8] sm:$0xff]
    %v223 = vld [vmem:[#allocation7 + $0x300] sm:$0xff]
    %v224 = vld [vmem:[#allocation7 + $0x308] sm:$0xff]
    %v225 = vld [vmem:[#allocation7 + $0x310] sm:$0xff]
    %v226 = vld [vmem:[#allocation7 + $0x318] sm:$0xff]
    %v227 = vld [vmem:[#allocation7 + $0x320] sm:$0xff]
    %v228 = vld [vmem:[#allocation7 + $0x328] sm:$0xff]
    %v229 = vld [vmem:[#allocation7 + $0x330] sm:$0xff]
    %v230 = vld [vmem:[#allocation7 + $0x338] sm:$0xff]
    %v231 = vld [vmem:[#allocation7 + $0x340] sm:$0xff]
    %v232 = vld [vmem:[#allocation7 + $0x348] sm:$0xff]
    %v233 = vld [vmem:[#allocation7 + $0x350] sm:$0xff]
    %v234 = vld [vmem:[#allocation7 + $0x358] sm:$0xff]
    %v235 = vld [vmem:[#allocation7 + $0x360] sm:$0xff]
    %v236 = vld [vmem:[#allocation7 + $0x368] sm:$0xff]
    %v237 = vld [vmem:[#allocation7 + $0x370] sm:$0xff]
    %v238 = vld [vmem:[#allocation7 + $0x378] sm:$0xff]
    %v239 = vld [vmem:[#allocation7 + $0x380] sm:$0xff]
    %v240 = vld [vmem:[#allocation7 + $0x388] sm:$0xff]
    %v241 = vld [vmem:[#allocation7 + $0x390] sm:$0xff]
    %v242 = vld [vmem:[#allocation7 + $0x398] sm:$0xff]
    %v243 = vld [vmem:[#allocation7 + $0x3a0] sm:$0xff]
    %v244 = vld [vmem:[#allocation7 + $0x3a8] sm:$0xff]
    %v245 = vld [vmem:[#allocation7 + $0x3b0] sm:$0xff]
    %v246 = vld [vmem:[#allocation7 + $0x3b8] sm:$0xff]
    %v247 = vld [vmem:[#allocation7 + $0x3c0] sm:$0xff]
    %v248 = vld [vmem:[#allocation7 + $0x3c8] sm:$0xff]
    %v249 = vld [vmem:[#allocation7 + $0x3d0] sm:$0xff]
    %v250 = vld [vmem:[#allocation7 + $0x3d8] sm:$0xff]
    %v251 = vld [vmem:[#allocation7 + $0x3e0] sm:$0xff]
    %v252 = vld [vmem:[#allocation7 + $0x3e8] sm:$0xff]
    %v253 = vld [vmem:[#allocation7 + $0x3f0] sm:$0xff]
    %v254 = vld [vmem:[#allocation7 + $0x3f8] sm:$0xff]
    %v255 = vld [vmem:[#allocation7 + $0x400] sm:$0xff]
    %v256 = vld [vmem:[#allocation7 + $0x408] sm:$0xff]
    %v257 = vld [vmem:[#allocation7 + $0x410] sm:$0xff]
    %v258 = vld [vmem:[#allocation7 + $0x418] sm:$0xff]
    %v259 = vld [vmem:[#allocation7 + $0x420] sm:$0xff]
    %v260 = vld [vmem:[#allocation7 + $0x428] sm:$0xff]
    %v261 = vld [vmem:[#allocation7 + $0x430] sm:$0xff]
    %v262 = vld [vmem:[#allocation7 + $0x438] sm:$0xff]
    %v263 = vld [vmem:[#allocation7 + $0x440] sm:$0xff]
    %v264 = vld [vmem:[#allocation7 + $0x448] sm:$0xff]
    %v265 = vld [vmem:[#allocation7 + $0x450] sm:$0xff]
    %v266 = vld [vmem:[#allocation7 + $0x458] sm:$0xff]
    %v267 = vld [vmem:[#allocation7 + $0x460] sm:$0xff]
    %v268 = vld [vmem:[#allocation7 + $0x468] sm:$0xff]
    %v269 = vld [vmem:[#allocation7 + $0x470] sm:$0xff]
    %v270 = vld [vmem:[#allocation7 + $0x478] sm:$0xff]
    %v271 = vld [vmem:[#allocation7 + $0x480] sm:$0xff]
    %v272 = vld [vmem:[#allocation7 + $0x488] sm:$0xff]
    %v273 = vld [vmem:[#allocation7 + $0x490] sm:$0xff]
    %v274 = vld [vmem:[#allocation7 + $0x498] sm:$0xff]
    %v275 = vld [vmem:[#allocation7 + $0x4a0] sm:$0xff]
    %v276 = vld [vmem:[#allocation7 + $0x4a8] sm:$0xff]
    %v277 = vld [vmem:[#allocation7 + $0x4b0] sm:$0xff]
    %v278 = vld [vmem:[#allocation7 + $0x4b8] sm:$0xff]
    %v279 = vld [vmem:[#allocation7 + $0x4c0] sm:$0xff]
    %v280 = vld [vmem:[#allocation7 + $0x4c8] sm:$0xff]
    %v281 = vld [vmem:[#allocation7 + $0x4d0] sm:$0xff]
    %v282 = vld [vmem:[#allocation7 + $0x4d8] sm:$0xff]
    %v283 = vld [vmem:[#allocation7 + $0x4e0] sm:$0xff]
    %v284 = vld [vmem:[#allocation7 + $0x4e8] sm:$0xff]
    %v285 = vld [vmem:[#allocation7 + $0x4f0] sm:$0xff]
    %v286 = vld [vmem:[#allocation7 + $0x4f8] sm:$0xff]
    %v287 = vld [vmem:[#allocation7 + $0x500] sm:$0xff]
    %v288 = vld [vmem:[#allocation7 + $0x508] sm:$0xff]
    %v289 = vld [vmem:[#allocation7 + $0x510] sm:$0xff]
    %v290 = vld [vmem:[#allocation7 + $0x518] sm:$0xff]
    %v291 = vld [vmem:[#allocation7 + $0x520] sm:$0xff]
    %v292 = vld [vmem:[#allocation7 + $0x528] sm:$0xff]
    %v293 = vld [vmem:[#allocation7 + $0x530] sm:$0xff]
    %v294 = vld [vmem:[#allocation7 + $0x538] sm:$0xff]
    %v295 = vld [vmem:[#allocation7 + $0x540] sm:$0xff]
    %v296 = vld [vmem:[#allocation7 + $0x548] sm:$0xff]
    %v297 = vld [vmem:[#allocation7 + $0x550] sm:$0xff]
    %v298 = vld [vmem:[#allocation7 + $0x558] sm:$0xff]
    %v299 = vld [vmem:[#allocation7 + $0x560] sm:$0xff]
    %v300 = vld [vmem:[#allocation7 + $0x568] sm:$0xff]
    %v301 = vld [vmem:[#allocation7 + $0x570] sm:$0xff]
    %v302 = vld [vmem:[#allocation7 + $0x578] sm:$0xff]
    %v303 = vld [vmem:[#allocation7 + $0x580] sm:$0xff]
    %v304 = vld [vmem:[#allocation7 + $0x588] sm:$0xff]
    %v305 = vld [vmem:[#allocation7 + $0x590] sm:$0xff]
    %v306 = vld [vmem:[#allocation7 + $0x598] sm:$0xff]
    %v307 = vld [vmem:[#allocation7 + $0x5a0] sm:$0xff]
    %v308 = vld [vmem:[#allocation7 + $0x5a8] sm:$0xff]
    %v309 = vld [vmem:[#allocation7 + $0x5b0] sm:$0xff]
    %v310 = vld [vmem:[#allocation7 + $0x5b8] sm:$0xff]
    %v311 = vld [vmem:[#allocation7 + $0x5c0] sm:$0xff]
    %v312 = vld [vmem:[#allocation7 + $0x5c8] sm:$0xff]
    %v313 = vld [vmem:[#allocation7 + $0x5d0] sm:$0xff]
    %v314 = vld [vmem:[#allocation7 + $0x5d8] sm:$0xff]
    %v315 = vld [vmem:[#allocation7 + $0x5e0] sm:$0xff]
    %v316 = vld [vmem:[#allocation7 + $0x5e8] sm:$0xff]
    %v317 = vld [vmem:[#allocation7 + $0x5f0] sm:$0xff]
    %v318 = vld [vmem:[#allocation7 + $0x5f8] sm:$0xff]
    %v319 = vld [vmem:[#allocation7 + $0x600] sm:$0xff]
    %v320 = vld [vmem:[#allocation7 + $0x608] sm:$0xff]
    %v321 = vld [vmem:[#allocation7 + $0x610] sm:$0xff]
    %v322 = vld [vmem:[#allocation7 + $0x618] sm:$0xff]
    %v323 = vld [vmem:[#allocation7 + $0x620] sm:$0xff]
    %v324 = vld [vmem:[#allocation7 + $0x628] sm:$0xff]
    %v325 = vld [vmem:[#allocation7 + $0x630] sm:$0xff]
    %v326 = vld [vmem:[#allocation7 + $0x638] sm:$0xff]
    %v327 = vld [vmem:[#allocation7 + $0x640] sm:$0xff]
    %v328 = vld [vmem:[#allocation7 + $0x648] sm:$0xff]
    %v329 = vld [vmem:[#allocation7 + $0x650] sm:$0xff]
    %v330 = vld [vmem:[#allocation7 + $0x658] sm:$0xff]
    %v331 = vld [vmem:[#allocation7 + $0x660] sm:$0xff]
    %v332 = vld [vmem:[#allocation7 + $0x668] sm:$0xff]
    %v333 = vld [vmem:[#allocation7 + $0x670] sm:$0xff]
    %v334 = vld [vmem:[#allocation7 + $0x678] sm:$0xff]
    %v335 = vld [vmem:[#allocation7 + $0x680] sm:$0xff]
    %v336 = vld [vmem:[#allocation7 + $0x688] sm:$0xff]
    %v337 = vld [vmem:[#allocation7 + $0x690] sm:$0xff]
    %v338 = vld [vmem:[#allocation7 + $0x698] sm:$0xff]
    %v339 = vld [vmem:[#allocation7 + $0x6a0] sm:$0xff]
    %v340 = vld [vmem:[#allocation7 + $0x6a8] sm:$0xff]
    %v341 = vld [vmem:[#allocation7 + $0x6b0] sm:$0xff]
    %v342 = vld [vmem:[#allocation7 + $0x6b8] sm:$0xff]
    %v343 = vld [vmem:[#allocation7 + $0x6c0] sm:$0xff]
    %v344 = vld [vmem:[#allocation7 + $0x6c8] sm:$0xff]
    %v345 = vld [vmem:[#allocation7 + $0x6d0] sm:$0xff]
    %v346 = vld [vmem:[#allocation7 + $0x6d8] sm:$0xff]
    %v347 = vld [vmem:[#allocation7 + $0x6e0] sm:$0xff]
    %v348 = vld [vmem:[#allocation7 + $0x6e8] sm:$0xff]
    %v349 = vld [vmem:[#allocation7 + $0x6f0] sm:$0xff]
    %v350 = vld [vmem:[#allocation7 + $0x6f8] sm:$0xff]
    %v351 = vld [vmem:[#allocation7 + $0x700] sm:$0xff]
    %v352 = vld [vmem:[#allocation7 + $0x708] sm:$0xff]
    %v353 = vld [vmem:[#allocation7 + $0x710] sm:$0xff]
    %v354 = vld [vmem:[#allocation7 + $0x718] sm:$0xff]
    %v355 = vld [vmem:[#allocation7 + $0x720] sm:$0xff]
    %v356 = vld [vmem:[#allocation7 + $0x728] sm:$0xff]
    %v357 = vld [vmem:[#allocation7 + $0x730] sm:$0xff]
    %v358 = vld [vmem:[#allocation7 + $0x738] sm:$0xff]
    %v359 = vld [vmem:[#allocation7 + $0x740] sm:$0xff]
    %v360 = vld [vmem:[#allocation7 + $0x748] sm:$0xff]
    %v361 = vld [vmem:[#allocation7 + $0x750] sm:$0xff]
    %v362 = vld [vmem:[#allocation7 + $0x758] sm:$0xff]
    %v363 = vld [vmem:[#allocation7 + $0x760] sm:$0xff]
    %v364 = vld [vmem:[#allocation7 + $0x768] sm:$0xff]
    %v365 = vld [vmem:[#allocation7 + $0x770] sm:$0xff]
    %v366 = vld [vmem:[#allocation7 + $0x778] sm:$0xff]
    %v367 = vld [vmem:[#allocation7 + $0x780] sm:$0xff]
    %v368 = vld [vmem:[#allocation7 + $0x788] sm:$0xff]
    %v369 = vld [vmem:[#allocation7 + $0x790] sm:$0xff]
    %v370 = vld [vmem:[#allocation7 + $0x798] sm:$0xff]
    %v371 = vld [vmem:[#allocation7 + $0x7a0] sm:$0xff]
    %v372 = vld [vmem:[#allocation7 + $0x7a8] sm:$0xff]
    %v373 = vld [vmem:[#allocation7 + $0x7b0] sm:$0xff]
    %v374 = vld [vmem:[#allocation7 + $0x7b8] sm:$0xff]
    %v375 = vld [vmem:[#allocation7 + $0x7c0] sm:$0xff]
    %v376 = vld [vmem:[#allocation7 + $0x7c8] sm:$0xff]
    %v377 = vld [vmem:[#allocation7 + $0x7d0] sm:$0xff]
    %v378 = vld [vmem:[#allocation7 + $0x7d8] sm:$0xff]
    %v379 = vld [vmem:[#allocation7 + $0x7e0] sm:$0xff]
    %v380 = vld [vmem:[#allocation7 + $0x7e8] sm:$0xff]
    %v381 = vld [vmem:[#allocation7 + $0x7f0] sm:$0xff]
    %v382 = vld [vmem:[#allocation7 + $0x7f8] sm:$0xff]
    %v383 = vld [vmem:[#allocation7 + $0x800] sm:$0xff]
    %v384 = vld [vmem:[#allocation7 + $0x808] sm:$0xff]
    %v385 = vld [vmem:[#allocation7 + $0x810] sm:$0xff]
    %v386 = vld [vmem:[#allocation7 + $0x818] sm:$0xff]
    %v387 = vld [vmem:[#allocation7 + $0x820] sm:$0xff]
    %v388 = vld [vmem:[#allocation7 + $0x828] sm:$0xff]
    %v389 = vld [vmem:[#allocation7 + $0x830] sm:$0xff]
    %v390 = vld [vmem:[#allocation7 + $0x838] sm:$0xff]
    %v391 = vld [vmem:[#allocation7 + $0x840] sm:$0xff]
    %v392 = vld [vmem:[#allocation7 + $0x848] sm:$0xff]
    %v393 = vld [vmem:[#allocation7 + $0x850] sm:$0xff]
    %v394 = vld [vmem:[#allocation7 + $0x858] sm:$0xff]
    %v395 = vld [vmem:[#allocation7 + $0x860] sm:$0xff]
    %v396 = vld [vmem:[#allocation7 + $0x868] sm:$0xff]
    %v397 = vld [vmem:[#allocation7 + $0x870] sm:$0xff]
    %v398 = vld [vmem:[#allocation7 + $0x878] sm:$0xff]
    %v399 = vld [vmem:[#allocation7 + $0x880] sm:$0xff]
    %v400 = vld [vmem:[#allocation7 + $0x888] sm:$0xff]
    %v401 = vld [vmem:[#allocation7 + $0x890] sm:$0xff]
    %v402 = vld [vmem:[#allocation7 + $0x898] sm:$0xff]
    %v403 = vld [vmem:[#allocation7 + $0x8a0] sm:$0xff]
    %v404 = vld [vmem:[#allocation7 + $0x8a8] sm:$0xff]
    %v405 = vld [vmem:[#allocation7 + $0x8b0] sm:$0xff]
    %v406 = vld [vmem:[#allocation7 + $0x8b8] sm:$0xff]
    %v407 = vld [vmem:[#allocation7 + $0x8c0] sm:$0xff]
    %v408 = vld [vmem:[#allocation7 + $0x8c8] sm:$0xff]
    %v409 = vld [vmem:[#allocation7 + $0x8d0] sm:$0xff]
    %v410 = vld [vmem:[#allocation7 + $0x8d8] sm:$0xff]
    %v411 = vld [vmem:[#allocation7 + $0x8e0] sm:$0xff]
    %v412 = vld [vmem:[#allocation7 + $0x8e8] sm:$0xff]
    %v413 = vld [vmem:[#allocation7 + $0x8f0] sm:$0xff]
    %v414 = vld [vmem:[#allocation7 + $0x8f8] sm:$0xff]
    %v415 = vld [vmem:[#allocation5] sm:$0xff]
    %v416 = vld [vmem:[#allocation5 + $0x8] sm:$0xff]
    %v417 = vld [vmem:[#allocation5 + $0x10] sm:$0xff]
    %v418 = vld [vmem:[#allocation5 + $0x18] sm:$0xff]
    %v419 = vld [vmem:[#allocation5 + $0x20] sm:$0xf]
    %v420 = vld [vmem:[#allocation5 + $0x24] sm:$0xff]
    %v421 = vld [vmem:[#allocation5 + $0x2c] sm:$0xff]
    %v422 = vld [vmem:[#allocation5 + $0x34] sm:$0xff]
    %v423 = vld [vmem:[#allocation5 + $0x3c] sm:$0xff]
    %v424 = vld [vmem:[#allocation5 + $0x44] sm:$0xf]
    %v425 = vld [vmem:[#allocation8] sm:$0xff]
    %v426 = vld [vmem:[#allocation8 + $0x8] sm:$0xff]
    %v427 = vld [vmem:[#allocation8 + $0x10] sm:$0xff]
    %v428 = vld [vmem:[#allocation8 + $0x18] sm:$0xff]
    %v429 = vld [vmem:[#allocation8 + $0x20] sm:$0xff]
    %v430 = vld [vmem:[#allocation8 + $0x28] sm:$0xff]
    %v431 = vld [vmem:[#allocation8 + $0x30] sm:$0xff]
    %v432 = vld [vmem:[#allocation8 + $0x38] sm:$0xff]
    %v433 = vld [vmem:[#allocation8 + $0x40] sm:$0xff]
    %v434 = vld [vmem:[#allocation8 + $0x48] sm:$0xff]
    %v435 = vld [vmem:[#allocation8 + $0x50] sm:$0xff]
    %v436 = vld [vmem:[#allocation8 + $0x58] sm:$0xff]
    %v437 = vld [vmem:[#allocation8 + $0x60] sm:$0xff]
    %v438 = vld [vmem:[#allocation8 + $0x68] sm:$0xff]
    %v439 = vld [vmem:[#allocation8 + $0x70] sm:$0xff]
    %v440 = vld [vmem:[#allocation8 + $0x78] sm:$0xff]
    %v441 = vld [vmem:[#allocation8 + $0x80] sm:$0xff]
    %v442 = vld [vmem:[#allocation8 + $0x88] sm:$0xff]
    %v443 = vld [vmem:[#allocation8 + $0x90] sm:$0xff]
    %v444 = vld [vmem:[#allocation8 + $0x98] sm:$0xff]
    %v445 = vld [vmem:[#allocation8 + $0xa0] sm:$0xff]
    %v446 = vld [vmem:[#allocation8 + $0xa8] sm:$0xff]
    %v447 = vld [vmem:[#allocation8 + $0xb0] sm:$0xff]
    %v448 = vld [vmem:[#allocation8 + $0xb8] sm:$0xff]
    %v449 = vld [vmem:[#allocation8 + $0xc0] sm:$0xff]
    %v450 = vld [vmem:[#allocation8 + $0xc8] sm:$0xff]
    %v451 = vld [vmem:[#allocation8 + $0xd0] sm:$0xff]
    %v452 = vld [vmem:[#allocation8 + $0xd8] sm:$0xff]
    %v453 = vld [vmem:[#allocation8 + $0xe0] sm:$0xff]
    %v454 = vld [vmem:[#allocation8 + $0xe8] sm:$0xff]
    %v455 = vld [vmem:[#allocation8 + $0xf0] sm:$0xff]
    %v456 = vld [vmem:[#allocation8 + $0xf8] sm:$0xff]
    %v457 = vld [vmem:[#allocation8 + $0x100] sm:$0xff]
    %v458 = vld [vmem:[#allocation8 + $0x108] sm:$0xff]
    %v459 = vld [vmem:[#allocation8 + $0x110] sm:$0xff]
    %v460 = vld [vmem:[#allocation8 + $0x118] sm:$0xff]
    %v461 = vld [vmem:[#allocation8 + $0x120] sm:$0xff]
    %v462 = vld [vmem:[#allocation8 + $0x128] sm:$0xff]
    %v463 = vld [vmem:[#allocation8 + $0x130] sm:$0xff]
    %v464 = vld [vmem:[#allocation8 + $0x138] sm:$0xff]
    %v465 = vld [vmem:[#allocation8 + $0x140] sm:$0xff]
    %v466 = vld [vmem:[#allocation8 + $0x148] sm:$0xff]
    %v467 = vld [vmem:[#allocation8 + $0x150] sm:$0xff]
    %v468 = vld [vmem:[#allocation8 + $0x158] sm:$0xff]
    %v469 = vld [vmem:[#allocation8 + $0x160] sm:$0xff]
    %v470 = vld [vmem:[#allocation8 + $0x168] sm:$0xff]
    %v471 = vld [vmem:[#allocation8 + $0x170] sm:$0xff]
    %v472 = vld [vmem:[#allocation8 + $0x178] sm:$0xff]
    %v473 = vld [vmem:[#allocation8 + $0x180] sm:$0xff]
    %v474 = vld [vmem:[#allocation8 + $0x188] sm:$0xff]
    %v475 = vld [vmem:[#allocation8 + $0x190] sm:$0xff]
    %v476 = vld [vmem:[#allocation8 + $0x198] sm:$0xff]
    %v477 = vld [vmem:[#allocation8 + $0x1a0] sm:$0xff]
    %v478 = vld [vmem:[#allocation8 + $0x1a8] sm:$0xff]
    %v479 = vld [vmem:[#allocation8 + $0x1b0] sm:$0xff]
    %v480 = vld [vmem:[#allocation8 + $0x1b8] sm:$0xff]
    %v481 = vld [vmem:[#allocation8 + $0x1c0] sm:$0xff]
    %v482 = vld [vmem:[#allocation8 + $0x1c8] sm:$0xff]
    %v483 = vld [vmem:[#allocation8 + $0x1d0] sm:$0xff]
    %v484 = vld [vmem:[#allocation8 + $0x1d8] sm:$0xff]
    %v485 = vld [vmem:[#allocation8 + $0x1e0] sm:$0xff]
    %v486 = vld [vmem:[#allocation8 + $0x1e8] sm:$0xff]
    %v487 = vld [vmem:[#allocation8 + $0x1f0] sm:$0xff]
    %v488 = vld [vmem:[#allocation8 + $0x1f8] sm:$0xff]
    %v489 = vld [vmem:[#allocation8 + $0x200] sm:$0xff]
    %v490 = vld [vmem:[#allocation8 + $0x208] sm:$0xff]
    %v491 = vld [vmem:[#allocation8 + $0x210] sm:$0xff]
    %v492 = vld [vmem:[#allocation8 + $0x218] sm:$0xff]
    %v493 = vld [vmem:[#allocation8 + $0x220] sm:$0xff]
    %v494 = vld [vmem:[#allocation8 + $0x228] sm:$0xff]
    %v495 = vld [vmem:[#allocation8 + $0x230] sm:$0xff]
    %v496 = vld [vmem:[#allocation8 + $0x238] sm:$0xff]
    %v497 = vld [vmem:[#allocation8 + $0x240] sm:$0xff]
    %v498 = vld [vmem:[#allocation8 + $0x248] sm:$0xff]
    %v499 = vld [vmem:[#allocation8 + $0x250] sm:$0xff]
    %v500 = vld [vmem:[#allocation8 + $0x258] sm:$0xff]
    %v501 = vld [vmem:[#allocation8 + $0x260] sm:$0xff]
    %v502 = vld [vmem:[#allocation8 + $0x268] sm:$0xff]
    %v503 = vld [vmem:[#allocation8 + $0x270] sm:$0xff]
    %v504 = vld [vmem:[#allocation8 + $0x278] sm:$0xff]
    %v505 = vld [vmem:[#allocation8 + $0x280] sm:$0xff]
    %v506 = vld [vmem:[#allocation8 + $0x288] sm:$0xff]
    %v507 = vld [vmem:[#allocation8 + $0x290] sm:$0xff]
    %v508 = vld [vmem:[#allocation8 + $0x298] sm:$0xff]
    %v509 = vld [vmem:[#allocation8 + $0x2a0] sm:$0xff]
    %v510 = vld [vmem:[#allocation8 + $0x2a8] sm:$0xff]
    %v511 = vld [vmem:[#allocation8 + $0x2b0] sm:$0xff]
    %v512 = vld [vmem:[#allocation8 + $0x2b8] sm:$0xff]
    %v513 = vld [vmem:[#allocation8 + $0x2c0] sm:$0xff]
    %v514 = vld [vmem:[#allocation8 + $0x2c8] sm:$0xff]
    %v515 = vld [vmem:[#allocation8 + $0x2d0] sm:$0xff]
    %v516 = vld [vmem:[#allocation8 + $0x2d8] sm:$0xff]
    %v517 = vld [vmem:[#allocation8 + $0x2e0] sm:$0xff]
    %v518 = vld [vmem:[#allocation8 + $0x2e8] sm:$0xff]
    %v519 = vld [vmem:[#allocation8 + $0x2f0] sm:$0xff]
    %v520 = vld [vmem:[#allocation8 + $0x2f8] sm:$0xff]
    %v521 = vld [vmem:[#allocation8 + $0x300] sm:$0xff]
    %v522 = vld [vmem:[#allocation8 + $0x308] sm:$0xff]
    %v523 = vld [vmem:[#allocation8 + $0x310] sm:$0xff]
    %v524 = vld [vmem:[#allocation8 + $0x318] sm:$0xff]
    %v525 = vld [vmem:[#allocation8 + $0x320] sm:$0xff]
    %v526 = vld [vmem:[#allocation8 + $0x328] sm:$0xff]
    %v527 = vld [vmem:[#allocation8 + $0x330] sm:$0xff]
    %v528 = vld [vmem:[#allocation8 + $0x338] sm:$0xff]
    %v529 = vld [vmem:[#allocation8 + $0x340] sm:$0xff]
    %v530 = vld [vmem:[#allocation8 + $0x348] sm:$0xff]
    %v531 = vld [vmem:[#allocation8 + $0x350] sm:$0xff]
    %v532 = vld [vmem:[#allocation8 + $0x358] sm:$0xff]
    %v533 = vld [vmem:[#allocation8 + $0x360] sm:$0xff]
    %v534 = vld [vmem:[#allocation8 + $0x368] sm:$0xff]
    %v535 = vld [vmem:[#allocation8 + $0x370] sm:$0xff]
    %v536 = vld [vmem:[#allocation8 + $0x378] sm:$0xff]
    %v537 = vld [vmem:[#allocation8 + $0x380] sm:$0xff]
    %v538 = vld [vmem:[#allocation8 + $0x388] sm:$0xff]
    %v539 = vld [vmem:[#allocation8 + $0x390] sm:$0xff]
    %v540 = vld [vmem:[#allocation8 + $0x398] sm:$0xff]
    %v541 = vld [vmem:[#allocation8 + $0x3a0] sm:$0xff]
    %v542 = vld [vmem:[#allocation8 + $0x3a8] sm:$0xff]
    %v543 = vld [vmem:[#allocation8 + $0x3b0] sm:$0xff]
    %v544 = vld [vmem:[#allocation8 + $0x3b8] sm:$0xff]
    %v545 = vld [vmem:[#allocation8 + $0x3c0] sm:$0xff]
    %v546 = vld [vmem:[#allocation8 + $0x3c8] sm:$0xff]
    %v547 = vld [vmem:[#allocation8 + $0x3d0] sm:$0xff]
    %v548 = vld [vmem:[#allocation8 + $0x3d8] sm:$0xff]
    %v549 = vld [vmem:[#allocation8 + $0x3e0] sm:$0xff]
    %v550 = vld [vmem:[#allocation8 + $0x3e8] sm:$0xff]
    %v551 = vld [vmem:[#allocation8 + $0x3f0] sm:$0xff]
    %v552 = vld [vmem:[#allocation8 + $0x3f8] sm:$0xff]
    %v553 = vld [vmem:[#allocation8 + $0x400] sm:$0xff]
    %v554 = vld [vmem:[#allocation8 + $0x408] sm:$0xff]
    %v555 = vld [vmem:[#allocation8 + $0x410] sm:$0xff]
    %v556 = vld [vmem:[#allocation8 + $0x418] sm:$0xff]
    %v557 = vld [vmem:[#allocation8 + $0x420] sm:$0xff]
    %v558 = vld [vmem:[#allocation8 + $0x428] sm:$0xff]
    %v559 = vld [vmem:[#allocation8 + $0x430] sm:$0xff]
    %v560 = vld [vmem:[#allocation8 + $0x438] sm:$0xff]
    %v561 = vld [vmem:[#allocation8 + $0x440] sm:$0xff]
    %v562 = vld [vmem:[#allocation8 + $0x448] sm:$0xff]
    %v563 = vld [vmem:[#allocation8 + $0x450] sm:$0xff]
    %v564 = vld [vmem:[#allocation8 + $0x458] sm:$0xff]
    %v565 = vld [vmem:[#allocation8 + $0x460] sm:$0xff]
    %v566 = vld [vmem:[#allocation8 + $0x468] sm:$0xff]
    %v567 = vld [vmem:[#allocation8 + $0x470] sm:$0xff]
    %v568 = vld [vmem:[#allocation8 + $0x478] sm:$0xff]
    %v569 = vld [vmem:[#allocation8 + $0x480] sm:$0xff]
    %v570 = vld [vmem:[#allocation8 + $0x488] sm:$0xff]
    %v571 = vld [vmem:[#allocation8 + $0x490] sm:$0xff]
    %v572 = vld [vmem:[#allocation8 + $0x498] sm:$0xff]
    %v573 = vld [vmem:[#allocation8 + $0x4a0] sm:$0xff]
    %v574 = vld [vmem:[#allocation8 + $0x4a8] sm:$0xff]
    %v575 = vld [vmem:[#allocation8 + $0x4b0] sm:$0xff]
    %v576 = vld [vmem:[#allocation8 + $0x4b8] sm:$0xff]
    %v577 = vld [vmem:[#allocation8 + $0x4c0] sm:$0xff]
    %v578 = vld [vmem:[#allocation8 + $0x4c8] sm:$0xff]
    %v579 = vld [vmem:[#allocation8 + $0x4d0] sm:$0xff]
    %v580 = vld [vmem:[#allocation8 + $0x4d8] sm:$0xff]
    %v581 = vld [vmem:[#allocation8 + $0x4e0] sm:$0xff]
    %v582 = vld [vmem:[#allocation8 + $0x4e8] sm:$0xff]
    %v583 = vld [vmem:[#allocation8 + $0x4f0] sm:$0xff]
    %v584 = vld [vmem:[#allocation8 + $0x4f8] sm:$0xff]
    %v585 = vld [vmem:[#allocation8 + $0x500] sm:$0xff]
    %v586 = vld [vmem:[#allocation8 + $0x508] sm:$0xff]
    %v587 = vld [vmem:[#allocation8 + $0x510] sm:$0xff]
    %v588 = vld [vmem:[#allocation8 + $0x518] sm:$0xff]
    %v589 = vld [vmem:[#allocation8 + $0x520] sm:$0xff]
    %v590 = vld [vmem:[#allocation8 + $0x528] sm:$0xff]
    %v591 = vld [vmem:[#allocation8 + $0x530] sm:$0xff]
    %v592 = vld [vmem:[#allocation8 + $0x538] sm:$0xff]
    %v593 = vld [vmem:[#allocation8 + $0x540] sm:$0xff]
    %v594 = vld [vmem:[#allocation8 + $0x548] sm:$0xff]
    %v595 = vld [vmem:[#allocation8 + $0x550] sm:$0xff]
    %v596 = vld [vmem:[#allocation8 + $0x558] sm:$0xff]
    %v597 = vld [vmem:[#allocation8 + $0x560] sm:$0xff]
    %v598 = vld [vmem:[#allocation8 + $0x568] sm:$0xff]
    %v599 = vld [vmem:[#allocation8 + $0x570] sm:$0xff]
    %v600 = vld [vmem:[#allocation8 + $0x578] sm:$0xff]
    %v601 = vld [vmem:[#allocation8 + $0x580] sm:$0xff]
    %v602 = vld [vmem:[#allocation8 + $0x588] sm:$0xff]
    %v603 = vld [vmem:[#allocation8 + $0x590] sm:$0xff]
    %v604 = vld [vmem:[#allocation8 + $0x598] sm:$0xff]
    %v605 = vld [vmem:[#allocation8 + $0x5a0] sm:$0xff]
    %v606 = vld [vmem:[#allocation8 + $0x5a8] sm:$0xff]
    %v607 = vld [vmem:[#allocation8 + $0x5b0] sm:$0xff]
    %v608 = vld [vmem:[#allocation8 + $0x5b8] sm:$0xff]
    %v609 = vld [vmem:[#allocation8 + $0x5c0] sm:$0xff]
    %v610 = vld [vmem:[#allocation8 + $0x5c8] sm:$0xff]
    %v611 = vld [vmem:[#allocation8 + $0x5d0] sm:$0xff]
    %v612 = vld [vmem:[#allocation8 + $0x5d8] sm:$0xff]
    %v613 = vld [vmem:[#allocation8 + $0x5e0] sm:$0xff]
    %v614 = vld [vmem:[#allocation8 + $0x5e8] sm:$0xff]
    %v615 = vld [vmem:[#allocation8 + $0x5f0] sm:$0xff]
    %v616 = vld [vmem:[#allocation8 + $0x5f8] sm:$0xff]
    %v617 = vld [vmem:[#allocation8 + $0x600] sm:$0xff]
    %v618 = vld [vmem:[#allocation8 + $0x608] sm:$0xff]
    %v619 = vld [vmem:[#allocation8 + $0x610] sm:$0xff]
    %v620 = vld [vmem:[#allocation8 + $0x618] sm:$0xff]
    %v621 = vld [vmem:[#allocation8 + $0x620] sm:$0xff]
    %v622 = vld [vmem:[#allocation8 + $0x628] sm:$0xff]
    %v623 = vld [vmem:[#allocation8 + $0x630] sm:$0xff]
    %v624 = vld [vmem:[#allocation8 + $0x638] sm:$0xff]
    %v625 = vld [vmem:[#allocation8 + $0x640] sm:$0xff]
    %v626 = vld [vmem:[#allocation8 + $0x648] sm:$0xff]
    %v627 = vld [vmem:[#allocation8 + $0x650] sm:$0xff]
    %v628 = vld [vmem:[#allocation8 + $0x658] sm:$0xff]
    %v629 = vld [vmem:[#allocation8 + $0x660] sm:$0xff]
    %v630 = vld [vmem:[#allocation8 + $0x668] sm:$0xff]
    %v631 = vld [vmem:[#allocation8 + $0x670] sm:$0xff]
    %v632 = vld [vmem:[#allocation8 + $0x678] sm:$0xff]
    %v633 = vld [vmem:[#allocation8 + $0x680] sm:$0xff]
    %v634 = vld [vmem:[#allocation8 + $0x688] sm:$0xff]
    %v635 = vld [vmem:[#allocation8 + $0x690] sm:$0xff]
    %v636 = vld [vmem:[#allocation8 + $0x698] sm:$0xff]
    %v637 = vld [vmem:[#allocation8 + $0x6a0] sm:$0xff]
    %v638 = vld [vmem:[#allocation8 + $0x6a8] sm:$0xff]
    %v639 = vld [vmem:[#allocation8 + $0x6b0] sm:$0xff]
    %v640 = vld [vmem:[#allocation8 + $0x6b8] sm:$0xff]
    %v641 = vld [vmem:[#allocation8 + $0x6c0] sm:$0xff]
    %v642 = vld [vmem:[#allocation8 + $0x6c8] sm:$0xff]
    %v643 = vld [vmem:[#allocation8 + $0x6d0] sm:$0xff]
    %v644 = vld [vmem:[#allocation8 + $0x6d8] sm:$0xff]
    %v645 = vld [vmem:[#allocation8 + $0x6e0] sm:$0xff]
    %v646 = vld [vmem:[#allocation8 + $0x6e8] sm:$0xff]
    %v647 = vld [vmem:[#allocation8 + $0x6f0] sm:$0xff]
    %v648 = vld [vmem:[#allocation8 + $0x6f8] sm:$0xff]
    %v649 = vld [vmem:[#allocation8 + $0x700] sm:$0xff]
    %v650 = vld [vmem:[#allocation8 + $0x708] sm:$0xff]
    %v651 = vld [vmem:[#allocation8 + $0x710] sm:$0xff]
    %v652 = vld [vmem:[#allocation8 + $0x718] sm:$0xff]
    %v653 = vld [vmem:[#allocation8 + $0x720] sm:$0xff]
    %v654 = vld [vmem:[#allocation8 + $0x728] sm:$0xff]
    %v655 = vld [vmem:[#allocation8 + $0x730] sm:$0xff]
    %v656 = vld [vmem:[#allocation8 + $0x738] sm:$0xff]
    %v657 = vld [vmem:[#allocation8 + $0x740] sm:$0xff]
    %v658 = vld [vmem:[#allocation8 + $0x748] sm:$0xff]
    %v659 = vld [vmem:[#allocation8 + $0x750] sm:$0xff]
    %v660 = vld [vmem:[#allocation8 + $0x758] sm:$0xff]
    %v661 = vld [vmem:[#allocation8 + $0x760] sm:$0xff]
    %v662 = vld [vmem:[#allocation8 + $0x768] sm:$0xff]
    %v663 = vld [vmem:[#allocation8 + $0x770] sm:$0xff]
    %v664 = vld [vmem:[#allocation8 + $0x778] sm:$0xff]
    %v665 = vld [vmem:[#allocation8 + $0x780] sm:$0xff]
    %v666 = vld [vmem:[#allocation8 + $0x788] sm:$0xff]
    %v667 = vld [vmem:[#allocation8 + $0x790] sm:$0xff]
    %v668 = vld [vmem:[#allocation8 + $0x798] sm:$0xff]
    %v669 = vld [vmem:[#allocation8 + $0x7a0] sm:$0xff]
    %v670 = vld [vmem:[#allocation8 + $0x7a8] sm:$0xff]
    %v671 = vld [vmem:[#allocation8 + $0x7b0] sm:$0xff]
    %v672 = vld [vmem:[#allocation8 + $0x7b8] sm:$0xff]
    %v673 = vld [vmem:[#allocation8 + $0x7c0] sm:$0xff]
    %v674 = vld [vmem:[#allocation8 + $0x7c8] sm:$0xff]
    %v675 = vld [vmem:[#allocation8 + $0x7d0] sm:$0xff]
    %v676 = vld [vmem:[#allocation8 + $0x7d8] sm:$0xff]
    %v677 = vld [vmem:[#allocation8 + $0x7e0] sm:$0xff]
    %v678 = vld [vmem:[#allocation8 + $0x7e8] sm:$0xff]
    %v679 = vld [vmem:[#allocation8 + $0x7f0] sm:$0xff]
    %v680 = vld [vmem:[#allocation8 + $0x7f8] sm:$0xff]
    %v681 = vld [vmem:[#allocation8 + $0x800] sm:$0xff]
    %v682 = vld [vmem:[#allocation8 + $0x808] sm:$0xff]
    %v683 = vld [vmem:[#allocation8 + $0x810] sm:$0xff]
    %v684 = vld [vmem:[#allocation8 + $0x818] sm:$0xff]
    %v685 = vld [vmem:[#allocation8 + $0x820] sm:$0xff]
    %v686 = vld [vmem:[#allocation8 + $0x828] sm:$0xff]
    %v687 = vld [vmem:[#allocation8 + $0x830] sm:$0xff]
    %v688 = vld [vmem:[#allocation8 + $0x838] sm:$0xff]
    %v689 = vld [vmem:[#allocation8 + $0x840] sm:$0xff]
    %v690 = vld [vmem:[#allocation8 + $0x848] sm:$0xff]
    %v691 = vld [vmem:[#allocation8 + $0x850] sm:$0xff]
    %v692 = vld [vmem:[#allocation8 + $0x858] sm:$0xff]
    %v693 = vld [vmem:[#allocation8 + $0x860] sm:$0xff]
    %v694 = vld [vmem:[#allocation8 + $0x868] sm:$0xff]
    %v695 = vld [vmem:[#allocation8 + $0x870] sm:$0xff]
    %v696 = vld [vmem:[#allocation8 + $0x878] sm:$0xff]
    %v697 = vld [vmem:[#allocation8 + $0x880] sm:$0xff]
    %v698 = vld [vmem:[#allocation8 + $0x888] sm:$0xff]
    %v699 = vld [vmem:[#allocation8 + $0x890] sm:$0xff]
    %v700 = vld [vmem:[#allocation8 + $0x898] sm:$0xff]
    %v701 = vld [vmem:[#allocation8 + $0x8a0] sm:$0xff]
    %v702 = vld [vmem:[#allocation8 + $0x8a8] sm:$0xff]
    %v703 = vld [vmem:[#allocation8 + $0x8b0] sm:$0xff]
    %v704 = vld [vmem:[#allocation8 + $0x8b8] sm:$0xff]
    %v705 = vld [vmem:[#allocation8 + $0x8c0] sm:$0xff]
    %v706 = vld [vmem:[#allocation8 + $0x8c8] sm:$0xff]
    %v707 = vld [vmem:[#allocation8 + $0x8d0] sm:$0xff]
    %v708 = vld [vmem:[#allocation8 + $0x8d8] sm:$0xff]
    %v709 = vld [vmem:[#allocation8 + $0x8e0] sm:$0xff]
    %v710 = vld [vmem:[#allocation8 + $0x8e8] sm:$0xff]
    %v711 = vld [vmem:[#allocation8 + $0x8f0] sm:$0xff]
    %v712 = vld [vmem:[#allocation8 + $0x8f8] sm:$0xff]
    %v723 = vunpack.c.l.b16 %v415
    %v724 = vunpack.c.h.b16 %v415
    %v725 = vunpack.c.l.b16 %v416
    %v726 = vunpack.c.h.b16 %v416
    %v727 = vunpack.c.l.b16 %v417
    %v728 = vunpack.c.h.b16 %v417
    %v729 = vunpack.c.l.b16 %v418
    %v730 = vunpack.c.h.b16 %v418
    %v731 = vunpack.c.l.b16 %v419
    %v732 = vunpack.c.l.b16 %v420
    %v733 = vunpack.c.h.b16 %v420
    %v734 = vunpack.c.l.b16 %v421
    %v735 = vunpack.c.h.b16 %v421
    %v736 = vunpack.c.l.b16 %v422
    %v737 = vunpack.c.h.b16 %v422
    %v738 = vunpack.c.l.b16 %v423
    %v739 = vunpack.c.h.b16 %v423
    %v740 = vunpack.c.l.b16 %v424
    %v741 = vpack.c.b16 %v732, %v723
    %v742 = vpack.c.b16 %v733, %v724
    %v743 = vpack.c.b16 %v734, %v725
    %v744 = vpack.c.b16 %v735, %v726
    %v745 = vpack.c.b16 %v736, %v727
    %v746 = vpack.c.b16 %v737, %v728
    %v747 = vpack.c.b16 %v738, %v729
    %v748 = vpack.c.b16 %v739, %v730
    %v749 = vpack.c.b16 %v740, %v731
    %v1047 = vunpack.c.l.b16 %v425
    %v1048 = vunpack.c.h.b16 %v425
    %v1049 = vunpack.c.l.b16 %v426
    %v1050 = vunpack.c.h.b16 %v426
    %v1051 = vunpack.c.l.b16 %v427
    %v1052 = vunpack.c.h.b16 %v427
    %v1053 = vunpack.c.l.b16 %v428
    %v1054 = vunpack.c.h.b16 %v428
    %v1055 = vunpack.c.l.b16 %v429
    %v1056 = vunpack.c.h.b16 %v429
    %v1057 = vunpack.c.l.b16 %v430
    %v1058 = vunpack.c.h.b16 %v430
    %v1059 = vunpack.c.l.b16 %v431
    %v1060 = vunpack.c.h.b16 %v431
    %v1061 = vunpack.c.l.b16 %v432
    %v1062 = vunpack.c.h.b16 %v432
    %v1063 = vunpack.c.l.b16 %v433
    %v1064 = vunpack.c.h.b16 %v433
    %v1065 = vunpack.c.l.b16 %v434
    %v1066 = vunpack.c.h.b16 %v434
    %v1067 = vunpack.c.l.b16 %v435
    %v1068 = vunpack.c.h.b16 %v435
    %v1069 = vunpack.c.l.b16 %v436
    %v1070 = vunpack.c.h.b16 %v436
    %v1071 = vunpack.c.l.b16 %v437
    %v1072 = vunpack.c.h.b16 %v437
    %v1073 = vunpack.c.l.b16 %v438
    %v1074 = vunpack.c.h.b16 %v438
    %v1075 = vunpack.c.l.b16 %v439
    %v1076 = vunpack.c.h.b16 %v439
    %v1077 = vunpack.c.l.b16 %v440
    %v1078 = vunpack.c.h.b16 %v440
    %v1079 = vunpack.c.l.b16 %v441
    %v1080 = vunpack.c.h.b16 %v441
    %v1081 = vunpack.c.l.b16 %v442
    %v1082 = vunpack.c.h.b16 %v442
    %v1083 = vunpack.c.l.b16 %v443
    %v1084 = vunpack.c.h.b16 %v443
    %v1085 = vunpack.c.l.b16 %v444
    %v1086 = vunpack.c.h.b16 %v444
    %v1087 = vunpack.c.l.b16 %v445
    %v1088 = vunpack.c.h.b16 %v445
    %v1089 = vunpack.c.l.b16 %v446
    %v1090 = vunpack.c.h.b16 %v446
    %v1091 = vunpack.c.l.b16 %v447
    %v1092 = vunpack.c.h.b16 %v447
    %v1093 = vunpack.c.l.b16 %v448
    %v1094 = vunpack.c.h.b16 %v448
    %v1095 = vunpack.c.l.b16 %v449
    %v1096 = vunpack.c.h.b16 %v449
    %v1097 = vunpack.c.l.b16 %v450
    %v1098 = vunpack.c.h.b16 %v450
    %v1099 = vunpack.c.l.b16 %v451
    %v1100 = vunpack.c.h.b16 %v451
    %v1101 = vunpack.c.l.b16 %v452
    %v1102 = vunpack.c.h.b16 %v452
    %v1103 = vunpack.c.l.b16 %v453
    %v1104 = vunpack.c.h.b16 %v453
    %v1105 = vunpack.c.l.b16 %v454
    %v1106 = vunpack.c.h.b16 %v454
    %v1107 = vunpack.c.l.b16 %v455
    %v1108 = vunpack.c.h.b16 %v455
    %v1109 = vunpack.c.l.b16 %v456
    %v1110 = vunpack.c.h.b16 %v456
    %v1111 = vunpack.c.l.b16 %v457
    %v1112 = vunpack.c.h.b16 %v457
    %v1113 = vunpack.c.l.b16 %v458
    %v1114 = vunpack.c.h.b16 %v458
    %v1115 = vunpack.c.l.b16 %v459
    %v1116 = vunpack.c.h.b16 %v459
    %v1117 = vunpack.c.l.b16 %v460
    %v1118 = vunpack.c.h.b16 %v460
    %v1119 = vunpack.c.l.b16 %v461
    %v1120 = vunpack.c.h.b16 %v461
    %v1121 = vunpack.c.l.b16 %v462
    %v1122 = vunpack.c.h.b16 %v462
    %v1123 = vunpack.c.l.b16 %v463
    %v1124 = vunpack.c.h.b16 %v463
    %v1125 = vunpack.c.l.b16 %v464
    %v1126 = vunpack.c.h.b16 %v464
    %v1127 = vunpack.c.l.b16 %v465
    %v1128 = vunpack.c.h.b16 %v465
    %v1129 = vunpack.c.l.b16 %v466
    %v1130 = vunpack.c.h.b16 %v466
    %v1131 = vunpack.c.l.b16 %v467
    %v1132 = vunpack.c.h.b16 %v467
    %v1133 = vunpack.c.l.b16 %v468
    %v1134 = vunpack.c.h.b16 %v468
    %v1135 = vunpack.c.l.b16 %v469
    %v1136 = vunpack.c.h.b16 %v469
    %v1137 = vunpack.c.l.b16 %v470
    %v1138 = vunpack.c.h.b16 %v470
    %v1139 = vunpack.c.l.b16 %v471
    %v1140 = vunpack.c.h.b16 %v471
    %v1141 = vunpack.c.l.b16 %v472
    %v1142 = vunpack.c.h.b16 %v472
    %v1143 = vunpack.c.l.b16 %v473
    %v1144 = vunpack.c.h.b16 %v473
    %v1145 = vunpack.c.l.b16 %v474
    %v1146 = vunpack.c.h.b16 %v474
    %v1147 = vunpack.c.l.b16 %v475
    %v1148 = vunpack.c.h.b16 %v475
    %v1149 = vunpack.c.l.b16 %v476
    %v1150 = vunpack.c.h.b16 %v476
    %v1151 = vunpack.c.l.b16 %v477
    %v1152 = vunpack.c.h.b16 %v477
    %v1153 = vunpack.c.l.b16 %v478
    %v1154 = vunpack.c.h.b16 %v478
    %v1155 = vunpack.c.l.b16 %v479
    %v1156 = vunpack.c.h.b16 %v479
    %v1157 = vunpack.c.l.b16 %v480
    %v1158 = vunpack.c.h.b16 %v480
    %v1159 = vunpack.c.l.b16 %v481
    %v1160 = vunpack.c.h.b16 %v481
    %v1161 = vunpack.c.l.b16 %v482
    %v1162 = vunpack.c.h.b16 %v482
    %v1163 = vunpack.c.l.b16 %v483
    %v1164 = vunpack.c.h.b16 %v483
    %v1165 = vunpack.c.l.b16 %v484
    %v1166 = vunpack.c.h.b16 %v484
    %v1167 = vunpack.c.l.b16 %v485
    %v1168 = vunpack.c.h.b16 %v485
    %v1169 = vunpack.c.l.b16 %v486
    %v1170 = vunpack.c.h.b16 %v486
    %v1171 = vunpack.c.l.b16 %v487
    %v1172 = vunpack.c.h.b16 %v487
    %v1173 = vunpack.c.l.b16 %v488
    %v1174 = vunpack.c.h.b16 %v488
    %v1175 = vunpack.c.l.b16 %v489
    %v1176 = vunpack.c.h.b16 %v489
    %v1177 = vunpack.c.l.b16 %v490
    %v1178 = vunpack.c.h.b16 %v490
    %v1179 = vunpack.c.l.b16 %v491
    %v1180 = vunpack.c.h.b16 %v491
    %v1181 = vunpack.c.l.b16 %v492
    %v1182 = vunpack.c.h.b16 %v492
    %v1183 = vunpack.c.l.b16 %v493
    %v1184 = vunpack.c.h.b16 %v493
    %v1185 = vunpack.c.l.b16 %v494
    %v1186 = vunpack.c.h.b16 %v494
    %v1187 = vunpack.c.l.b16 %v495
    %v1188 = vunpack.c.h.b16 %v495
    %v1189 = vunpack.c.l.b16 %v496
    %v1190 = vunpack.c.h.b16 %v496
    %v1191 = vunpack.c.l.b16 %v497
    %v1192 = vunpack.c.h.b16 %v497
    %v1193 = vunpack.c.l.b16 %v498
    %v1194 = vunpack.c.h.b16 %v498
    %v1195 = vunpack.c.l.b16 %v499
    %v1196 = vunpack.c.h.b16 %v499
    %v1197 = vunpack.c.l.b16 %v500
    %v1198 = vunpack.c.h.b16 %v500
    %v1199 = vunpack.c.l.b16 %v501
    %v1200 = vunpack.c.h.b16 %v501
    %v1201 = vunpack.c.l.b16 %v502
    %v1202 = vunpack.c.h.b16 %v502
    %v1203 = vunpack.c.l.b16 %v503
    %v1204 = vunpack.c.h.b16 %v503
    %v1205 = vunpack.c.l.b16 %v504
    %v1206 = vunpack.c.h.b16 %v504
    %v1207 = vunpack.c.l.b16 %v505
    %v1208 = vunpack.c.h.b16 %v505
    %v1209 = vunpack.c.l.b16 %v506
    %v1210 = vunpack.c.h.b16 %v506
    %v1211 = vunpack.c.l.b16 %v507
    %v1212 = vunpack.c.h.b16 %v507
    %v1213 = vunpack.c.l.b16 %v508
    %v1214 = vunpack.c.h.b16 %v508
    %v1215 = vunpack.c.l.b16 %v509
    %v1216 = vunpack.c.h.b16 %v509
    %v1217 = vunpack.c.l.b16 %v510
    %v1218 = vunpack.c.h.b16 %v510
    %v1219 = vunpack.c.l.b16 %v511
    %v1220 = vunpack.c.h.b16 %v511
    %v1221 = vunpack.c.l.b16 %v512
    %v1222 = vunpack.c.h.b16 %v512
    %v1223 = vunpack.c.l.b16 %v513
    %v1224 = vunpack.c.h.b16 %v513
    %v1225 = vunpack.c.l.b16 %v514
    %v1226 = vunpack.c.h.b16 %v514
    %v1227 = vunpack.c.l.b16 %v515
    %v1228 = vunpack.c.h.b16 %v515
    %v1229 = vunpack.c.l.b16 %v516
    %v1230 = vunpack.c.h.b16 %v516
    %v1231 = vunpack.c.l.b16 %v517
    %v1232 = vunpack.c.h.b16 %v517
    %v1233 = vunpack.c.l.b16 %v518
    %v1234 = vunpack.c.h.b16 %v518
    %v1235 = vunpack.c.l.b16 %v519
    %v1236 = vunpack.c.h.b16 %v519
    %v1237 = vunpack.c.l.b16 %v520
    %v1238 = vunpack.c.h.b16 %v520
    %v1239 = vunpack.c.l.b16 %v521
    %v1240 = vunpack.c.h.b16 %v521
    %v1241 = vunpack.c.l.b16 %v522
    %v1242 = vunpack.c.h.b16 %v522
    %v1243 = vunpack.c.l.b16 %v523
    %v1244 = vunpack.c.h.b16 %v523
    %v1245 = vunpack.c.l.b16 %v524
    %v1246 = vunpack.c.h.b16 %v524
    %v1247 = vunpack.c.l.b16 %v525
    %v1248 = vunpack.c.h.b16 %v525
    %v1249 = vunpack.c.l.b16 %v526
    %v1250 = vunpack.c.h.b16 %v526
    %v1251 = vunpack.c.l.b16 %v527
    %v1252 = vunpack.c.h.b16 %v527
    %v1253 = vunpack.c.l.b16 %v528
    %v1254 = vunpack.c.h.b16 %v528
    %v1255 = vunpack.c.l.b16 %v529
    %v1256 = vunpack.c.h.b16 %v529
    %v1257 = vunpack.c.l.b16 %v530
    %v1258 = vunpack.c.h.b16 %v530
    %v1259 = vunpack.c.l.b16 %v531
    %v1260 = vunpack.c.h.b16 %v531
    %v1261 = vunpack.c.l.b16 %v532
    %v1262 = vunpack.c.h.b16 %v532
    %v1263 = vunpack.c.l.b16 %v533
    %v1264 = vunpack.c.h.b16 %v533
    %v1265 = vunpack.c.l.b16 %v534
    %v1266 = vunpack.c.h.b16 %v534
    %v1267 = vunpack.c.l.b16 %v535
    %v1268 = vunpack.c.h.b16 %v535
    %v1269 = vunpack.c.l.b16 %v536
    %v1270 = vunpack.c.h.b16 %v536
    %v1271 = vunpack.c.l.b16 %v537
    %v1272 = vunpack.c.h.b16 %v537
    %v1273 = vunpack.c.l.b16 %v538
    %v1274 = vunpack.c.h.b16 %v538
    %v1275 = vunpack.c.l.b16 %v539
    %v1276 = vunpack.c.h.b16 %v539
    %v1277 = vunpack.c.l.b16 %v540
    %v1278 = vunpack.c.h.b16 %v540
    %v1279 = vunpack.c.l.b16 %v541
    %v1280 = vunpack.c.h.b16 %v541
    %v1281 = vunpack.c.l.b16 %v542
    %v1282 = vunpack.c.h.b16 %v542
    %v1283 = vunpack.c.l.b16 %v543
    %v1284 = vunpack.c.h.b16 %v543
    %v1285 = vunpack.c.l.b16 %v544
    %v1286 = vunpack.c.h.b16 %v544
    %v1287 = vunpack.c.l.b16 %v545
    %v1288 = vunpack.c.h.b16 %v545
    %v1289 = vunpack.c.l.b16 %v546
    %v1290 = vunpack.c.h.b16 %v546
    %v1291 = vunpack.c.l.b16 %v547
    %v1292 = vunpack.c.h.b16 %v547
    %v1293 = vunpack.c.l.b16 %v548
    %v1294 = vunpack.c.h.b16 %v548
    %v1295 = vunpack.c.l.b16 %v549
    %v1296 = vunpack.c.h.b16 %v549
    %v1297 = vunpack.c.l.b16 %v550
    %v1298 = vunpack.c.h.b16 %v550
    %v1299 = vunpack.c.l.b16 %v551
    %v1300 = vunpack.c.h.b16 %v551
    %v1301 = vunpack.c.l.b16 %v552
    %v1302 = vunpack.c.h.b16 %v552
    %v1303 = vunpack.c.l.b16 %v553
    %v1304 = vunpack.c.h.b16 %v553
    %v1305 = vunpack.c.l.b16 %v554
    %v1306 = vunpack.c.h.b16 %v554
    %v1307 = vunpack.c.l.b16 %v555
    %v1308 = vunpack.c.h.b16 %v555
    %v1309 = vunpack.c.l.b16 %v556
    %v1310 = vunpack.c.h.b16 %v556
    %v1311 = vunpack.c.l.b16 %v557
    %v1312 = vunpack.c.h.b16 %v557
    %v1313 = vunpack.c.l.b16 %v558
    %v1314 = vunpack.c.h.b16 %v558
    %v1315 = vunpack.c.l.b16 %v559
    %v1316 = vunpack.c.h.b16 %v559
    %v1317 = vunpack.c.l.b16 %v560
    %v1318 = vunpack.c.h.b16 %v560
    %v1319 = vunpack.c.l.b16 %v561
    %v1320 = vunpack.c.h.b16 %v561
    %v1321 = vunpack.c.l.b16 %v562
    %v1322 = vunpack.c.h.b16 %v562
    %v1323 = vunpack.c.l.b16 %v563
    %v1324 = vunpack.c.h.b16 %v563
    %v1325 = vunpack.c.l.b16 %v564
    %v1326 = vunpack.c.h.b16 %v564
    %v1327 = vunpack.c.l.b16 %v565
    %v1328 = vunpack.c.h.b16 %v565
    %v1329 = vunpack.c.l.b16 %v566
    %v1330 = vunpack.c.h.b16 %v566
    %v1331 = vunpack.c.l.b16 %v567
    %v1332 = vunpack.c.h.b16 %v567
    %v1333 = vunpack.c.l.b16 %v568
    %v1334 = vunpack.c.h.b16 %v568
    %v1335 = vunpack.c.l.b16 %v569
    %v1336 = vunpack.c.h.b16 %v569
    %v1337 = vunpack.c.l.b16 %v570
    %v1338 = vunpack.c.h.b16 %v570
    %v1339 = vunpack.c.l.b16 %v571
    %v1340 = vunpack.c.h.b16 %v571
    %v1341 = vunpack.c.l.b16 %v572
    %v1342 = vunpack.c.h.b16 %v572
    %v1343 = vunpack.c.l.b16 %v573
    %v1344 = vunpack.c.h.b16 %v573
    %v1345 = vunpack.c.l.b16 %v574
    %v1346 = vunpack.c.h.b16 %v574
    %v1347 = vunpack.c.l.b16 %v575
    %v1348 = vunpack.c.h.b16 %v575
    %v1349 = vunpack.c.l.b16 %v576
    %v1350 = vunpack.c.h.b16 %v576
    %v1351 = vunpack.c.l.b16 %v577
    %v1352 = vunpack.c.h.b16 %v577
    %v1353 = vunpack.c.l.b16 %v578
    %v1354 = vunpack.c.h.b16 %v578
    %v1355 = vunpack.c.l.b16 %v579
    %v1356 = vunpack.c.h.b16 %v579
    %v1357 = vunpack.c.l.b16 %v580
    %v1358 = vunpack.c.h.b16 %v580
    %v1359 = vunpack.c.l.b16 %v581
    %v1360 = vunpack.c.h.b16 %v581
    %v1361 = vunpack.c.l.b16 %v582
    %v1362 = vunpack.c.h.b16 %v582
    %v1363 = vunpack.c.l.b16 %v583
    %v1364 = vunpack.c.h.b16 %v583
    %v1365 = vunpack.c.l.b16 %v584
    %v1366 = vunpack.c.h.b16 %v584
    %v1367 = vunpack.c.l.b16 %v585
    %v1368 = vunpack.c.h.b16 %v585
    %v1369 = vunpack.c.l.b16 %v586
    %v1370 = vunpack.c.h.b16 %v586
    %v1371 = vunpack.c.l.b16 %v587
    %v1372 = vunpack.c.h.b16 %v587
    %v1373 = vunpack.c.l.b16 %v588
    %v1374 = vunpack.c.h.b16 %v588
    %v1375 = vunpack.c.l.b16 %v589
    %v1376 = vunpack.c.h.b16 %v589
    %v1377 = vunpack.c.l.b16 %v590
    %v1378 = vunpack.c.h.b16 %v590
    %v1379 = vunpack.c.l.b16 %v591
    %v1380 = vunpack.c.h.b16 %v591
    %v1381 = vunpack.c.l.b16 %v592
    %v1382 = vunpack.c.h.b16 %v592
    %v1383 = vunpack.c.l.b16 %v593
    %v1384 = vunpack.c.h.b16 %v593
    %v1385 = vunpack.c.l.b16 %v594
    %v1386 = vunpack.c.h.b16 %v594
    %v1387 = vunpack.c.l.b16 %v595
    %v1388 = vunpack.c.h.b16 %v595
    %v1389 = vunpack.c.l.b16 %v596
    %v1390 = vunpack.c.h.b16 %v596
    %v1391 = vunpack.c.l.b16 %v597
    %v1392 = vunpack.c.h.b16 %v597
    %v1393 = vunpack.c.l.b16 %v598
    %v1394 = vunpack.c.h.b16 %v598
    %v1395 = vunpack.c.l.b16 %v599
    %v1396 = vunpack.c.h.b16 %v599
    %v1397 = vunpack.c.l.b16 %v600
    %v1398 = vunpack.c.h.b16 %v600
    %v1399 = vunpack.c.l.b16 %v601
    %v1400 = vunpack.c.h.b16 %v601
    %v1401 = vunpack.c.l.b16 %v602
    %v1402 = vunpack.c.h.b16 %v602
    %v1403 = vunpack.c.l.b16 %v603
    %v1404 = vunpack.c.h.b16 %v603
    %v1405 = vunpack.c.l.b16 %v604
    %v1406 = vunpack.c.h.b16 %v604
    %v1407 = vunpack.c.l.b16 %v605
    %v1408 = vunpack.c.h.b16 %v605
    %v1409 = vunpack.c.l.b16 %v606
    %v1410 = vunpack.c.h.b16 %v606
    %v1411 = vunpack.c.l.b16 %v607
    %v1412 = vunpack.c.h.b16 %v607
    %v1413 = vunpack.c.l.b16 %v608
    %v1414 = vunpack.c.h.b16 %v608
    %v1415 = vunpack.c.l.b16 %v609
    %v1416 = vunpack.c.h.b16 %v609
    %v1417 = vunpack.c.l.b16 %v610
    %v1418 = vunpack.c.h.b16 %v610
    %v1419 = vunpack.c.l.b16 %v611
    %v1420 = vunpack.c.h.b16 %v611
    %v1421 = vunpack.c.l.b16 %v612
    %v1422 = vunpack.c.h.b16 %v612
    %v1423 = vunpack.c.l.b16 %v613
    %v1424 = vunpack.c.h.b16 %v613
    %v1425 = vunpack.c.l.b16 %v614
    %v1426 = vunpack.c.h.b16 %v614
    %v1427 = vunpack.c.l.b16 %v615
    %v1428 = vunpack.c.h.b16 %v615
    %v1429 = vunpack.c.l.b16 %v616
    %v1430 = vunpack.c.h.b16 %v616
    %v1431 = vunpack.c.l.b16 %v617
    %v1432 = vunpack.c.h.b16 %v617
    %v1433 = vunpack.c.l.b16 %v618
    %v1434 = vunpack.c.h.b16 %v618
    %v1435 = vunpack.c.l.b16 %v619
    %v1436 = vunpack.c.h.b16 %v619
    %v1437 = vunpack.c.l.b16 %v620
    %v1438 = vunpack.c.h.b16 %v620
    %v1439 = vunpack.c.l.b16 %v621
    %v1440 = vunpack.c.h.b16 %v621
    %v1441 = vunpack.c.l.b16 %v622
    %v1442 = vunpack.c.h.b16 %v622
    %v1443 = vunpack.c.l.b16 %v623
    %v1444 = vunpack.c.h.b16 %v623
    %v1445 = vunpack.c.l.b16 %v624
    %v1446 = vunpack.c.h.b16 %v624
    %v1447 = vunpack.c.l.b16 %v625
    %v1448 = vunpack.c.h.b16 %v625
    %v1449 = vunpack.c.l.b16 %v626
    %v1450 = vunpack.c.h.b16 %v626
    %v1451 = vunpack.c.l.b16 %v627
    %v1452 = vunpack.c.h.b16 %v627
    %v1453 = vunpack.c.l.b16 %v628
    %v1454 = vunpack.c.h.b16 %v628
    %v1455 = vunpack.c.l.b16 %v629
    %v1456 = vunpack.c.h.b16 %v629
    %v1457 = vunpack.c.l.b16 %v630
    %v1458 = vunpack.c.h.b16 %v630
    %v1459 = vunpack.c.l.b16 %v631
    %v1460 = vunpack.c.h.b16 %v631
    %v1461 = vunpack.c.l.b16 %v632
    %v1462 = vunpack.c.h.b16 %v632
    %v1463 = vunpack.c.l.b16 %v633
    %v1464 = vunpack.c.h.b16 %v633
    %v1465 = vunpack.c.l.b16 %v634
    %v1466 = vunpack.c.h.b16 %v634
    %v1467 = vunpack.c.l.b16 %v635
    %v1468 = vunpack.c.h.b16 %v635
    %v1469 = vunpack.c.l.b16 %v636
    %v1470 = vunpack.c.h.b16 %v636
    %v1471 = vunpack.c.l.b16 %v637
    %v1472 = vunpack.c.h.b16 %v637
    %v1473 = vunpack.c.l.b16 %v638
    %v1474 = vunpack.c.h.b16 %v638
    %v1475 = vunpack.c.l.b16 %v639
    %v1476 = vunpack.c.h.b16 %v639
    %v1477 = vunpack.c.l.b16 %v640
    %v1478 = vunpack.c.h.b16 %v640
    %v1479 = vunpack.c.l.b16 %v641
    %v1480 = vunpack.c.h.b16 %v641
    %v1481 = vunpack.c.l.b16 %v642
    %v1482 = vunpack.c.h.b16 %v642
    %v1483 = vunpack.c.l.b16 %v643
    %v1484 = vunpack.c.h.b16 %v643
    %v1485 = vunpack.c.l.b16 %v644
    %v1486 = vunpack.c.h.b16 %v644
    %v1487 = vunpack.c.l.b16 %v645
    %v1488 = vunpack.c.h.b16 %v645
    %v1489 = vunpack.c.l.b16 %v646
    %v1490 = vunpack.c.h.b16 %v646
    %v1491 = vunpack.c.l.b16 %v647
    %v1492 = vunpack.c.h.b16 %v647
    %v1493 = vunpack.c.l.b16 %v648
    %v1494 = vunpack.c.h.b16 %v648
    %v1495 = vunpack.c.l.b16 %v649
    %v1496 = vunpack.c.h.b16 %v649
    %v1497 = vunpack.c.l.b16 %v650
    %v1498 = vunpack.c.h.b16 %v650
    %v1499 = vunpack.c.l.b16 %v651
    %v1500 = vunpack.c.h.b16 %v651
    %v1501 = vunpack.c.l.b16 %v652
    %v1502 = vunpack.c.h.b16 %v652
    %v1503 = vunpack.c.l.b16 %v653
    %v1504 = vunpack.c.h.b16 %v653
    %v1505 = vunpack.c.l.b16 %v654
    %v1506 = vunpack.c.h.b16 %v654
    %v1507 = vunpack.c.l.b16 %v655
    %v1508 = vunpack.c.h.b16 %v655
    %v1509 = vunpack.c.l.b16 %v656
    %v1510 = vunpack.c.h.b16 %v656
    %v1511 = vunpack.c.l.b16 %v657
    %v1512 = vunpack.c.h.b16 %v657
    %v1513 = vunpack.c.l.b16 %v658
    %v1514 = vunpack.c.h.b16 %v658
    %v1515 = vunpack.c.l.b16 %v659
    %v1516 = vunpack.c.h.b16 %v659
    %v1517 = vunpack.c.l.b16 %v660
    %v1518 = vunpack.c.h.b16 %v660
    %v1519 = vunpack.c.l.b16 %v661
    %v1520 = vunpack.c.h.b16 %v661
    %v1521 = vunpack.c.l.b16 %v662
    %v1522 = vunpack.c.h.b16 %v662
    %v1523 = vunpack.c.l.b16 %v663
    %v1524 = vunpack.c.h.b16 %v663
    %v1525 = vunpack.c.l.b16 %v664
    %v1526 = vunpack.c.h.b16 %v664
    %v1527 = vunpack.c.l.b16 %v665
    %v1528 = vunpack.c.h.b16 %v665
    %v1529 = vunpack.c.l.b16 %v666
    %v1530 = vunpack.c.h.b16 %v666
    %v1531 = vunpack.c.l.b16 %v667
    %v1532 = vunpack.c.h.b16 %v667
    %v1533 = vunpack.c.l.b16 %v668
    %v1534 = vunpack.c.h.b16 %v668
    %v1535 = vunpack.c.l.b16 %v669
    %v1536 = vunpack.c.h.b16 %v669
    %v1537 = vunpack.c.l.b16 %v670
    %v1538 = vunpack.c.h.b16 %v670
    %v1539 = vunpack.c.l.b16 %v671
    %v1540 = vunpack.c.h.b16 %v671
    %v1541 = vunpack.c.l.b16 %v672
    %v1542 = vunpack.c.h.b16 %v672
    %v1543 = vunpack.c.l.b16 %v673
    %v1544 = vunpack.c.h.b16 %v673
    %v1545 = vunpack.c.l.b16 %v674
    %v1546 = vunpack.c.h.b16 %v674
    %v1547 = vunpack.c.l.b16 %v675
    %v1548 = vunpack.c.h.b16 %v675
    %v1549 = vunpack.c.l.b16 %v676
    %v1550 = vunpack.c.h.b16 %v676
    %v1551 = vunpack.c.l.b16 %v677
    %v1552 = vunpack.c.h.b16 %v677
    %v1553 = vunpack.c.l.b16 %v678
    %v1554 = vunpack.c.h.b16 %v678
    %v1555 = vunpack.c.l.b16 %v679
    %v1556 = vunpack.c.h.b16 %v679
    %v1557 = vunpack.c.l.b16 %v680
    %v1558 = vunpack.c.h.b16 %v680
    %v1559 = vunpack.c.l.b16 %v681
    %v1560 = vunpack.c.h.b16 %v681
    %v1561 = vunpack.c.l.b16 %v682
    %v1562 = vunpack.c.h.b16 %v682
    %v1563 = vunpack.c.l.b16 %v683
    %v1564 = vunpack.c.h.b16 %v683
    %v1565 = vunpack.c.l.b16 %v684
    %v1566 = vunpack.c.h.b16 %v684
    %v1567 = vunpack.c.l.b16 %v685
    %v1568 = vunpack.c.h.b16 %v685
    %v1569 = vunpack.c.l.b16 %v686
    %v1570 = vunpack.c.h.b16 %v686
    %v1571 = vunpack.c.l.b16 %v687
    %v1572 = vunpack.c.h.b16 %v687
    %v1573 = vunpack.c.l.b16 %v688
    %v1574 = vunpack.c.h.b16 %v688
    %v1575 = vunpack.c.l.b16 %v689
    %v1576 = vunpack.c.h.b16 %v689
    %v1577 = vunpack.c.l.b16 %v690
    %v1578 = vunpack.c.h.b16 %v690
    %v1579 = vunpack.c.l.b16 %v691
    %v1580 = vunpack.c.h.b16 %v691
    %v1581 = vunpack.c.l.b16 %v692
    %v1582 = vunpack.c.h.b16 %v692
    %v1583 = vunpack.c.l.b16 %v693
    %v1584 = vunpack.c.h.b16 %v693
    %v1585 = vunpack.c.l.b16 %v694
    %v1586 = vunpack.c.h.b16 %v694
    %v1587 = vunpack.c.l.b16 %v695
    %v1588 = vunpack.c.h.b16 %v695
    %v1589 = vunpack.c.l.b16 %v696
    %v1590 = vunpack.c.h.b16 %v696
    %v1591 = vunpack.c.l.b16 %v697
    %v1592 = vunpack.c.h.b16 %v697
    %v1593 = vunpack.c.l.b16 %v698
    %v1594 = vunpack.c.h.b16 %v698
    %v1595 = vunpack.c.l.b16 %v699
    %v1596 = vunpack.c.h.b16 %v699
    %v1597 = vunpack.c.l.b16 %v700
    %v1598 = vunpack.c.h.b16 %v700
    %v1599 = vunpack.c.l.b16 %v701
    %v1600 = vunpack.c.h.b16 %v701
    %v1601 = vunpack.c.l.b16 %v702
    %v1602 = vunpack.c.h.b16 %v702
    %v1603 = vunpack.c.l.b16 %v703
    %v1604 = vunpack.c.h.b16 %v703
    %v1605 = vunpack.c.l.b16 %v704
    %v1606 = vunpack.c.h.b16 %v704
    %v1607 = vunpack.c.l.b16 %v705
    %v1608 = vunpack.c.h.b16 %v705
    %v1609 = vunpack.c.l.b16 %v706
    %v1610 = vunpack.c.h.b16 %v706
    %v1611 = vunpack.c.l.b16 %v707
    %v1612 = vunpack.c.h.b16 %v707
    %v1613 = vunpack.c.l.b16 %v708
    %v1614 = vunpack.c.h.b16 %v708
    %v1615 = vunpack.c.l.b16 %v709
    %v1616 = vunpack.c.h.b16 %v709
    %v1617 = vunpack.c.l.b16 %v710
    %v1618 = vunpack.c.h.b16 %v710
    %v1619 = vunpack.c.l.b16 %v711
    %v1620 = vunpack.c.h.b16 %v711
    %v1621 = vunpack.c.l.b16 %v712
    %v1622 = vunpack.c.h.b16 %v712
    %v1623 = vpack.c.b16 %v1051, %v1047
    %v1624 = vpack.c.b16 %v1052, %v1048
    %v1625 = vpack.c.b16 %v1053, %v1049
    %v1626 = vpack.c.b16 %v1054, %v1050
    %v1627 = vpack.c.b16 %v1059, %v1055
    %v1628 = vpack.c.b16 %v1060, %v1056
    %v1629 = vpack.c.b16 %v1061, %v1057
    %v1630 = vpack.c.b16 %v1062, %v1058
    %v1631 = vpack.c.b16 %v1067, %v1063
    %v1632 = vpack.c.b16 %v1068, %v1064
    %v1633 = vpack.c.b16 %v1069, %v1065
    %v1634 = vpack.c.b16 %v1070, %v1066
    %v1635 = vpack.c.b16 %v1075, %v1071
    %v1636 = vpack.c.b16 %v1076, %v1072
    %v1637 = vpack.c.b16 %v1077, %v1073
    %v1638 = vpack.c.b16 %v1078, %v1074
    %v1639 = vpack.c.b16 %v1083, %v1079
    %v1640 = vpack.c.b16 %v1084, %v1080
    %v1641 = vpack.c.b16 %v1085, %v1081
    %v1642 = vpack.c.b16 %v1086, %v1082
    %v1643 = vpack.c.b16 %v1091, %v1087
    %v1644 = vpack.c.b16 %v1092, %v1088
    %v1645 = vpack.c.b16 %v1093, %v1089
    %v1646 = vpack.c.b16 %v1094, %v1090
    %v1647 = vpack.c.b16 %v1099, %v1095
    %v1648 = vpack.c.b16 %v1100, %v1096
    %v1649 = vpack.c.b16 %v1101, %v1097
    %v1650 = vpack.c.b16 %v1102, %v1098
    %v1651 = vpack.c.b16 %v1107, %v1103
    %v1652 = vpack.c.b16 %v1108, %v1104
    %v1653 = vpack.c.b16 %v1109, %v1105
    %v1654 = vpack.c.b16 %v1110, %v1106
    %v1655 = vpack.c.b16 %v1115, %v1111
    %v1656 = vpack.c.b16 %v1116, %v1112
    %v1657 = vpack.c.b16 %v1117, %v1113
    %v1658 = vpack.c.b16 %v1118, %v1114
    %v1659 = vpack.c.b16 %v1123, %v1119
    %v1660 = vpack.c.b16 %v1124, %v1120
    %v1661 = vpack.c.b16 %v1125, %v1121
    %v1662 = vpack.c.b16 %v1126, %v1122
    %v1663 = vpack.c.b16 %v1131, %v1127
    %v1664 = vpack.c.b16 %v1132, %v1128
    %v1665 = vpack.c.b16 %v1133, %v1129
    %v1666 = vpack.c.b16 %v1134, %v1130
    %v1667 = vpack.c.b16 %v1139, %v1135
    %v1668 = vpack.c.b16 %v1140, %v1136
    %v1669 = vpack.c.b16 %v1141, %v1137
    %v1670 = vpack.c.b16 %v1142, %v1138
    %v1671 = vpack.c.b16 %v1147, %v1143
    %v1672 = vpack.c.b16 %v1148, %v1144
    %v1673 = vpack.c.b16 %v1149, %v1145
    %v1674 = vpack.c.b16 %v1150, %v1146
    %v1675 = vpack.c.b16 %v1155, %v1151
    %v1676 = vpack.c.b16 %v1156, %v1152
    %v1677 = vpack.c.b16 %v1157, %v1153
    %v1678 = vpack.c.b16 %v1158, %v1154
    %v1679 = vpack.c.b16 %v1163, %v1159
    %v1680 = vpack.c.b16 %v1164, %v1160
    %v1681 = vpack.c.b16 %v1165, %v1161
    %v1682 = vpack.c.b16 %v1166, %v1162
    %v1683 = vpack.c.b16 %v1171, %v1167
    %v1684 = vpack.c.b16 %v1172, %v1168
    %v1685 = vpack.c.b16 %v1173, %v1169
    %v1686 = vpack.c.b16 %v1174, %v1170
    %v1687 = vpack.c.b16 %v1179, %v1175
    %v1688 = vpack.c.b16 %v1180, %v1176
    %v1689 = vpack.c.b16 %v1181, %v1177
    %v1690 = vpack.c.b16 %v1182, %v1178
    %v1691 = vpack.c.b16 %v1187, %v1183
    %v1692 = vpack.c.b16 %v1188, %v1184
    %v1693 = vpack.c.b16 %v1189, %v1185
    %v1694 = vpack.c.b16 %v1190, %v1186
    %v1695 = vpack.c.b16 %v1195, %v1191
    %v1696 = vpack.c.b16 %v1196, %v1192
    %v1697 = vpack.c.b16 %v1197, %v1193
    %v1698 = vpack.c.b16 %v1198, %v1194
    %v1699 = vpack.c.b16 %v1203, %v1199
    %v1700 = vpack.c.b16 %v1204, %v1200
    %v1701 = vpack.c.b16 %v1205, %v1201
    %v1702 = vpack.c.b16 %v1206, %v1202
    %v1703 = vpack.c.b16 %v1211, %v1207
    %v1704 = vpack.c.b16 %v1212, %v1208
    %v1705 = vpack.c.b16 %v1213, %v1209
    %v1706 = vpack.c.b16 %v1214, %v1210
    %v1707 = vpack.c.b16 %v1219, %v1215
    %v1708 = vpack.c.b16 %v1220, %v1216
    %v1709 = vpack.c.b16 %v1221, %v1217
    %v1710 = vpack.c.b16 %v1222, %v1218
    %v1711 = vpack.c.b16 %v1227, %v1223
    %v1712 = vpack.c.b16 %v1228, %v1224
    %v1713 = vpack.c.b16 %v1229, %v1225
    %v1714 = vpack.c.b16 %v1230, %v1226
    %v1715 = vpack.c.b16 %v1235, %v1231
    %v1716 = vpack.c.b16 %v1236, %v1232
    %v1717 = vpack.c.b16 %v1237, %v1233
    %v1718 = vpack.c.b16 %v1238, %v1234
    %v1719 = vpack.c.b16 %v1243, %v1239
    %v1720 = vpack.c.b16 %v1244, %v1240
    %v1721 = vpack.c.b16 %v1245, %v1241
    %v1722 = vpack.c.b16 %v1246, %v1242
    %v1723 = vpack.c.b16 %v1251, %v1247
    %v1724 = vpack.c.b16 %v1252, %v1248
    %v1725 = vpack.c.b16 %v1253, %v1249
    %v1726 = vpack.c.b16 %v1254, %v1250
    %v1727 = vpack.c.b16 %v1259, %v1255
    %v1728 = vpack.c.b16 %v1260, %v1256
    %v1729 = vpack.c.b16 %v1261, %v1257
    %v1730 = vpack.c.b16 %v1262, %v1258
    %v1731 = vpack.c.b16 %v1267, %v1263
    %v1732 = vpack.c.b16 %v1268, %v1264
    %v1733 = vpack.c.b16 %v1269, %v1265
    %v1734 = vpack.c.b16 %v1270, %v1266
    %v1735 = vpack.c.b16 %v1275, %v1271
    %v1736 = vpack.c.b16 %v1276, %v1272
    %v1737 = vpack.c.b16 %v1277, %v1273
    %v1738 = vpack.c.b16 %v1278, %v1274
    %v1739 = vpack.c.b16 %v1283, %v1279
    %v1740 = vpack.c.b16 %v1284, %v1280
    %v1741 = vpack.c.b16 %v1285, %v1281
    %v1742 = vpack.c.b16 %v1286, %v1282
    %v1743 = vpack.c.b16 %v1291, %v1287
    %v1744 = vpack.c.b16 %v1292, %v1288
    %v1745 = vpack.c.b16 %v1293, %v1289
    %v1746 = vpack.c.b16 %v1294, %v1290
    %v1747 = vpack.c.b16 %v1299, %v1295
    %v1748 = vpack.c.b16 %v1300, %v1296
    %v1749 = vpack.c.b16 %v1301, %v1297
    %v1750 = vpack.c.b16 %v1302, %v1298
    %v1751 = vpack.c.b16 %v1307, %v1303
    %v1752 = vpack.c.b16 %v1308, %v1304
    %v1753 = vpack.c.b16 %v1309, %v1305
    %v1754 = vpack.c.b16 %v1310, %v1306
    %v1755 = vpack.c.b16 %v1315, %v1311
    %v1756 = vpack.c.b16 %v1316, %v1312
    %v1757 = vpack.c.b16 %v1317, %v1313
    %v1758 = vpack.c.b16 %v1318, %v1314
    %v1759 = vpack.c.b16 %v1323, %v1319
    %v1760 = vpack.c.b16 %v1324, %v1320
    %v1761 = vpack.c.b16 %v1325, %v1321
    %v1762 = vpack.c.b16 %v1326, %v1322
    %v1763 = vpack.c.b16 %v1331, %v1327
    %v1764 = vpack.c.b16 %v1332, %v1328
    %v1765 = vpack.c.b16 %v1333, %v1329
    %v1766 = vpack.c.b16 %v1334, %v1330
    %v1767 = vpack.c.b16 %v1339, %v1335
    %v1768 = vpack.c.b16 %v1340, %v1336
    %v1769 = vpack.c.b16 %v1341, %v1337
    %v1770 = vpack.c.b16 %v1342, %v1338
    %v1771 = vpack.c.b16 %v1347, %v1343
    %v1772 = vpack.c.b16 %v1348, %v1344
    %v1773 = vpack.c.b16 %v1349, %v1345
    %v1774 = vpack.c.b16 %v1350, %v1346
    %v1775 = vpack.c.b16 %v1355, %v1351
    %v1776 = vpack.c.b16 %v1356, %v1352
    %v1777 = vpack.c.b16 %v1357, %v1353
    %v1778 = vpack.c.b16 %v1358, %v1354
    %v1779 = vpack.c.b16 %v1363, %v1359
    %v1780 = vpack.c.b16 %v1364, %v1360
    %v1781 = vpack.c.b16 %v1365, %v1361
    %v1782 = vpack.c.b16 %v1366, %v1362
    %v1783 = vpack.c.b16 %v1371, %v1367
    %v1784 = vpack.c.b16 %v1372, %v1368
    %v1785 = vpack.c.b16 %v1373, %v1369
    %v1786 = vpack.c.b16 %v1374, %v1370
    %v1787 = vpack.c.b16 %v1379, %v1375
    %v1788 = vpack.c.b16 %v1380, %v1376
    %v1789 = vpack.c.b16 %v1381, %v1377
    %v1790 = vpack.c.b16 %v1382, %v1378
    %v1791 = vpack.c.b16 %v1387, %v1383
    %v1792 = vpack.c.b16 %v1388, %v1384
    %v1793 = vpack.c.b16 %v1389, %v1385
    %v1794 = vpack.c.b16 %v1390, %v1386
    %v1795 = vpack.c.b16 %v1395, %v1391
    %v1796 = vpack.c.b16 %v1396, %v1392
    %v1797 = vpack.c.b16 %v1397, %v1393
    %v1798 = vpack.c.b16 %v1398, %v1394
    %v1799 = vpack.c.b16 %v1403, %v1399
    %v1800 = vpack.c.b16 %v1404, %v1400
    %v1801 = vpack.c.b16 %v1405, %v1401
    %v1802 = vpack.c.b16 %v1406, %v1402
    %v1803 = vpack.c.b16 %v1411, %v1407
    %v1804 = vpack.c.b16 %v1412, %v1408
    %v1805 = vpack.c.b16 %v1413, %v1409
    %v1806 = vpack.c.b16 %v1414, %v1410
    %v1807 = vpack.c.b16 %v1419, %v1415
    %v1808 = vpack.c.b16 %v1420, %v1416
    %v1809 = vpack.c.b16 %v1421, %v1417
    %v1810 = vpack.c.b16 %v1422, %v1418
    %v1811 = vpack.c.b16 %v1427, %v1423
    %v1812 = vpack.c.b16 %v1428, %v1424
    %v1813 = vpack.c.b16 %v1429, %v1425
    %v1814 = vpack.c.b16 %v1430, %v1426
    %v1815 = vpack.c.b16 %v1435, %v1431
    %v1816 = vpack.c.b16 %v1436, %v1432
    %v1817 = vpack.c.b16 %v1437, %v1433
    %v1818 = vpack.c.b16 %v1438, %v1434
    %v1819 = vpack.c.b16 %v1443, %v1439
    %v1820 = vpack.c.b16 %v1444, %v1440
    %v1821 = vpack.c.b16 %v1445, %v1441
    %v1822 = vpack.c.b16 %v1446, %v1442
    %v1823 = vpack.c.b16 %v1451, %v1447
    %v1824 = vpack.c.b16 %v1452, %v1448
    %v1825 = vpack.c.b16 %v1453, %v1449
    %v1826 = vpack.c.b16 %v1454, %v1450
    %v1827 = vpack.c.b16 %v1459, %v1455
    %v1828 = vpack.c.b16 %v1460, %v1456
    %v1829 = vpack.c.b16 %v1461, %v1457
    %v1830 = vpack.c.b16 %v1462, %v1458
    %v1831 = vpack.c.b16 %v1467, %v1463
    %v1832 = vpack.c.b16 %v1468, %v1464
    %v1833 = vpack.c.b16 %v1469, %v1465
    %v1834 = vpack.c.b16 %v1470, %v1466
    %v1835 = vpack.c.b16 %v1475, %v1471
    %v1836 = vpack.c.b16 %v1476, %v1472
    %v1837 = vpack.c.b16 %v1477, %v1473
    %v1838 = vpack.c.b16 %v1478, %v1474
    %v1839 = vpack.c.b16 %v1483, %v1479
    %v1840 = vpack.c.b16 %v1484, %v1480
    %v1841 = vpack.c.b16 %v1485, %v1481
    %v1842 = vpack.c.b16 %v1486, %v1482
    %v1843 = vpack.c.b16 %v1491, %v1487
    %v1844 = vpack.c.b16 %v1492, %v1488
    %v1845 = vpack.c.b16 %v1493, %v1489
    %v1846 = vpack.c.b16 %v1494, %v1490
    %v1847 = vpack.c.b16 %v1499, %v1495
    %v1848 = vpack.c.b16 %v1500, %v1496
    %v1849 = vpack.c.b16 %v1501, %v1497
    %v1850 = vpack.c.b16 %v1502, %v1498
    %v1851 = vpack.c.b16 %v1507, %v1503
    %v1852 = vpack.c.b16 %v1508, %v1504
    %v1853 = vpack.c.b16 %v1509, %v1505
    %v1854 = vpack.c.b16 %v1510, %v1506
    %v1855 = vpack.c.b16 %v1515, %v1511
    %v1856 = vpack.c.b16 %v1516, %v1512
    %v1857 = vpack.c.b16 %v1517, %v1513
    %v1858 = vpack.c.b16 %v1518, %v1514
    %v1859 = vpack.c.b16 %v1523, %v1519
    %v1860 = vpack.c.b16 %v1524, %v1520
    %v1861 = vpack.c.b16 %v1525, %v1521
    %v1862 = vpack.c.b16 %v1526, %v1522
    %v1863 = vpack.c.b16 %v1531, %v1527
    %v1864 = vpack.c.b16 %v1532, %v1528
    %v1865 = vpack.c.b16 %v1533, %v1529
    %v1866 = vpack.c.b16 %v1534, %v1530
    %v1867 = vpack.c.b16 %v1539, %v1535
    %v1868 = vpack.c.b16 %v1540, %v1536
    %v1869 = vpack.c.b16 %v1541, %v1537
    %v1870 = vpack.c.b16 %v1542, %v1538
    %v1871 = vpack.c.b16 %v1547, %v1543
    %v1872 = vpack.c.b16 %v1548, %v1544
    %v1873 = vpack.c.b16 %v1549, %v1545
    %v1874 = vpack.c.b16 %v1550, %v1546
    %v1875 = vpack.c.b16 %v1555, %v1551
    %v1876 = vpack.c.b16 %v1556, %v1552
    %v1877 = vpack.c.b16 %v1557, %v1553
    %v1878 = vpack.c.b16 %v1558, %v1554
    %v1879 = vpack.c.b16 %v1563, %v1559
    %v1880 = vpack.c.b16 %v1564, %v1560
    %v1881 = vpack.c.b16 %v1565, %v1561
    %v1882 = vpack.c.b16 %v1566, %v1562
    %v1883 = vpack.c.b16 %v1571, %v1567
    %v1884 = vpack.c.b16 %v1572, %v1568
    %v1885 = vpack.c.b16 %v1573, %v1569
    %v1886 = vpack.c.b16 %v1574, %v1570
    %v1887 = vpack.c.b16 %v1579, %v1575
    %v1888 = vpack.c.b16 %v1580, %v1576
    %v1889 = vpack.c.b16 %v1581, %v1577
    %v1890 = vpack.c.b16 %v1582, %v1578
    %v1891 = vpack.c.b16 %v1587, %v1583
    %v1892 = vpack.c.b16 %v1588, %v1584
    %v1893 = vpack.c.b16 %v1589, %v1585
    %v1894 = vpack.c.b16 %v1590, %v1586
    %v1895 = vpack.c.b16 %v1595, %v1591
    %v1896 = vpack.c.b16 %v1596, %v1592
    %v1897 = vpack.c.b16 %v1597, %v1593
    %v1898 = vpack.c.b16 %v1598, %v1594
    %v1899 = vpack.c.b16 %v1603, %v1599
    %v1900 = vpack.c.b16 %v1604, %v1600
    %v1901 = vpack.c.b16 %v1605, %v1601
    %v1902 = vpack.c.b16 %v1606, %v1602
    %v1903 = vpack.c.b16 %v1611, %v1607
    %v1904 = vpack.c.b16 %v1612, %v1608
    %v1905 = vpack.c.b16 %v1613, %v1609
    %v1906 = vpack.c.b16 %v1614, %v1610
    %v1907 = vpack.c.b16 %v1619, %v1615
    %v1908 = vpack.c.b16 %v1620, %v1616
    %v1909 = vpack.c.b16 %v1621, %v1617
    %v1910 = vpack.c.b16 %v1622, %v1618
    %2199 = vmatpush.bf16.msra.mxu0 %v1651
    %2200 = vmatpush.bf16.msra.mxu0 %v1647
    %2201 = vmatpush.bf16.msra.mxu0 %v1643
    %2202 = vmatpush.bf16.msra.mxu0 %v1639
    %2203 = vmatpush.bf16.msra.mxu0 %v1635
    %2204 = vmatpush.bf16.msra.mxu0 %v1631
    %2205 = vmatpush.bf16.msra.mxu0 %v1627
    %2206 = vmatpush.bf16.msra.mxu0 %v1623
    %2207 = vmatmul.bf16.gmra.mxu0 %v741
    %v2208 = vpop.f32.mrf.mxu0
    %v2209 = vadd.f32 0.0, %v2208
    %v2210 = vpop.f32.mrf.mxu0
    %v2211 = vadd.f32 0.0, %v2210
    %2212 = vdwg.mxu0
    %2213 = vmatpush.bf16.msra.mxu0 %v1683
    %2214 = vmatpush.bf16.msra.mxu0 %v1679
    %2215 = vmatpush.bf16.msra.mxu0 %v1675
    %2216 = vmatpush.bf16.msra.mxu0 %v1671
    %2217 = vmatpush.bf16.msra.mxu0 %v1667
    %2218 = vmatpush.bf16.msra.mxu0 %v1663
    %2219 = vmatpush.bf16.msra.mxu0 %v1659
    %2220 = vmatpush.bf16.msra.mxu0 %v1655
    %2221 = vmatmul.bf16.gmra.mxu0 %v742
    %v2222 = vpop.f32.mrf.mxu0
    %v2223 = vadd.f32 %v2209, %v2222
    %v2224 = vpop.f32.mrf.mxu0
    %v2225 = vadd.f32 %v2211, %v2224
    %2226 = vdwg.mxu0
    %2227 = vmatpush.bf16.msra.mxu0 %v1715
    %2228 = vmatpush.bf16.msra.mxu0 %v1711
    %2229 = vmatpush.bf16.msra.mxu0 %v1707
    %2230 = vmatpush.bf16.msra.mxu0 %v1703
    %2231 = vmatpush.bf16.msra.mxu0 %v1699
    %2232 = vmatpush.bf16.msra.mxu0 %v1695
    %2233 = vmatpush.bf16.msra.mxu0 %v1691
    %2234 = vmatpush.bf16.msra.mxu0 %v1687
    %2235 = vmatmul.bf16.gmra.mxu0 %v743
    %v2236 = vpop.f32.mrf.mxu0
    %v2237 = vadd.f32 %v2223, %v2236
    %v2238 = vpop.f32.mrf.mxu0
    %v2239 = vadd.f32 %v2225, %v2238
    %2240 = vdwg.mxu0
    %2241 = vmatpush.bf16.msra.mxu0 %v1747
    %2242 = vmatpush.bf16.msra.mxu0 %v1743
    %2243 = vmatpush.bf16.msra.mxu0 %v1739
    %2244 = vmatpush.bf16.msra.mxu0 %v1735
    %2245 = vmatpush.bf16.msra.mxu0 %v1731
    %2246 = vmatpush.bf16.msra.mxu0 %v1727
    %2247 = vmatpush.bf16.msra.mxu0 %v1723
    %2248 = vmatpush.bf16.msra.mxu0 %v1719
    %2249 = vmatmul.bf16.gmra.mxu0 %v744
    %v2250 = vpop.f32.mrf.mxu0
    %v2251 = vadd.f32 %v2237, %v2250
    %v2252 = vpop.f32.mrf.mxu0
    %v2253 = vadd.f32 %v2239, %v2252
    %2254 = vdwg.mxu0
    %2255 = vmatpush.bf16.msra.mxu0 %v1779
    %2256 = vmatpush.bf16.msra.mxu0 %v1775
    %2257 = vmatpush.bf16.msra.mxu0 %v1771
    %2258 = vmatpush.bf16.msra.mxu0 %v1767
    %2259 = vmatpush.bf16.msra.mxu0 %v1763
    %2260 = vmatpush.bf16.msra.mxu0 %v1759
    %2261 = vmatpush.bf16.msra.mxu0 %v1755
    %2262 = vmatpush.bf16.msra.mxu0 %v1751
    %2263 = vmatmul.bf16.gmra.mxu0 %v745
    %v2264 = vpop.f32.mrf.mxu0
    %v2265 = vadd.f32 %v2251, %v2264
    %v2266 = vpop.f32.mrf.mxu0
    %v2267 = vadd.f32 %v2253, %v2266
    %2268 = vdwg.mxu0
    %2269 = vmatpush.bf16.msra.mxu0 %v1811
    %2270 = vmatpush.bf16.msra.mxu0 %v1807
    %2271 = vmatpush.bf16.msra.mxu0 %v1803
    %2272 = vmatpush.bf16.msra.mxu0 %v1799
    %2273 = vmatpush.bf16.msra.mxu0 %v1795
    %2274 = vmatpush.bf16.msra.mxu0 %v1791
    %2275 = vmatpush.bf16.msra.mxu0 %v1787
    %2276 = vmatpush.bf16.msra.mxu0 %v1783
    %2277 = vmatmul.bf16.gmra.mxu0 %v746
    %v2278 = vpop.f32.mrf.mxu0
    %v2279 = vadd.f32 %v2265, %v2278
    %v2280 = vpop.f32.mrf.mxu0
    %v2281 = vadd.f32 %v2267, %v2280
    %2282 = vdwg.mxu0
    %2283 = vmatpush.bf16.msra.mxu0 %v1843
    %2284 = vmatpush.bf16.msra.mxu0 %v1839
    %2285 = vmatpush.bf16.msra.mxu0 %v1835
    %2286 = vmatpush.bf16.msra.mxu0 %v1831
    %2287 = vmatpush.bf16.msra.mxu0 %v1827
    %2288 = vmatpush.bf16.msra.mxu0 %v1823
    %2289 = vmatpush.bf16.msra.mxu0 %v1819
    %2290 = vmatpush.bf16.msra.mxu0 %v1815
    %2291 = vmatmul.bf16.gmra.mxu0 %v747
    %v2292 = vpop.f32.mrf.mxu0
    %v2293 = vadd.f32 %v2279, %v2292
    %v2294 = vpop.f32.mrf.mxu0
    %v2295 = vadd.f32 %v2281, %v2294
    %2296 = vdwg.mxu0
    %2297 = vmatpush.bf16.msra.mxu0 %v1875
    %2298 = vmatpush.bf16.msra.mxu0 %v1871
    %2299 = vmatpush.bf16.msra.mxu0 %v1867
    %2300 = vmatpush.bf16.msra.mxu0 %v1863
    %2301 = vmatpush.bf16.msra.mxu0 %v1859
    %2302 = vmatpush.bf16.msra.mxu0 %v1855
    %2303 = vmatpush.bf16.msra.mxu0 %v1851
    %2304 = vmatpush.bf16.msra.mxu0 %v1847
    %2305 = vmatmul.bf16.gmra.mxu0 %v748
    %v2306 = vpop.f32.mrf.mxu0
    %v2307 = vadd.f32 %v2293, %v2306
    %v2308 = vpop.f32.mrf.mxu0
    %v2309 = vadd.f32 %v2295, %v2308
    %2310 = vdwg.mxu0
    %2311 = vmatpush.bf16.msra.mxu0 %v1907
    %2312 = vmatpush.bf16.msra.mxu0 %v1903
    %2313 = vmatpush.bf16.msra.mxu0 %v1899
    %2314 = vmatpush.bf16.msra.mxu0 %v1895
    %2315 = vmatpush.bf16.msra.mxu0 %v1891
    %2316 = vmatpush.bf16.msra.mxu0 %v1887
    %2317 = vmatpush.bf16.msra.mxu0 %v1883
    %2318 = vmatpush.bf16.msra.mxu0 %v1879
    %2319 = vmatmul.bf16.gmra.mxu0 %v749
    %v2320 = vpop.f32.mrf.mxu0
    %v2321 = vadd.f32 %v2307, %v2320
    %v2322 = vpop.f32.mrf.mxu0
    %v2323 = vadd.f32 %v2309, %v2322
    %2324 = vdwg.mxu0
    %2325 = vmatpush.bf16.msra.mxu0 %v1652
    %2326 = vmatpush.bf16.msra.mxu0 %v1648
    %2327 = vmatpush.bf16.msra.mxu0 %v1644
    %2328 = vmatpush.bf16.msra.mxu0 %v1640
    %2329 = vmatpush.bf16.msra.mxu0 %v1636
    %2330 = vmatpush.bf16.msra.mxu0 %v1632
    %2331 = vmatpush.bf16.msra.mxu0 %v1628
    %2332 = vmatpush.bf16.msra.mxu0 %v1624
    %2333 = vmatmul.bf16.gmra.mxu0 %v741
    %v2334 = vpop.f32.mrf.mxu0
    %v2335 = vadd.f32 0.0, %v2334
    %v2336 = vpop.f32.mrf.mxu0
    %v2337 = vadd.f32 0.0, %v2336
    %2338 = vdwg.mxu0
    %2339 = vmatpush.bf16.msra.mxu0 %v1684
    %2340 = vmatpush.bf16.msra.mxu0 %v1680
    %2341 = vmatpush.bf16.msra.mxu0 %v1676
    %2342 = vmatpush.bf16.msra.mxu0 %v1672
    %2343 = vmatpush.bf16.msra.mxu0 %v1668
    %2344 = vmatpush.bf16.msra.mxu0 %v1664
    %2345 = vmatpush.bf16.msra.mxu0 %v1660
    %2346 = vmatpush.bf16.msra.mxu0 %v1656
    %2347 = vmatmul.bf16.gmra.mxu0 %v742
    %v2348 = vpop.f32.mrf.mxu0
    %v2349 = vadd.f32 %v2335, %v2348
    %v2350 = vpop.f32.mrf.mxu0
    %v2351 = vadd.f32 %v2337, %v2350
    %2352 = vdwg.mxu0
    %2353 = vmatpush.bf16.msra.mxu0 %v1716
    %2354 = vmatpush.bf16.msra.mxu0 %v1712
    %2355 = vmatpush.bf16.msra.mxu0 %v1708
    %2356 = vmatpush.bf16.msra.mxu0 %v1704
    %2357 = vmatpush.bf16.msra.mxu0 %v1700
    %2358 = vmatpush.bf16.msra.mxu0 %v1696
    %2359 = vmatpush.bf16.msra.mxu0 %v1692
    %2360 = vmatpush.bf16.msra.mxu0 %v1688
    %2361 = vmatmul.bf16.gmra.mxu0 %v743
    %v2362 = vpop.f32.mrf.mxu0
    %v2363 = vadd.f32 %v2349, %v2362
    %v2364 = vpop.f32.mrf.mxu0
    %v2365 = vadd.f32 %v2351, %v2364
    %2366 = vdwg.mxu0
    %2367 = vmatpush.bf16.msra.mxu0 %v1748
    %2368 = vmatpush.bf16.msra.mxu0 %v1744
    %2369 = vmatpush.bf16.msra.mxu0 %v1740
    %2370 = vmatpush.bf16.msra.mxu0 %v1736
    %2371 = vmatpush.bf16.msra.mxu0 %v1732
    %2372 = vmatpush.bf16.msra.mxu0 %v1728
    %2373 = vmatpush.bf16.msra.mxu0 %v1724
    %2374 = vmatpush.bf16.msra.mxu0 %v1720
    %2375 = vmatmul.bf16.gmra.mxu0 %v744
    %v2376 = vpop.f32.mrf.mxu0
    %v2377 = vadd.f32 %v2363, %v2376
    %v2378 = vpop.f32.mrf.mxu0
    %v2379 = vadd.f32 %v2365, %v2378
    %2380 = vdwg.mxu0
    %2381 = vmatpush.bf16.msra.mxu0 %v1780
    %2382 = vmatpush.bf16.msra.mxu0 %v1776
    %2383 = vmatpush.bf16.msra.mxu0 %v1772
    %2384 = vmatpush.bf16.msra.mxu0 %v1768
    %2385 = vmatpush.bf16.msra.mxu0 %v1764
    %2386 = vmatpush.bf16.msra.mxu0 %v1760
    %2387 = vmatpush.bf16.msra.mxu0 %v1756
    %2388 = vmatpush.bf16.msra.mxu0 %v1752
    %2389 = vmatmul.bf16.gmra.mxu0 %v745
    %v2390 = vpop.f32.mrf.mxu0
    %v2391 = vadd.f32 %v2377, %v2390
    %v2392 = vpop.f32.mrf.mxu0
    %v2393 = vadd.f32 %v2379, %v2392
    %2394 = vdwg.mxu0
    %2395 = vmatpush.bf16.msra.mxu0 %v1812
    %2396 = vmatpush.bf16.msra.mxu0 %v1808
    %2397 = vmatpush.bf16.msra.mxu0 %v1804
    %2398 = vmatpush.bf16.msra.mxu0 %v1800
    %2399 = vmatpush.bf16.msra.mxu0 %v1796
    %2400 = vmatpush.bf16.msra.mxu0 %v1792
    %2401 = vmatpush.bf16.msra.mxu0 %v1788
    %2402 = vmatpush.bf16.msra.mxu0 %v1784
    %2403 = vmatmul.bf16.gmra.mxu0 %v746
    %v2404 = vpop.f32.mrf.mxu0
    %v2405 = vadd.f32 %v2391, %v2404
    %v2406 = vpop.f32.mrf.mxu0
    %v2407 = vadd.f32 %v2393, %v2406
    %2408 = vdwg.mxu0
    %2409 = vmatpush.bf16.msra.mxu0 %v1844
    %2410 = vmatpush.bf16.msra.mxu0 %v1840
    %2411 = vmatpush.bf16.msra.mxu0 %v1836
    %2412 = vmatpush.bf16.msra.mxu0 %v1832
    %2413 = vmatpush.bf16.msra.mxu0 %v1828
    %2414 = vmatpush.bf16.msra.mxu0 %v1824
    %2415 = vmatpush.bf16.msra.mxu0 %v1820
    %2416 = vmatpush.bf16.msra.mxu0 %v1816
    %2417 = vmatmul.bf16.gmra.mxu0 %v747
    %v2418 = vpop.f32.mrf.mxu0
    %v2419 = vadd.f32 %v2405, %v2418
    %v2420 = vpop.f32.mrf.mxu0
    %v2421 = vadd.f32 %v2407, %v2420
    %2422 = vdwg.mxu0
    %2423 = vmatpush.bf16.msra.mxu0 %v1876
    %2424 = vmatpush.bf16.msra.mxu0 %v1872
    %2425 = vmatpush.bf16.msra.mxu0 %v1868
    %2426 = vmatpush.bf16.msra.mxu0 %v1864
    %2427 = vmatpush.bf16.msra.mxu0 %v1860
    %2428 = vmatpush.bf16.msra.mxu0 %v1856
    %2429 = vmatpush.bf16.msra.mxu0 %v1852
    %2430 = vmatpush.bf16.msra.mxu0 %v1848
    %2431 = vmatmul.bf16.gmra.mxu0 %v748
    %v2432 = vpop.f32.mrf.mxu0
    %v2433 = vadd.f32 %v2419, %v2432
    %v2434 = vpop.f32.mrf.mxu0
    %v2435 = vadd.f32 %v2421, %v2434
    %2436 = vdwg.mxu0
    %2437 = vmatpush.bf16.msra.mxu0 %v1908
    %2438 = vmatpush.bf16.msra.mxu0 %v1904
    %2439 = vmatpush.bf16.msra.mxu0 %v1900
    %2440 = vmatpush.bf16.msra.mxu0 %v1896
    %2441 = vmatpush.bf16.msra.mxu0 %v1892
    %2442 = vmatpush.bf16.msra.mxu0 %v1888
    %2443 = vmatpush.bf16.msra.mxu0 %v1884
    %2444 = vmatpush.bf16.msra.mxu0 %v1880
    %2445 = vmatmul.bf16.gmra.mxu0 %v749
    %v2446 = vpop.f32.mrf.mxu0
    %v2447 = vadd.f32 %v2433, %v2446
    %v2448 = vpop.f32.mrf.mxu0
    %v2449 = vadd.f32 %v2435, %v2448
    %2450 = vdwg.mxu0
    %2451 = vmatpush.bf16.msra.mxu0 %v1653
    %2452 = vmatpush.bf16.msra.mxu0 %v1649
    %2453 = vmatpush.bf16.msra.mxu0 %v1645
    %2454 = vmatpush.bf16.msra.mxu0 %v1641
    %2455 = vmatpush.bf16.msra.mxu0 %v1637
    %2456 = vmatpush.bf16.msra.mxu0 %v1633
    %2457 = vmatpush.bf16.msra.mxu0 %v1629
    %2458 = vmatpush.bf16.msra.mxu0 %v1625
    %2459 = vmatmul.bf16.gmra.mxu0 %v741
    %v2460 = vpop.f32.mrf.mxu0
    %v2461 = vadd.f32 0.0, %v2460
    %v2462 = vpop.f32.mrf.mxu0
    %v2463 = vadd.f32 0.0, %v2462
    %2464 = vdwg.mxu0
    %2465 = vmatpush.bf16.msra.mxu0 %v1685
    %2466 = vmatpush.bf16.msra.mxu0 %v1681
    %2467 = vmatpush.bf16.msra.mxu0 %v1677
    %2468 = vmatpush.bf16.msra.mxu0 %v1673
    %2469 = vmatpush.bf16.msra.mxu0 %v1669
    %2470 = vmatpush.bf16.msra.mxu0 %v1665
    %2471 = vmatpush.bf16.msra.mxu0 %v1661
    %2472 = vmatpush.bf16.msra.mxu0 %v1657
    %2473 = vmatmul.bf16.gmra.mxu0 %v742
    %v2474 = vpop.f32.mrf.mxu0
    %v2475 = vadd.f32 %v2461, %v2474
    %v2476 = vpop.f32.mrf.mxu0
    %v2477 = vadd.f32 %v2463, %v2476
    %2478 = vdwg.mxu0
    %2479 = vmatpush.bf16.msra.mxu0 %v1717
    %2480 = vmatpush.bf16.msra.mxu0 %v1713
    %2481 = vmatpush.bf16.msra.mxu0 %v1709
    %2482 = vmatpush.bf16.msra.mxu0 %v1705
    %2483 = vmatpush.bf16.msra.mxu0 %v1701
    %2484 = vmatpush.bf16.msra.mxu0 %v1697
    %2485 = vmatpush.bf16.msra.mxu0 %v1693
    %2486 = vmatpush.bf16.msra.mxu0 %v1689
    %2487 = vmatmul.bf16.gmra.mxu0 %v743
    %v2488 = vpop.f32.mrf.mxu0
    %v2489 = vadd.f32 %v2475, %v2488
    %v2490 = vpop.f32.mrf.mxu0
    %v2491 = vadd.f32 %v2477, %v2490
    %2492 = vdwg.mxu0
    %2493 = vmatpush.bf16.msra.mxu0 %v1749
    %2494 = vmatpush.bf16.msra.mxu0 %v1745
    %2495 = vmatpush.bf16.msra.mxu0 %v1741
    %2496 = vmatpush.bf16.msra.mxu0 %v1737
    %2497 = vmatpush.bf16.msra.mxu0 %v1733
    %2498 = vmatpush.bf16.msra.mxu0 %v1729
    %2499 = vmatpush.bf16.msra.mxu0 %v1725
    %2500 = vmatpush.bf16.msra.mxu0 %v1721
    %2501 = vmatmul.bf16.gmra.mxu0 %v744
    %v2502 = vpop.f32.mrf.mxu0
    %v2503 = vadd.f32 %v2489, %v2502
    %v2504 = vpop.f32.mrf.mxu0
    %v2505 = vadd.f32 %v2491, %v2504
    %2506 = vdwg.mxu0
    %2507 = vmatpush.bf16.msra.mxu0 %v1781
    %2508 = vmatpush.bf16.msra.mxu0 %v1777
    %2509 = vmatpush.bf16.msra.mxu0 %v1773
    %2510 = vmatpush.bf16.msra.mxu0 %v1769
    %2511 = vmatpush.bf16.msra.mxu0 %v1765
    %2512 = vmatpush.bf16.msra.mxu0 %v1761
    %2513 = vmatpush.bf16.msra.mxu0 %v1757
    %2514 = vmatpush.bf16.msra.mxu0 %v1753
    %2515 = vmatmul.bf16.gmra.mxu0 %v745
    %v2516 = vpop.f32.mrf.mxu0
    %v2517 = vadd.f32 %v2503, %v2516
    %v2518 = vpop.f32.mrf.mxu0
    %v2519 = vadd.f32 %v2505, %v2518
    %2520 = vdwg.mxu0
    %2521 = vmatpush.bf16.msra.mxu0 %v1813
    %2522 = vmatpush.bf16.msra.mxu0 %v1809
    %2523 = vmatpush.bf16.msra.mxu0 %v1805
    %2524 = vmatpush.bf16.msra.mxu0 %v1801
    %2525 = vmatpush.bf16.msra.mxu0 %v1797
    %2526 = vmatpush.bf16.msra.mxu0 %v1793
    %2527 = vmatpush.bf16.msra.mxu0 %v1789
    %2528 = vmatpush.bf16.msra.mxu0 %v1785
    %2529 = vmatmul.bf16.gmra.mxu0 %v746
    %v2530 = vpop.f32.mrf.mxu0
    %v2531 = vadd.f32 %v2517, %v2530
    %v2532 = vpop.f32.mrf.mxu0
    %v2533 = vadd.f32 %v2519, %v2532
    %2534 = vdwg.mxu0
    %2535 = vmatpush.bf16.msra.mxu0 %v1845
    %2536 = vmatpush.bf16.msra.mxu0 %v1841
    %2537 = vmatpush.bf16.msra.mxu0 %v1837
    %2538 = vmatpush.bf16.msra.mxu0 %v1833
    %2539 = vmatpush.bf16.msra.mxu0 %v1829
    %2540 = vmatpush.bf16.msra.mxu0 %v1825
    %2541 = vmatpush.bf16.msra.mxu0 %v1821
    %2542 = vmatpush.bf16.msra.mxu0 %v1817
    %2543 = vmatmul.bf16.gmra.mxu0 %v747
    %v2544 = vpop.f32.mrf.mxu0
    %v2545 = vadd.f32 %v2531, %v2544
    %v2546 = vpop.f32.mrf.mxu0
    %v2547 = vadd.f32 %v2533, %v2546
    %2548 = vdwg.mxu0
    %2549 = vmatpush.bf16.msra.mxu0 %v1877
    %2550 = vmatpush.bf16.msra.mxu0 %v1873
    %2551 = vmatpush.bf16.msra.mxu0 %v1869
    %2552 = vmatpush.bf16.msra.mxu0 %v1865
    %2553 = vmatpush.bf16.msra.mxu0 %v1861
    %2554 = vmatpush.bf16.msra.mxu0 %v1857
    %2555 = vmatpush.bf16.msra.mxu0 %v1853
    %2556 = vmatpush.bf16.msra.mxu0 %v1849
    %2557 = vmatmul.bf16.gmra.mxu0 %v748
    %v2558 = vpop.f32.mrf.mxu0
    %v2559 = vadd.f32 %v2545, %v2558
    %v2560 = vpop.f32.mrf.mxu0
    %v2561 = vadd.f32 %v2547, %v2560
    %2562 = vdwg.mxu0
    %2563 = vmatpush.bf16.msra.mxu0 %v1909
    %2564 = vmatpush.bf16.msra.mxu0 %v1905
    %2565 = vmatpush.bf16.msra.mxu0 %v1901
    %2566 = vmatpush.bf16.msra.mxu0 %v1897
    %2567 = vmatpush.bf16.msra.mxu0 %v1893
    %2568 = vmatpush.bf16.msra.mxu0 %v1889
    %2569 = vmatpush.bf16.msra.mxu0 %v1885
    %2570 = vmatpush.bf16.msra.mxu0 %v1881
    %2571 = vmatmul.bf16.gmra.mxu0 %v749
    %v2572 = vpop.f32.mrf.mxu0
    %v2573 = vadd.f32 %v2559, %v2572
    %v2574 = vpop.f32.mrf.mxu0
    %v2575 = vadd.f32 %v2561, %v2574
    %2576 = vdwg.mxu0
    %2577 = vmatpush.bf16.msra.mxu0 %v1654
    %2578 = vmatpush.bf16.msra.mxu0 %v1650
    %2579 = vmatpush.bf16.msra.mxu0 %v1646
    %2580 = vmatpush.bf16.msra.mxu0 %v1642
    %2581 = vmatpush.bf16.msra.mxu0 %v1638
    %2582 = vmatpush.bf16.msra.mxu0 %v1634
    %2583 = vmatpush.bf16.msra.mxu0 %v1630
    %2584 = vmatpush.bf16.msra.mxu0 %v1626
    %2585 = vmatmul.bf16.gmra.mxu0 %v741
    %v2586 = vpop.f32.mrf.mxu0
    %v2587 = vadd.f32 0.0, %v2586
    %v2588 = vpop.f32.mrf.mxu0
    %v2589 = vadd.f32 0.0, %v2588
    %2590 = vdwg.mxu0
    %2591 = vmatpush.bf16.msra.mxu0 %v1686
    %2592 = vmatpush.bf16.msra.mxu0 %v1682
    %2593 = vmatpush.bf16.msra.mxu0 %v1678
    %2594 = vmatpush.bf16.msra.mxu0 %v1674
    %2595 = vmatpush.bf16.msra.mxu0 %v1670
    %2596 = vmatpush.bf16.msra.mxu0 %v1666
    %2597 = vmatpush.bf16.msra.mxu0 %v1662
    %2598 = vmatpush.bf16.msra.mxu0 %v1658
    %2599 = vmatmul.bf16.gmra.mxu0 %v742
    %v2600 = vpop.f32.mrf.mxu0
    %v2601 = vadd.f32 %v2587, %v2600
    %v2602 = vpop.f32.mrf.mxu0
    %v2603 = vadd.f32 %v2589, %v2602
    %2604 = vdwg.mxu0
    %2605 = vmatpush.bf16.msra.mxu0 %v1718
    %2606 = vmatpush.bf16.msra.mxu0 %v1714
    %2607 = vmatpush.bf16.msra.mxu0 %v1710
    %2608 = vmatpush.bf16.msra.mxu0 %v1706
    %2609 = vmatpush.bf16.msra.mxu0 %v1702
    %2610 = vmatpush.bf16.msra.mxu0 %v1698
    %2611 = vmatpush.bf16.msra.mxu0 %v1694
    %2612 = vmatpush.bf16.msra.mxu0 %v1690
    %2613 = vmatmul.bf16.gmra.mxu0 %v743
    %v2614 = vpop.f32.mrf.mxu0
    %v2615 = vadd.f32 %v2601, %v2614
    %v2616 = vpop.f32.mrf.mxu0
    %v2617 = vadd.f32 %v2603, %v2616
    %2618 = vdwg.mxu0
    %2619 = vmatpush.bf16.msra.mxu0 %v1750
    %2620 = vmatpush.bf16.msra.mxu0 %v1746
    %2621 = vmatpush.bf16.msra.mxu0 %v1742
    %2622 = vmatpush.bf16.msra.mxu0 %v1738
    %2623 = vmatpush.bf16.msra.mxu0 %v1734
    %2624 = vmatpush.bf16.msra.mxu0 %v1730
    %2625 = vmatpush.bf16.msra.mxu0 %v1726
    %2626 = vmatpush.bf16.msra.mxu0 %v1722
    %2627 = vmatmul.bf16.gmra.mxu0 %v744
    %v2628 = vpop.f32.mrf.mxu0
    %v2629 = vadd.f32 %v2615, %v2628
    %v2630 = vpop.f32.mrf.mxu0
    %v2631 = vadd.f32 %v2617, %v2630
    %2632 = vdwg.mxu0
    %2633 = vmatpush.bf16.msra.mxu0 %v1782
    %2634 = vmatpush.bf16.msra.mxu0 %v1778
    %2635 = vmatpush.bf16.msra.mxu0 %v1774
    %2636 = vmatpush.bf16.msra.mxu0 %v1770
    %2637 = vmatpush.bf16.msra.mxu0 %v1766
    %2638 = vmatpush.bf16.msra.mxu0 %v1762
    %2639 = vmatpush.bf16.msra.mxu0 %v1758
    %2640 = vmatpush.bf16.msra.mxu0 %v1754
    %2641 = vmatmul.bf16.gmra.mxu0 %v745
    %v2642 = vpop.f32.mrf.mxu0
    %v2643 = vadd.f32 %v2629, %v2642
    %v2644 = vpop.f32.mrf.mxu0
    %v2645 = vadd.f32 %v2631, %v2644
    %2646 = vdwg.mxu0
    %2647 = vmatpush.bf16.msra.mxu0 %v1814
    %2648 = vmatpush.bf16.msra.mxu0 %v1810
    %2649 = vmatpush.bf16.msra.mxu0 %v1806
    %2650 = vmatpush.bf16.msra.mxu0 %v1802
    %2651 = vmatpush.bf16.msra.mxu0 %v1798
    %2652 = vmatpush.bf16.msra.mxu0 %v1794
    %2653 = vmatpush.bf16.msra.mxu0 %v1790
    %2654 = vmatpush.bf16.msra.mxu0 %v1786
    %2655 = vmatmul.bf16.gmra.mxu0 %v746
    %v2656 = vpop.f32.mrf.mxu0
    %v2657 = vadd.f32 %v2643, %v2656
    %v2658 = vpop.f32.mrf.mxu0
    %v2659 = vadd.f32 %v2645, %v2658
    %2660 = vdwg.mxu0
    %2661 = vmatpush.bf16.msra.mxu0 %v1846
    %2662 = vmatpush.bf16.msra.mxu0 %v1842
    %2663 = vmatpush.bf16.msra.mxu0 %v1838
    %2664 = vmatpush.bf16.msra.mxu0 %v1834
    %2665 = vmatpush.bf16.msra.mxu0 %v1830
    %2666 = vmatpush.bf16.msra.mxu0 %v1826
    %2667 = vmatpush.bf16.msra.mxu0 %v1822
    %2668 = vmatpush.bf16.msra.mxu0 %v1818
    %2669 = vmatmul.bf16.gmra.mxu0 %v747
    %v2670 = vpop.f32.mrf.mxu0
    %v2671 = vadd.f32 %v2657, %v2670
    %v2672 = vpop.f32.mrf.mxu0
    %v2673 = vadd.f32 %v2659, %v2672
    %2674 = vdwg.mxu0
    %2675 = vmatpush.bf16.msra.mxu0 %v1878
    %2676 = vmatpush.bf16.msra.mxu0 %v1874
    %2677 = vmatpush.bf16.msra.mxu0 %v1870
    %2678 = vmatpush.bf16.msra.mxu0 %v1866
    %2679 = vmatpush.bf16.msra.mxu0 %v1862
    %2680 = vmatpush.bf16.msra.mxu0 %v1858
    %2681 = vmatpush.bf16.msra.mxu0 %v1854
    %2682 = vmatpush.bf16.msra.mxu0 %v1850
    %2683 = vmatmul.bf16.gmra.mxu0 %v748
    %v2684 = vpop.f32.mrf.mxu0
    %v2685 = vadd.f32 %v2671, %v2684
    %v2686 = vpop.f32.mrf.mxu0
    %v2687 = vadd.f32 %v2673, %v2686
    %2688 = vdwg.mxu0
    %2689 = vmatpush.bf16.msra.mxu0 %v1910
    %2690 = vmatpush.bf16.msra.mxu0 %v1906
    %2691 = vmatpush.bf16.msra.mxu0 %v1902
    %2692 = vmatpush.bf16.msra.mxu0 %v1898
    %2693 = vmatpush.bf16.msra.mxu0 %v1894
    %2694 = vmatpush.bf16.msra.mxu0 %v1890
    %2695 = vmatpush.bf16.msra.mxu0 %v1886
    %2696 = vmatpush.bf16.msra.mxu0 %v1882
    %2697 = vmatmul.bf16.gmra.mxu0 %v749
    %v2698 = vpop.f32.mrf.mxu0
    %v2699 = vadd.f32 %v2685, %v2698
    %v2700 = vpop.f32.mrf.mxu0
    %v2701 = vadd.f32 %v2687, %v2700
    %2702 = vdwg.mxu0
    %v2713 = vunpack.c.l.b16 %v117
    %v2714 = vunpack.c.h.b16 %v117
    %v2715 = vunpack.c.l.b16 %v118
    %v2716 = vunpack.c.h.b16 %v118
    %v2717 = vunpack.c.l.b16 %v119
    %v2718 = vunpack.c.h.b16 %v119
    %v2719 = vunpack.c.l.b16 %v120
    %v2720 = vunpack.c.h.b16 %v120
    %v2721 = vunpack.c.l.b16 %v121
    %v2722 = vunpack.c.l.b16 %v122
    %v2723 = vunpack.c.h.b16 %v122
    %v2724 = vunpack.c.l.b16 %v123
    %v2725 = vunpack.c.h.b16 %v123
    %v2726 = vunpack.c.l.b16 %v124
    %v2727 = vunpack.c.h.b16 %v124
    %v2728 = vunpack.c.l.b16 %v125
    %v2729 = vunpack.c.h.b16 %v125
    %v2730 = vunpack.c.l.b16 %v126
    %v2731 = vpack.c.b16 %v2722, %v2713
    %v2732 = vpack.c.b16 %v2723, %v2714
    %v2733 = vpack.c.b16 %v2724, %v2715
    %v2734 = vpack.c.b16 %v2725, %v2716
    %v2735 = vpack.c.b16 %v2726, %v2717
    %v2736 = vpack.c.b16 %v2727, %v2718
    %v2737 = vpack.c.b16 %v2728, %v2719
    %v2738 = vpack.c.b16 %v2729, %v2720
    %v2739 = vpack.c.b16 %v2730, %v2721
    %v3037 = vunpack.c.l.b16 %v127
    %v3038 = vunpack.c.h.b16 %v127
    %v3039 = vunpack.c.l.b16 %v128
    %v3040 = vunpack.c.h.b16 %v128
    %v3041 = vunpack.c.l.b16 %v129
    %v3042 = vunpack.c.h.b16 %v129
    %v3043 = vunpack.c.l.b16 %v130
    %v3044 = vunpack.c.h.b16 %v130
    %v3045 = vunpack.c.l.b16 %v131
    %v3046 = vunpack.c.h.b16 %v131
    %v3047 = vunpack.c.l.b16 %v132
    %v3048 = vunpack.c.h.b16 %v132
    %v3049 = vunpack.c.l.b16 %v133
    %v3050 = vunpack.c.h.b16 %v133
    %v3051 = vunpack.c.l.b16 %v134
    %v3052 = vunpack.c.h.b16 %v134
    %v3053 = vunpack.c.l.b16 %v135
    %v3054 = vunpack.c.h.b16 %v135
    %v3055 = vunpack.c.l.b16 %v136
    %v3056 = vunpack.c.h.b16 %v136
    %v3057 = vunpack.c.l.b16 %v137
    %v3058 = vunpack.c.h.b16 %v137
    %v3059 = vunpack.c.l.b16 %v138
    %v3060 = vunpack.c.h.b16 %v138
    %v3061 = vunpack.c.l.b16 %v139
    %v3062 = vunpack.c.h.b16 %v139
    %v3063 = vunpack.c.l.b16 %v140
    %v3064 = vunpack.c.h.b16 %v140
    %v3065 = vunpack.c.l.b16 %v141
    %v3066 = vunpack.c.h.b16 %v141
    %v3067 = vunpack.c.l.b16 %v142
    %v3068 = vunpack.c.h.b16 %v142
    %v3069 = vunpack.c.l.b16 %v143
    %v3070 = vunpack.c.h.b16 %v143
    %v3071 = vunpack.c.l.b16 %v144
    %v3072 = vunpack.c.h.b16 %v144
    %v3073 = vunpack.c.l.b16 %v145
    %v3074 = vunpack.c.h.b16 %v145
    %v3075 = vunpack.c.l.b16 %v146
    %v3076 = vunpack.c.h.b16 %v146
    %v3077 = vunpack.c.l.b16 %v147
    %v3078 = vunpack.c.h.b16 %v147
    %v3079 = vunpack.c.l.b16 %v148
    %v3080 = vunpack.c.h.b16 %v148
    %v3081 = vunpack.c.l.b16 %v149
    %v3082 = vunpack.c.h.b16 %v149
    %v3083 = vunpack.c.l.b16 %v150
    %v3084 = vunpack.c.h.b16 %v150
    %v3085 = vunpack.c.l.b16 %v151
    %v3086 = vunpack.c.h.b16 %v151
    %v3087 = vunpack.c.l.b16 %v152
    %v3088 = vunpack.c.h.b16 %v152
    %v3089 = vunpack.c.l.b16 %v153
    %v3090 = vunpack.c.h.b16 %v153
    %v3091 = vunpack.c.l.b16 %v154
    %v3092 = vunpack.c.h.b16 %v154
    %v3093 = vunpack.c.l.b16 %v155
    %v3094 = vunpack.c.h.b16 %v155
    %v3095 = vunpack.c.l.b16 %v156
    %v3096 = vunpack.c.h.b16 %v156
    %v3097 = vunpack.c.l.b16 %v157
    %v3098 = vunpack.c.h.b16 %v157
    %v3099 = vunpack.c.l.b16 %v158
    %v3100 = vunpack.c.h.b16 %v158
    %v3101 = vunpack.c.l.b16 %v159
    %v3102 = vunpack.c.h.b16 %v159
    %v3103 = vunpack.c.l.b16 %v160
    %v3104 = vunpack.c.h.b16 %v160
    %v3105 = vunpack.c.l.b16 %v161
    %v3106 = vunpack.c.h.b16 %v161
    %v3107 = vunpack.c.l.b16 %v162
    %v3108 = vunpack.c.h.b16 %v162
    %v3109 = vunpack.c.l.b16 %v163
    %v3110 = vunpack.c.h.b16 %v163
    %v3111 = vunpack.c.l.b16 %v164
    %v3112 = vunpack.c.h.b16 %v164
    %v3113 = vunpack.c.l.b16 %v165
    %v3114 = vunpack.c.h.b16 %v165
    %v3115 = vunpack.c.l.b16 %v166
    %v3116 = vunpack.c.h.b16 %v166
    %v3117 = vunpack.c.l.b16 %v167
    %v3118 = vunpack.c.h.b16 %v167
    %v3119 = vunpack.c.l.b16 %v168
    %v3120 = vunpack.c.h.b16 %v168
    %v3121 = vunpack.c.l.b16 %v169
    %v3122 = vunpack.c.h.b16 %v169
    %v3123 = vunpack.c.l.b16 %v170
    %v3124 = vunpack.c.h.b16 %v170
    %v3125 = vunpack.c.l.b16 %v171
    %v3126 = vunpack.c.h.b16 %v171
    %v3127 = vunpack.c.l.b16 %v172
    %v3128 = vunpack.c.h.b16 %v172
    %v3129 = vunpack.c.l.b16 %v173
    %v3130 = vunpack.c.h.b16 %v173
    %v3131 = vunpack.c.l.b16 %v174
    %v3132 = vunpack.c.h.b16 %v174
    %v3133 = vunpack.c.l.b16 %v175
    %v3134 = vunpack.c.h.b16 %v175
    %v3135 = vunpack.c.l.b16 %v176
    %v3136 = vunpack.c.h.b16 %v176
    %v3137 = vunpack.c.l.b16 %v177
    %v3138 = vunpack.c.h.b16 %v177
    %v3139 = vunpack.c.l.b16 %v178
    %v3140 = vunpack.c.h.b16 %v178
    %v3141 = vunpack.c.l.b16 %v179
    %v3142 = vunpack.c.h.b16 %v179
    %v3143 = vunpack.c.l.b16 %v180
    %v3144 = vunpack.c.h.b16 %v180
    %v3145 = vunpack.c.l.b16 %v181
    %v3146 = vunpack.c.h.b16 %v181
    %v3147 = vunpack.c.l.b16 %v182
    %v3148 = vunpack.c.h.b16 %v182
    %v3149 = vunpack.c.l.b16 %v183
    %v3150 = vunpack.c.h.b16 %v183
    %v3151 = vunpack.c.l.b16 %v184
    %v3152 = vunpack.c.h.b16 %v184
    %v3153 = vunpack.c.l.b16 %v185
    %v3154 = vunpack.c.h.b16 %v185
    %v3155 = vunpack.c.l.b16 %v186
    %v3156 = vunpack.c.h.b16 %v186
    %v3157 = vunpack.c.l.b16 %v187
    %v3158 = vunpack.c.h.b16 %v187
    %v3159 = vunpack.c.l.b16 %v188
    %v3160 = vunpack.c.h.b16 %v188
    %v3161 = vunpack.c.l.b16 %v189
    %v3162 = vunpack.c.h.b16 %v189
    %v3163 = vunpack.c.l.b16 %v190
    %v3164 = vunpack.c.h.b16 %v190
    %v3165 = vunpack.c.l.b16 %v191
    %v3166 = vunpack.c.h.b16 %v191
    %v3167 = vunpack.c.l.b16 %v192
    %v3168 = vunpack.c.h.b16 %v192
    %v3169 = vunpack.c.l.b16 %v193
    %v3170 = vunpack.c.h.b16 %v193
    %v3171 = vunpack.c.l.b16 %v194
    %v3172 = vunpack.c.h.b16 %v194
    %v3173 = vunpack.c.l.b16 %v195
    %v3174 = vunpack.c.h.b16 %v195
    %v3175 = vunpack.c.l.b16 %v196
    %v3176 = vunpack.c.h.b16 %v196
    %v3177 = vunpack.c.l.b16 %v197
    %v3178 = vunpack.c.h.b16 %v197
    %v3179 = vunpack.c.l.b16 %v198
    %v3180 = vunpack.c.h.b16 %v198
    %v3181 = vunpack.c.l.b16 %v199
    %v3182 = vunpack.c.h.b16 %v199
    %v3183 = vunpack.c.l.b16 %v200
    %v3184 = vunpack.c.h.b16 %v200
    %v3185 = vunpack.c.l.b16 %v201
    %v3186 = vunpack.c.h.b16 %v201
    %v3187 = vunpack.c.l.b16 %v202
    %v3188 = vunpack.c.h.b16 %v202
    %v3189 = vunpack.c.l.b16 %v203
    %v3190 = vunpack.c.h.b16 %v203
    %v3191 = vunpack.c.l.b16 %v204
    %v3192 = vunpack.c.h.b16 %v204
    %v3193 = vunpack.c.l.b16 %v205
    %v3194 = vunpack.c.h.b16 %v205
    %v3195 = vunpack.c.l.b16 %v206
    %v3196 = vunpack.c.h.b16 %v206
    %v3197 = vunpack.c.l.b16 %v207
    %v3198 = vunpack.c.h.b16 %v207
    %v3199 = vunpack.c.l.b16 %v208
    %v3200 = vunpack.c.h.b16 %v208
    %v3201 = vunpack.c.l.b16 %v209
    %v3202 = vunpack.c.h.b16 %v209
    %v3203 = vunpack.c.l.b16 %v210
    %v3204 = vunpack.c.h.b16 %v210
    %v3205 = vunpack.c.l.b16 %v211
    %v3206 = vunpack.c.h.b16 %v211
    %v3207 = vunpack.c.l.b16 %v212
    %v3208 = vunpack.c.h.b16 %v212
    %v3209 = vunpack.c.l.b16 %v213
    %v3210 = vunpack.c.h.b16 %v213
    %v3211 = vunpack.c.l.b16 %v214
    %v3212 = vunpack.c.h.b16 %v214
    %v3213 = vunpack.c.l.b16 %v215
    %v3214 = vunpack.c.h.b16 %v215
    %v3215 = vunpack.c.l.b16 %v216
    %v3216 = vunpack.c.h.b16 %v216
    %v3217 = vunpack.c.l.b16 %v217
    %v3218 = vunpack.c.h.b16 %v217
    %v3219 = vunpack.c.l.b16 %v218
    %v3220 = vunpack.c.h.b16 %v218
    %v3221 = vunpack.c.l.b16 %v219
    %v3222 = vunpack.c.h.b16 %v219
    %v3223 = vunpack.c.l.b16 %v220
    %v3224 = vunpack.c.h.b16 %v220
    %v3225 = vunpack.c.l.b16 %v221
    %v3226 = vunpack.c.h.b16 %v221
    %v3227 = vunpack.c.l.b16 %v222
    %v3228 = vunpack.c.h.b16 %v222
    %v3229 = vunpack.c.l.b16 %v223
    %v3230 = vunpack.c.h.b16 %v223
    %v3231 = vunpack.c.l.b16 %v224
    %v3232 = vunpack.c.h.b16 %v224
    %v3233 = vunpack.c.l.b16 %v225
    %v3234 = vunpack.c.h.b16 %v225
    %v3235 = vunpack.c.l.b16 %v226
    %v3236 = vunpack.c.h.b16 %v226
    %v3237 = vunpack.c.l.b16 %v227
    %v3238 = vunpack.c.h.b16 %v227
    %v3239 = vunpack.c.l.b16 %v228
    %v3240 = vunpack.c.h.b16 %v228
    %v3241 = vunpack.c.l.b16 %v229
    %v3242 = vunpack.c.h.b16 %v229
    %v3243 = vunpack.c.l.b16 %v230
    %v3244 = vunpack.c.h.b16 %v230
    %v3245 = vunpack.c.l.b16 %v231
    %v3246 = vunpack.c.h.b16 %v231
    %v3247 = vunpack.c.l.b16 %v232
    %v3248 = vunpack.c.h.b16 %v232
    %v3249 = vunpack.c.l.b16 %v233
    %v3250 = vunpack.c.h.b16 %v233
    %v3251 = vunpack.c.l.b16 %v234
    %v3252 = vunpack.c.h.b16 %v234
    %v3253 = vunpack.c.l.b16 %v235
    %v3254 = vunpack.c.h.b16 %v235
    %v3255 = vunpack.c.l.b16 %v236
    %v3256 = vunpack.c.h.b16 %v236
    %v3257 = vunpack.c.l.b16 %v237
    %v3258 = vunpack.c.h.b16 %v237
    %v3259 = vunpack.c.l.b16 %v238
    %v3260 = vunpack.c.h.b16 %v238
    %v3261 = vunpack.c.l.b16 %v239
    %v3262 = vunpack.c.h.b16 %v239
    %v3263 = vunpack.c.l.b16 %v240
    %v3264 = vunpack.c.h.b16 %v240
    %v3265 = vunpack.c.l.b16 %v241
    %v3266 = vunpack.c.h.b16 %v241
    %v3267 = vunpack.c.l.b16 %v242
    %v3268 = vunpack.c.h.b16 %v242
    %v3269 = vunpack.c.l.b16 %v243
    %v3270 = vunpack.c.h.b16 %v243
    %v3271 = vunpack.c.l.b16 %v244
    %v3272 = vunpack.c.h.b16 %v244
    %v3273 = vunpack.c.l.b16 %v245
    %v3274 = vunpack.c.h.b16 %v245
    %v3275 = vunpack.c.l.b16 %v246
    %v3276 = vunpack.c.h.b16 %v246
    %v3277 = vunpack.c.l.b16 %v247
    %v3278 = vunpack.c.h.b16 %v247
    %v3279 = vunpack.c.l.b16 %v248
    %v3280 = vunpack.c.h.b16 %v248
    %v3281 = vunpack.c.l.b16 %v249
    %v3282 = vunpack.c.h.b16 %v249
    %v3283 = vunpack.c.l.b16 %v250
    %v3284 = vunpack.c.h.b16 %v250
    %v3285 = vunpack.c.l.b16 %v251
    %v3286 = vunpack.c.h.b16 %v251
    %v3287 = vunpack.c.l.b16 %v252
    %v3288 = vunpack.c.h.b16 %v252
    %v3289 = vunpack.c.l.b16 %v253
    %v3290 = vunpack.c.h.b16 %v253
    %v3291 = vunpack.c.l.b16 %v254
    %v3292 = vunpack.c.h.b16 %v254
    %v3293 = vunpack.c.l.b16 %v255
    %v3294 = vunpack.c.h.b16 %v255
    %v3295 = vunpack.c.l.b16 %v256
    %v3296 = vunpack.c.h.b16 %v256
    %v3297 = vunpack.c.l.b16 %v257
    %v3298 = vunpack.c.h.b16 %v257
    %v3299 = vunpack.c.l.b16 %v258
    %v3300 = vunpack.c.h.b16 %v258
    %v3301 = vunpack.c.l.b16 %v259
    %v3302 = vunpack.c.h.b16 %v259
    %v3303 = vunpack.c.l.b16 %v260
    %v3304 = vunpack.c.h.b16 %v260
    %v3305 = vunpack.c.l.b16 %v261
    %v3306 = vunpack.c.h.b16 %v261
    %v3307 = vunpack.c.l.b16 %v262
    %v3308 = vunpack.c.h.b16 %v262
    %v3309 = vunpack.c.l.b16 %v263
    %v3310 = vunpack.c.h.b16 %v263
    %v3311 = vunpack.c.l.b16 %v264
    %v3312 = vunpack.c.h.b16 %v264
    %v3313 = vunpack.c.l.b16 %v265
    %v3314 = vunpack.c.h.b16 %v265
    %v3315 = vunpack.c.l.b16 %v266
    %v3316 = vunpack.c.h.b16 %v266
    %v3317 = vunpack.c.l.b16 %v267
    %v3318 = vunpack.c.h.b16 %v267
    %v3319 = vunpack.c.l.b16 %v268
    %v3320 = vunpack.c.h.b16 %v268
    %v3321 = vunpack.c.l.b16 %v269
    %v3322 = vunpack.c.h.b16 %v269
    %v3323 = vunpack.c.l.b16 %v270
    %v3324 = vunpack.c.h.b16 %v270
    %v3325 = vunpack.c.l.b16 %v271
    %v3326 = vunpack.c.h.b16 %v271
    %v3327 = vunpack.c.l.b16 %v272
    %v3328 = vunpack.c.h.b16 %v272
    %v3329 = vunpack.c.l.b16 %v273
    %v3330 = vunpack.c.h.b16 %v273
    %v3331 = vunpack.c.l.b16 %v274
    %v3332 = vunpack.c.h.b16 %v274
    %v3333 = vunpack.c.l.b16 %v275
    %v3334 = vunpack.c.h.b16 %v275
    %v3335 = vunpack.c.l.b16 %v276
    %v3336 = vunpack.c.h.b16 %v276
    %v3337 = vunpack.c.l.b16 %v277
    %v3338 = vunpack.c.h.b16 %v277
    %v3339 = vunpack.c.l.b16 %v278
    %v3340 = vunpack.c.h.b16 %v278
    %v3341 = vunpack.c.l.b16 %v279
    %v3342 = vunpack.c.h.b16 %v279
    %v3343 = vunpack.c.l.b16 %v280
    %v3344 = vunpack.c.h.b16 %v280
    %v3345 = vunpack.c.l.b16 %v281
    %v3346 = vunpack.c.h.b16 %v281
    %v3347 = vunpack.c.l.b16 %v282
    %v3348 = vunpack.c.h.b16 %v282
    %v3349 = vunpack.c.l.b16 %v283
    %v3350 = vunpack.c.h.b16 %v283
    %v3351 = vunpack.c.l.b16 %v284
    %v3352 = vunpack.c.h.b16 %v284
    %v3353 = vunpack.c.l.b16 %v285
    %v3354 = vunpack.c.h.b16 %v285
    %v3355 = vunpack.c.l.b16 %v286
    %v3356 = vunpack.c.h.b16 %v286
    %v3357 = vunpack.c.l.b16 %v287
    %v3358 = vunpack.c.h.b16 %v287
    %v3359 = vunpack.c.l.b16 %v288
    %v3360 = vunpack.c.h.b16 %v288
    %v3361 = vunpack.c.l.b16 %v289
    %v3362 = vunpack.c.h.b16 %v289
    %v3363 = vunpack.c.l.b16 %v290
    %v3364 = vunpack.c.h.b16 %v290
    %v3365 = vunpack.c.l.b16 %v291
    %v3366 = vunpack.c.h.b16 %v291
    %v3367 = vunpack.c.l.b16 %v292
    %v3368 = vunpack.c.h.b16 %v292
    %v3369 = vunpack.c.l.b16 %v293
    %v3370 = vunpack.c.h.b16 %v293
    %v3371 = vunpack.c.l.b16 %v294
    %v3372 = vunpack.c.h.b16 %v294
    %v3373 = vunpack.c.l.b16 %v295
    %v3374 = vunpack.c.h.b16 %v295
    %v3375 = vunpack.c.l.b16 %v296
    %v3376 = vunpack.c.h.b16 %v296
    %v3377 = vunpack.c.l.b16 %v297
    %v3378 = vunpack.c.h.b16 %v297
    %v3379 = vunpack.c.l.b16 %v298
    %v3380 = vunpack.c.h.b16 %v298
    %v3381 = vunpack.c.l.b16 %v299
    %v3382 = vunpack.c.h.b16 %v299
    %v3383 = vunpack.c.l.b16 %v300
    %v3384 = vunpack.c.h.b16 %v300
    %v3385 = vunpack.c.l.b16 %v301
    %v3386 = vunpack.c.h.b16 %v301
    %v3387 = vunpack.c.l.b16 %v302
    %v3388 = vunpack.c.h.b16 %v302
    %v3389 = vunpack.c.l.b16 %v303
    %v3390 = vunpack.c.h.b16 %v303
    %v3391 = vunpack.c.l.b16 %v304
    %v3392 = vunpack.c.h.b16 %v304
    %v3393 = vunpack.c.l.b16 %v305
    %v3394 = vunpack.c.h.b16 %v305
    %v3395 = vunpack.c.l.b16 %v306
    %v3396 = vunpack.c.h.b16 %v306
    %v3397 = vunpack.c.l.b16 %v307
    %v3398 = vunpack.c.h.b16 %v307
    %v3399 = vunpack.c.l.b16 %v308
    %v3400 = vunpack.c.h.b16 %v308
    %v3401 = vunpack.c.l.b16 %v309
    %v3402 = vunpack.c.h.b16 %v309
    %v3403 = vunpack.c.l.b16 %v310
    %v3404 = vunpack.c.h.b16 %v310
    %v3405 = vunpack.c.l.b16 %v311
    %v3406 = vunpack.c.h.b16 %v311
    %v3407 = vunpack.c.l.b16 %v312
    %v3408 = vunpack.c.h.b16 %v312
    %v3409 = vunpack.c.l.b16 %v313
    %v3410 = vunpack.c.h.b16 %v313
    %v3411 = vunpack.c.l.b16 %v314
    %v3412 = vunpack.c.h.b16 %v314
    %v3413 = vunpack.c.l.b16 %v315
    %v3414 = vunpack.c.h.b16 %v315
    %v3415 = vunpack.c.l.b16 %v316
    %v3416 = vunpack.c.h.b16 %v316
    %v3417 = vunpack.c.l.b16 %v317
    %v3418 = vunpack.c.h.b16 %v317
    %v3419 = vunpack.c.l.b16 %v318
    %v3420 = vunpack.c.h.b16 %v318
    %v3421 = vunpack.c.l.b16 %v319
    %v3422 = vunpack.c.h.b16 %v319
    %v3423 = vunpack.c.l.b16 %v320
    %v3424 = vunpack.c.h.b16 %v320
    %v3425 = vunpack.c.l.b16 %v321
    %v3426 = vunpack.c.h.b16 %v321
    %v3427 = vunpack.c.l.b16 %v322
    %v3428 = vunpack.c.h.b16 %v322
    %v3429 = vunpack.c.l.b16 %v323
    %v3430 = vunpack.c.h.b16 %v323
    %v3431 = vunpack.c.l.b16 %v324
    %v3432 = vunpack.c.h.b16 %v324
    %v3433 = vunpack.c.l.b16 %v325
    %v3434 = vunpack.c.h.b16 %v325
    %v3435 = vunpack.c.l.b16 %v326
    %v3436 = vunpack.c.h.b16 %v326
    %v3437 = vunpack.c.l.b16 %v327
    %v3438 = vunpack.c.h.b16 %v327
    %v3439 = vunpack.c.l.b16 %v328
    %v3440 = vunpack.c.h.b16 %v328
    %v3441 = vunpack.c.l.b16 %v329
    %v3442 = vunpack.c.h.b16 %v329
    %v3443 = vunpack.c.l.b16 %v330
    %v3444 = vunpack.c.h.b16 %v330
    %v3445 = vunpack.c.l.b16 %v331
    %v3446 = vunpack.c.h.b16 %v331
    %v3447 = vunpack.c.l.b16 %v332
    %v3448 = vunpack.c.h.b16 %v332
    %v3449 = vunpack.c.l.b16 %v333
    %v3450 = vunpack.c.h.b16 %v333
    %v3451 = vunpack.c.l.b16 %v334
    %v3452 = vunpack.c.h.b16 %v334
    %v3453 = vunpack.c.l.b16 %v335
    %v3454 = vunpack.c.h.b16 %v335
    %v3455 = vunpack.c.l.b16 %v336
    %v3456 = vunpack.c.h.b16 %v336
    %v3457 = vunpack.c.l.b16 %v337
    %v3458 = vunpack.c.h.b16 %v337
    %v3459 = vunpack.c.l.b16 %v338
    %v3460 = vunpack.c.h.b16 %v338
    %v3461 = vunpack.c.l.b16 %v339
    %v3462 = vunpack.c.h.b16 %v339
    %v3463 = vunpack.c.l.b16 %v340
    %v3464 = vunpack.c.h.b16 %v340
    %v3465 = vunpack.c.l.b16 %v341
    %v3466 = vunpack.c.h.b16 %v341
    %v3467 = vunpack.c.l.b16 %v342
    %v3468 = vunpack.c.h.b16 %v342
    %v3469 = vunpack.c.l.b16 %v343
    %v3470 = vunpack.c.h.b16 %v343
    %v3471 = vunpack.c.l.b16 %v344
    %v3472 = vunpack.c.h.b16 %v344
    %v3473 = vunpack.c.l.b16 %v345
    %v3474 = vunpack.c.h.b16 %v345
    %v3475 = vunpack.c.l.b16 %v346
    %v3476 = vunpack.c.h.b16 %v346
    %v3477 = vunpack.c.l.b16 %v347
    %v3478 = vunpack.c.h.b16 %v347
    %v3479 = vunpack.c.l.b16 %v348
    %v3480 = vunpack.c.h.b16 %v348
    %v3481 = vunpack.c.l.b16 %v349
    %v3482 = vunpack.c.h.b16 %v349
    %v3483 = vunpack.c.l.b16 %v350
    %v3484 = vunpack.c.h.b16 %v350
    %v3485 = vunpack.c.l.b16 %v351
    %v3486 = vunpack.c.h.b16 %v351
    %v3487 = vunpack.c.l.b16 %v352
    %v3488 = vunpack.c.h.b16 %v352
    %v3489 = vunpack.c.l.b16 %v353
    %v3490 = vunpack.c.h.b16 %v353
    %v3491 = vunpack.c.l.b16 %v354
    %v3492 = vunpack.c.h.b16 %v354
    %v3493 = vunpack.c.l.b16 %v355
    %v3494 = vunpack.c.h.b16 %v355
    %v3495 = vunpack.c.l.b16 %v356
    %v3496 = vunpack.c.h.b16 %v356
    %v3497 = vunpack.c.l.b16 %v357
    %v3498 = vunpack.c.h.b16 %v357
    %v3499 = vunpack.c.l.b16 %v358
    %v3500 = vunpack.c.h.b16 %v358
    %v3501 = vunpack.c.l.b16 %v359
    %v3502 = vunpack.c.h.b16 %v359
    %v3503 = vunpack.c.l.b16 %v360
    %v3504 = vunpack.c.h.b16 %v360
    %v3505 = vunpack.c.l.b16 %v361
    %v3506 = vunpack.c.h.b16 %v361
    %v3507 = vunpack.c.l.b16 %v362
    %v3508 = vunpack.c.h.b16 %v362
    %v3509 = vunpack.c.l.b16 %v363
    %v3510 = vunpack.c.h.b16 %v363
    %v3511 = vunpack.c.l.b16 %v364
    %v3512 = vunpack.c.h.b16 %v364
    %v3513 = vunpack.c.l.b16 %v365
    %v3514 = vunpack.c.h.b16 %v365
    %v3515 = vunpack.c.l.b16 %v366
    %v3516 = vunpack.c.h.b16 %v366
    %v3517 = vunpack.c.l.b16 %v367
    %v3518 = vunpack.c.h.b16 %v367
    %v3519 = vunpack.c.l.b16 %v368
    %v3520 = vunpack.c.h.b16 %v368
    %v3521 = vunpack.c.l.b16 %v369
    %v3522 = vunpack.c.h.b16 %v369
    %v3523 = vunpack.c.l.b16 %v370
    %v3524 = vunpack.c.h.b16 %v370
    %v3525 = vunpack.c.l.b16 %v371
    %v3526 = vunpack.c.h.b16 %v371
    %v3527 = vunpack.c.l.b16 %v372
    %v3528 = vunpack.c.h.b16 %v372
    %v3529 = vunpack.c.l.b16 %v373
    %v3530 = vunpack.c.h.b16 %v373
    %v3531 = vunpack.c.l.b16 %v374
    %v3532 = vunpack.c.h.b16 %v374
    %v3533 = vunpack.c.l.b16 %v375
    %v3534 = vunpack.c.h.b16 %v375
    %v3535 = vunpack.c.l.b16 %v376
    %v3536 = vunpack.c.h.b16 %v376
    %v3537 = vunpack.c.l.b16 %v377
    %v3538 = vunpack.c.h.b16 %v377
    %v3539 = vunpack.c.l.b16 %v378
    %v3540 = vunpack.c.h.b16 %v378
    %v3541 = vunpack.c.l.b16 %v379
    %v3542 = vunpack.c.h.b16 %v379
    %v3543 = vunpack.c.l.b16 %v380
    %v3544 = vunpack.c.h.b16 %v380
    %v3545 = vunpack.c.l.b16 %v381
    %v3546 = vunpack.c.h.b16 %v381
    %v3547 = vunpack.c.l.b16 %v382
    %v3548 = vunpack.c.h.b16 %v382
    %v3549 = vunpack.c.l.b16 %v383
    %v3550 = vunpack.c.h.b16 %v383
    %v3551 = vunpack.c.l.b16 %v384
    %v3552 = vunpack.c.h.b16 %v384
    %v3553 = vunpack.c.l.b16 %v385
    %v3554 = vunpack.c.h.b16 %v385
    %v3555 = vunpack.c.l.b16 %v386
    %v3556 = vunpack.c.h.b16 %v386
    %v3557 = vunpack.c.l.b16 %v387
    %v3558 = vunpack.c.h.b16 %v387
    %v3559 = vunpack.c.l.b16 %v388
    %v3560 = vunpack.c.h.b16 %v388
    %v3561 = vunpack.c.l.b16 %v389
    %v3562 = vunpack.c.h.b16 %v389
    %v3563 = vunpack.c.l.b16 %v390
    %v3564 = vunpack.c.h.b16 %v390
    %v3565 = vunpack.c.l.b16 %v391
    %v3566 = vunpack.c.h.b16 %v391
    %v3567 = vunpack.c.l.b16 %v392
    %v3568 = vunpack.c.h.b16 %v392
    %v3569 = vunpack.c.l.b16 %v393
    %v3570 = vunpack.c.h.b16 %v393
    %v3571 = vunpack.c.l.b16 %v394
    %v3572 = vunpack.c.h.b16 %v394
    %v3573 = vunpack.c.l.b16 %v395
    %v3574 = vunpack.c.h.b16 %v395
    %v3575 = vunpack.c.l.b16 %v396
    %v3576 = vunpack.c.h.b16 %v396
    %v3577 = vunpack.c.l.b16 %v397
    %v3578 = vunpack.c.h.b16 %v397
    %v3579 = vunpack.c.l.b16 %v398
    %v3580 = vunpack.c.h.b16 %v398
    %v3581 = vunpack.c.l.b16 %v399
    %v3582 = vunpack.c.h.b16 %v399
    %v3583 = vunpack.c.l.b16 %v400
    %v3584 = vunpack.c.h.b16 %v400
    %v3585 = vunpack.c.l.b16 %v401
    %v3586 = vunpack.c.h.b16 %v401
    %v3587 = vunpack.c.l.b16 %v402
    %v3588 = vunpack.c.h.b16 %v402
    %v3589 = vunpack.c.l.b16 %v403
    %v3590 = vunpack.c.h.b16 %v403
    %v3591 = vunpack.c.l.b16 %v404
    %v3592 = vunpack.c.h.b16 %v404
    %v3593 = vunpack.c.l.b16 %v405
    %v3594 = vunpack.c.h.b16 %v405
    %v3595 = vunpack.c.l.b16 %v406
    %v3596 = vunpack.c.h.b16 %v406
    %v3597 = vunpack.c.l.b16 %v407
    %v3598 = vunpack.c.h.b16 %v407
    %v3599 = vunpack.c.l.b16 %v408
    %v3600 = vunpack.c.h.b16 %v408
    %v3601 = vunpack.c.l.b16 %v409
    %v3602 = vunpack.c.h.b16 %v409
    %v3603 = vunpack.c.l.b16 %v410
    %v3604 = vunpack.c.h.b16 %v410
    %v3605 = vunpack.c.l.b16 %v411
    %v3606 = vunpack.c.h.b16 %v411
    %v3607 = vunpack.c.l.b16 %v412
    %v3608 = vunpack.c.h.b16 %v412
    %v3609 = vunpack.c.l.b16 %v413
    %v3610 = vunpack.c.h.b16 %v413
    %v3611 = vunpack.c.l.b16 %v414
    %v3612 = vunpack.c.h.b16 %v414
    %v3613 = vpack.c.b16 %v3041, %v3037
    %v3614 = vpack.c.b16 %v3042, %v3038
    %v3615 = vpack.c.b16 %v3043, %v3039
    %v3616 = vpack.c.b16 %v3044, %v3040
    %v3617 = vpack.c.b16 %v3049, %v3045
    %v3618 = vpack.c.b16 %v3050, %v3046
    %v3619 = vpack.c.b16 %v3051, %v3047
    %v3620 = vpack.c.b16 %v3052, %v3048
    %v3621 = vpack.c.b16 %v3057, %v3053
    %v3622 = vpack.c.b16 %v3058, %v3054
    %v3623 = vpack.c.b16 %v3059, %v3055
    %v3624 = vpack.c.b16 %v3060, %v3056
    %v3625 = vpack.c.b16 %v3065, %v3061
    %v3626 = vpack.c.b16 %v3066, %v3062
    %v3627 = vpack.c.b16 %v3067, %v3063
    %v3628 = vpack.c.b16 %v3068, %v3064
    %v3629 = vpack.c.b16 %v3073, %v3069
    %v3630 = vpack.c.b16 %v3074, %v3070
    %v3631 = vpack.c.b16 %v3075, %v3071
    %v3632 = vpack.c.b16 %v3076, %v3072
    %v3633 = vpack.c.b16 %v3081, %v3077
    %v3634 = vpack.c.b16 %v3082, %v3078
    %v3635 = vpack.c.b16 %v3083, %v3079
    %v3636 = vpack.c.b16 %v3084, %v3080
    %v3637 = vpack.c.b16 %v3089, %v3085
    %v3638 = vpack.c.b16 %v3090, %v3086
    %v3639 = vpack.c.b16 %v3091, %v3087
    %v3640 = vpack.c.b16 %v3092, %v3088
    %v3641 = vpack.c.b16 %v3097, %v3093
    %v3642 = vpack.c.b16 %v3098, %v3094
    %v3643 = vpack.c.b16 %v3099, %v3095
    %v3644 = vpack.c.b16 %v3100, %v3096
    %v3645 = vpack.c.b16 %v3105, %v3101
    %v3646 = vpack.c.b16 %v3106, %v3102
    %v3647 = vpack.c.b16 %v3107, %v3103
    %v3648 = vpack.c.b16 %v3108, %v3104
    %v3649 = vpack.c.b16 %v3113, %v3109
    %v3650 = vpack.c.b16 %v3114, %v3110
    %v3651 = vpack.c.b16 %v3115, %v3111
    %v3652 = vpack.c.b16 %v3116, %v3112
    %v3653 = vpack.c.b16 %v3121, %v3117
    %v3654 = vpack.c.b16 %v3122, %v3118
    %v3655 = vpack.c.b16 %v3123, %v3119
    %v3656 = vpack.c.b16 %v3124, %v3120
    %v3657 = vpack.c.b16 %v3129, %v3125
    %v3658 = vpack.c.b16 %v3130, %v3126
    %v3659 = vpack.c.b16 %v3131, %v3127
    %v3660 = vpack.c.b16 %v3132, %v3128
    %v3661 = vpack.c.b16 %v3137, %v3133
    %v3662 = vpack.c.b16 %v3138, %v3134
    %v3663 = vpack.c.b16 %v3139, %v3135
    %v3664 = vpack.c.b16 %v3140, %v3136
    %v3665 = vpack.c.b16 %v3145, %v3141
    %v3666 = vpack.c.b16 %v3146, %v3142
    %v3667 = vpack.c.b16 %v3147, %v3143
    %v3668 = vpack.c.b16 %v3148, %v3144
    %v3669 = vpack.c.b16 %v3153, %v3149
    %v3670 = vpack.c.b16 %v3154, %v3150
    %v3671 = vpack.c.b16 %v3155, %v3151
    %v3672 = vpack.c.b16 %v3156, %v3152
    %v3673 = vpack.c.b16 %v3161, %v3157
    %v3674 = vpack.c.b16 %v3162, %v3158
    %v3675 = vpack.c.b16 %v3163, %v3159
    %v3676 = vpack.c.b16 %v3164, %v3160
    %v3677 = vpack.c.b16 %v3169, %v3165
    %v3678 = vpack.c.b16 %v3170, %v3166
    %v3679 = vpack.c.b16 %v3171, %v3167
    %v3680 = vpack.c.b16 %v3172, %v3168
    %v3681 = vpack.c.b16 %v3177, %v3173
    %v3682 = vpack.c.b16 %v3178, %v3174
    %v3683 = vpack.c.b16 %v3179, %v3175
    %v3684 = vpack.c.b16 %v3180, %v3176
    %v3685 = vpack.c.b16 %v3185, %v3181
    %v3686 = vpack.c.b16 %v3186, %v3182
    %v3687 = vpack.c.b16 %v3187, %v3183
    %v3688 = vpack.c.b16 %v3188, %v3184
    %v3689 = vpack.c.b16 %v3193, %v3189
    %v3690 = vpack.c.b16 %v3194, %v3190
    %v3691 = vpack.c.b16 %v3195, %v3191
    %v3692 = vpack.c.b16 %v3196, %v3192
    %v3693 = vpack.c.b16 %v3201, %v3197
    %v3694 = vpack.c.b16 %v3202, %v3198
    %v3695 = vpack.c.b16 %v3203, %v3199
    %v3696 = vpack.c.b16 %v3204, %v3200
    %v3697 = vpack.c.b16 %v3209, %v3205
    %v3698 = vpack.c.b16 %v3210, %v3206
    %v3699 = vpack.c.b16 %v3211, %v3207
    %v3700 = vpack.c.b16 %v3212, %v3208
    %v3701 = vpack.c.b16 %v3217, %v3213
    %v3702 = vpack.c.b16 %v3218, %v3214
    %v3703 = vpack.c.b16 %v3219, %v3215
    %v3704 = vpack.c.b16 %v3220, %v3216
    %v3705 = vpack.c.b16 %v3225, %v3221
    %v3706 = vpack.c.b16 %v3226, %v3222
    %v3707 = vpack.c.b16 %v3227, %v3223
    %v3708 = vpack.c.b16 %v3228, %v3224
    %v3709 = vpack.c.b16 %v3233, %v3229
    %v3710 = vpack.c.b16 %v3234, %v3230
    %v3711 = vpack.c.b16 %v3235, %v3231
    %v3712 = vpack.c.b16 %v3236, %v3232
    %v3713 = vpack.c.b16 %v3241, %v3237
    %v3714 = vpack.c.b16 %v3242, %v3238
    %v3715 = vpack.c.b16 %v3243, %v3239
    %v3716 = vpack.c.b16 %v3244, %v3240
    %v3717 = vpack.c.b16 %v3249, %v3245
    %v3718 = vpack.c.b16 %v3250, %v3246
    %v3719 = vpack.c.b16 %v3251, %v3247
    %v3720 = vpack.c.b16 %v3252, %v3248
    %v3721 = vpack.c.b16 %v3257, %v3253
    %v3722 = vpack.c.b16 %v3258, %v3254
    %v3723 = vpack.c.b16 %v3259, %v3255
    %v3724 = vpack.c.b16 %v3260, %v3256
    %v3725 = vpack.c.b16 %v3265, %v3261
    %v3726 = vpack.c.b16 %v3266, %v3262
    %v3727 = vpack.c.b16 %v3267, %v3263
    %v3728 = vpack.c.b16 %v3268, %v3264
    %v3729 = vpack.c.b16 %v3273, %v3269
    %v3730 = vpack.c.b16 %v3274, %v3270
    %v3731 = vpack.c.b16 %v3275, %v3271
    %v3732 = vpack.c.b16 %v3276, %v3272
    %v3733 = vpack.c.b16 %v3281, %v3277
    %v3734 = vpack.c.b16 %v3282, %v3278
    %v3735 = vpack.c.b16 %v3283, %v3279
    %v3736 = vpack.c.b16 %v3284, %v3280
    %v3737 = vpack.c.b16 %v3289, %v3285
    %v3738 = vpack.c.b16 %v3290, %v3286
    %v3739 = vpack.c.b16 %v3291, %v3287
    %v3740 = vpack.c.b16 %v3292, %v3288
    %v3741 = vpack.c.b16 %v3297, %v3293
    %v3742 = vpack.c.b16 %v3298, %v3294
    %v3743 = vpack.c.b16 %v3299, %v3295
    %v3744 = vpack.c.b16 %v3300, %v3296
    %v3745 = vpack.c.b16 %v3305, %v3301
    %v3746 = vpack.c.b16 %v3306, %v3302
    %v3747 = vpack.c.b16 %v3307, %v3303
    %v3748 = vpack.c.b16 %v3308, %v3304
    %v3749 = vpack.c.b16 %v3313, %v3309
    %v3750 = vpack.c.b16 %v3314, %v3310
    %v3751 = vpack.c.b16 %v3315, %v3311
    %v3752 = vpack.c.b16 %v3316, %v3312
    %v3753 = vpack.c.b16 %v3321, %v3317
    %v3754 = vpack.c.b16 %v3322, %v3318
    %v3755 = vpack.c.b16 %v3323, %v3319
    %v3756 = vpack.c.b16 %v3324, %v3320
    %v3757 = vpack.c.b16 %v3329, %v3325
    %v3758 = vpack.c.b16 %v3330, %v3326
    %v3759 = vpack.c.b16 %v3331, %v3327
    %v3760 = vpack.c.b16 %v3332, %v3328
    %v3761 = vpack.c.b16 %v3337, %v3333
    %v3762 = vpack.c.b16 %v3338, %v3334
    %v3763 = vpack.c.b16 %v3339, %v3335
    %v3764 = vpack.c.b16 %v3340, %v3336
    %v3765 = vpack.c.b16 %v3345, %v3341
    %v3766 = vpack.c.b16 %v3346, %v3342
    %v3767 = vpack.c.b16 %v3347, %v3343
    %v3768 = vpack.c.b16 %v3348, %v3344
    %v3769 = vpack.c.b16 %v3353, %v3349
    %v3770 = vpack.c.b16 %v3354, %v3350
    %v3771 = vpack.c.b16 %v3355, %v3351
    %v3772 = vpack.c.b16 %v3356, %v3352
    %v3773 = vpack.c.b16 %v3361, %v3357
    %v3774 = vpack.c.b16 %v3362, %v3358
    %v3775 = vpack.c.b16 %v3363, %v3359
    %v3776 = vpack.c.b16 %v3364, %v3360
    %v3777 = vpack.c.b16 %v3369, %v3365
    %v3778 = vpack.c.b16 %v3370, %v3366
    %v3779 = vpack.c.b16 %v3371, %v3367
    %v3780 = vpack.c.b16 %v3372, %v3368
    %v3781 = vpack.c.b16 %v3377, %v3373
    %v3782 = vpack.c.b16 %v3378, %v3374
    %v3783 = vpack.c.b16 %v3379, %v3375
    %v3784 = vpack.c.b16 %v3380, %v3376
    %v3785 = vpack.c.b16 %v3385, %v3381
    %v3786 = vpack.c.b16 %v3386, %v3382
    %v3787 = vpack.c.b16 %v3387, %v3383
    %v3788 = vpack.c.b16 %v3388, %v3384
    %v3789 = vpack.c.b16 %v3393, %v3389
    %v3790 = vpack.c.b16 %v3394, %v3390
    %v3791 = vpack.c.b16 %v3395, %v3391
    %v3792 = vpack.c.b16 %v3396, %v3392
    %v3793 = vpack.c.b16 %v3401, %v3397
    %v3794 = vpack.c.b16 %v3402, %v3398
    %v3795 = vpack.c.b16 %v3403, %v3399
    %v3796 = vpack.c.b16 %v3404, %v3400
    %v3797 = vpack.c.b16 %v3409, %v3405
    %v3798 = vpack.c.b16 %v3410, %v3406
    %v3799 = vpack.c.b16 %v3411, %v3407
    %v3800 = vpack.c.b16 %v3412, %v3408
    %v3801 = vpack.c.b16 %v3417, %v3413
    %v3802 = vpack.c.b16 %v3418, %v3414
    %v3803 = vpack.c.b16 %v3419, %v3415
    %v3804 = vpack.c.b16 %v3420, %v3416
    %v3805 = vpack.c.b16 %v3425, %v3421
    %v3806 = vpack.c.b16 %v3426, %v3422
    %v3807 = vpack.c.b16 %v3427, %v3423
    %v3808 = vpack.c.b16 %v3428, %v3424
    %v3809 = vpack.c.b16 %v3433, %v3429
    %v3810 = vpack.c.b16 %v3434, %v3430
    %v3811 = vpack.c.b16 %v3435, %v3431
    %v3812 = vpack.c.b16 %v3436, %v3432
    %v3813 = vpack.c.b16 %v3441, %v3437
    %v3814 = vpack.c.b16 %v3442, %v3438
    %v3815 = vpack.c.b16 %v3443, %v3439
    %v3816 = vpack.c.b16 %v3444, %v3440
    %v3817 = vpack.c.b16 %v3449, %v3445
    %v3818 = vpack.c.b16 %v3450, %v3446
    %v3819 = vpack.c.b16 %v3451, %v3447
    %v3820 = vpack.c.b16 %v3452, %v3448
    %v3821 = vpack.c.b16 %v3457, %v3453
    %v3822 = vpack.c.b16 %v3458, %v3454
    %v3823 = vpack.c.b16 %v3459, %v3455
    %v3824 = vpack.c.b16 %v3460, %v3456
    %v3825 = vpack.c.b16 %v3465, %v3461
    %v3826 = vpack.c.b16 %v3466, %v3462
    %v3827 = vpack.c.b16 %v3467, %v3463
    %v3828 = vpack.c.b16 %v3468, %v3464
    %v3829 = vpack.c.b16 %v3473, %v3469
    %v3830 = vpack.c.b16 %v3474, %v3470
    %v3831 = vpack.c.b16 %v3475, %v3471
    %v3832 = vpack.c.b16 %v3476, %v3472
    %v3833 = vpack.c.b16 %v3481, %v3477
    %v3834 = vpack.c.b16 %v3482, %v3478
    %v3835 = vpack.c.b16 %v3483, %v3479
    %v3836 = vpack.c.b16 %v3484, %v3480
    %v3837 = vpack.c.b16 %v3489, %v3485
    %v3838 = vpack.c.b16 %v3490, %v3486
    %v3839 = vpack.c.b16 %v3491, %v3487
    %v3840 = vpack.c.b16 %v3492, %v3488
    %v3841 = vpack.c.b16 %v3497, %v3493
    %v3842 = vpack.c.b16 %v3498, %v3494
    %v3843 = vpack.c.b16 %v3499, %v3495
    %v3844 = vpack.c.b16 %v3500, %v3496
    %v3845 = vpack.c.b16 %v3505, %v3501
    %v3846 = vpack.c.b16 %v3506, %v3502
    %v3847 = vpack.c.b16 %v3507, %v3503
    %v3848 = vpack.c.b16 %v3508, %v3504
    %v3849 = vpack.c.b16 %v3513, %v3509
    %v3850 = vpack.c.b16 %v3514, %v3510
    %v3851 = vpack.c.b16 %v3515, %v3511
    %v3852 = vpack.c.b16 %v3516, %v3512
    %v3853 = vpack.c.b16 %v3521, %v3517
    %v3854 = vpack.c.b16 %v3522, %v3518
    %v3855 = vpack.c.b16 %v3523, %v3519
    %v3856 = vpack.c.b16 %v3524, %v3520
    %v3857 = vpack.c.b16 %v3529, %v3525
    %v3858 = vpack.c.b16 %v3530, %v3526
    %v3859 = vpack.c.b16 %v3531, %v3527
    %v3860 = vpack.c.b16 %v3532, %v3528
    %v3861 = vpack.c.b16 %v3537, %v3533
    %v3862 = vpack.c.b16 %v3538, %v3534
    %v3863 = vpack.c.b16 %v3539, %v3535
    %v3864 = vpack.c.b16 %v3540, %v3536
    %v3865 = vpack.c.b16 %v3545, %v3541
    %v3866 = vpack.c.b16 %v3546, %v3542
    %v3867 = vpack.c.b16 %v3547, %v3543
    %v3868 = vpack.c.b16 %v3548, %v3544
    %v3869 = vpack.c.b16 %v3553, %v3549
    %v3870 = vpack.c.b16 %v3554, %v3550
    %v3871 = vpack.c.b16 %v3555, %v3551
    %v3872 = vpack.c.b16 %v3556, %v3552
    %v3873 = vpack.c.b16 %v3561, %v3557
    %v3874 = vpack.c.b16 %v3562, %v3558
    %v3875 = vpack.c.b16 %v3563, %v3559
    %v3876 = vpack.c.b16 %v3564, %v3560
    %v3877 = vpack.c.b16 %v3569, %v3565
    %v3878 = vpack.c.b16 %v3570, %v3566
    %v3879 = vpack.c.b16 %v3571, %v3567
    %v3880 = vpack.c.b16 %v3572, %v3568
    %v3881 = vpack.c.b16 %v3577, %v3573
    %v3882 = vpack.c.b16 %v3578, %v3574
    %v3883 = vpack.c.b16 %v3579, %v3575
    %v3884 = vpack.c.b16 %v3580, %v3576
    %v3885 = vpack.c.b16 %v3585, %v3581
    %v3886 = vpack.c.b16 %v3586, %v3582
    %v3887 = vpack.c.b16 %v3587, %v3583
    %v3888 = vpack.c.b16 %v3588, %v3584
    %v3889 = vpack.c.b16 %v3593, %v3589
    %v3890 = vpack.c.b16 %v3594, %v3590
    %v3891 = vpack.c.b16 %v3595, %v3591
    %v3892 = vpack.c.b16 %v3596, %v3592
    %v3893 = vpack.c.b16 %v3601, %v3597
    %v3894 = vpack.c.b16 %v3602, %v3598
    %v3895 = vpack.c.b16 %v3603, %v3599
    %v3896 = vpack.c.b16 %v3604, %v3600
    %v3897 = vpack.c.b16 %v3609, %v3605
    %v3898 = vpack.c.b16 %v3610, %v3606
    %v3899 = vpack.c.b16 %v3611, %v3607
    %v3900 = vpack.c.b16 %v3612, %v3608
    %4189 = vmatpush.bf16.msra.mxu0 %v3641
    %4190 = vmatpush.bf16.msra.mxu0 %v3637
    %4191 = vmatpush.bf16.msra.mxu0 %v3633
    %4192 = vmatpush.bf16.msra.mxu0 %v3629
    %4193 = vmatpush.bf16.msra.mxu0 %v3625
    %4194 = vmatpush.bf16.msra.mxu0 %v3621
    %4195 = vmatpush.bf16.msra.mxu0 %v3617
    %4196 = vmatpush.bf16.msra.mxu0 %v3613
    %4197 = vmatmul.bf16.gmra.mxu0 %v2731
    %v4198 = vpop.f32.mrf.mxu0
    %v4199 = vadd.f32 %v2321, %v4198
    %v4200 = vpop.f32.mrf.mxu0
    %v4201 = vadd.f32 %v2323, %v4200
    %4202 = vdwg.mxu0
    %4203 = vmatpush.bf16.msra.mxu0 %v3673
    %4204 = vmatpush.bf16.msra.mxu0 %v3669
    %4205 = vmatpush.bf16.msra.mxu0 %v3665
    %4206 = vmatpush.bf16.msra.mxu0 %v3661
    %4207 = vmatpush.bf16.msra.mxu0 %v3657
    %4208 = vmatpush.bf16.msra.mxu0 %v3653
    %4209 = vmatpush.bf16.msra.mxu0 %v3649
    %4210 = vmatpush.bf16.msra.mxu0 %v3645
    %4211 = vmatmul.bf16.gmra.mxu0 %v2732
    %v4212 = vpop.f32.mrf.mxu0
    %v4213 = vadd.f32 %v4199, %v4212
    %v4214 = vpop.f32.mrf.mxu0
    %v4215 = vadd.f32 %v4201, %v4214
    %4216 = vdwg.mxu0
    %4217 = vmatpush.bf16.msra.mxu0 %v3705
    %4218 = vmatpush.bf16.msra.mxu0 %v3701
    %4219 = vmatpush.bf16.msra.mxu0 %v3697
    %4220 = vmatpush.bf16.msra.mxu0 %v3693
    %4221 = vmatpush.bf16.msra.mxu0 %v3689
    %4222 = vmatpush.bf16.msra.mxu0 %v3685
    %4223 = vmatpush.bf16.msra.mxu0 %v3681
    %4224 = vmatpush.bf16.msra.mxu0 %v3677
    %4225 = vmatmul.bf16.gmra.mxu0 %v2733
    %v4226 = vpop.f32.mrf.mxu0
    %v4227 = vadd.f32 %v4213, %v4226
    %v4228 = vpop.f32.mrf.mxu0
    %v4229 = vadd.f32 %v4215, %v4228
    %4230 = vdwg.mxu0
    %4231 = vmatpush.bf16.msra.mxu0 %v3737
    %4232 = vmatpush.bf16.msra.mxu0 %v3733
    %4233 = vmatpush.bf16.msra.mxu0 %v3729
    %4234 = vmatpush.bf16.msra.mxu0 %v3725
    %4235 = vmatpush.bf16.msra.mxu0 %v3721
    %4236 = vmatpush.bf16.msra.mxu0 %v3717
    %4237 = vmatpush.bf16.msra.mxu0 %v3713
    %4238 = vmatpush.bf16.msra.mxu0 %v3709
    %4239 = vmatmul.bf16.gmra.mxu0 %v2734
    %v4240 = vpop.f32.mrf.mxu0
    %v4241 = vadd.f32 %v4227, %v4240
    %v4242 = vpop.f32.mrf.mxu0
    %v4243 = vadd.f32 %v4229, %v4242
    %4244 = vdwg.mxu0
    %4245 = vmatpush.bf16.msra.mxu0 %v3769
    %4246 = vmatpush.bf16.msra.mxu0 %v3765
    %4247 = vmatpush.bf16.msra.mxu0 %v3761
    %4248 = vmatpush.bf16.msra.mxu0 %v3757
    %4249 = vmatpush.bf16.msra.mxu0 %v3753
    %4250 = vmatpush.bf16.msra.mxu0 %v3749
    %4251 = vmatpush.bf16.msra.mxu0 %v3745
    %4252 = vmatpush.bf16.msra.mxu0 %v3741
    %4253 = vmatmul.bf16.gmra.mxu0 %v2735
    %v4254 = vpop.f32.mrf.mxu0
    %v4255 = vadd.f32 %v4241, %v4254
    %v4256 = vpop.f32.mrf.mxu0
    %v4257 = vadd.f32 %v4243, %v4256
    %4258 = vdwg.mxu0
    %4259 = vmatpush.bf16.msra.mxu0 %v3801
    %4260 = vmatpush.bf16.msra.mxu0 %v3797
    %4261 = vmatpush.bf16.msra.mxu0 %v3793
    %4262 = vmatpush.bf16.msra.mxu0 %v3789
    %4263 = vmatpush.bf16.msra.mxu0 %v3785
    %4264 = vmatpush.bf16.msra.mxu0 %v3781
    %4265 = vmatpush.bf16.msra.mxu0 %v3777
    %4266 = vmatpush.bf16.msra.mxu0 %v3773
    %4267 = vmatmul.bf16.gmra.mxu0 %v2736
    %v4268 = vpop.f32.mrf.mxu0
    %v4269 = vadd.f32 %v4255, %v4268
    %v4270 = vpop.f32.mrf.mxu0
    %v4271 = vadd.f32 %v4257, %v4270
    %4272 = vdwg.mxu0
    %4273 = vmatpush.bf16.msra.mxu0 %v3833
    %4274 = vmatpush.bf16.msra.mxu0 %v3829
    %4275 = vmatpush.bf16.msra.mxu0 %v3825
    %4276 = vmatpush.bf16.msra.mxu0 %v3821
    %4277 = vmatpush.bf16.msra.mxu0 %v3817
    %4278 = vmatpush.bf16.msra.mxu0 %v3813
    %4279 = vmatpush.bf16.msra.mxu0 %v3809
    %4280 = vmatpush.bf16.msra.mxu0 %v3805
    %4281 = vmatmul.bf16.gmra.mxu0 %v2737
    %v4282 = vpop.f32.mrf.mxu0
    %v4283 = vadd.f32 %v4269, %v4282
    %v4284 = vpop.f32.mrf.mxu0
    %v4285 = vadd.f32 %v4271, %v4284
    %4286 = vdwg.mxu0
    %4287 = vmatpush.bf16.msra.mxu0 %v3865
    %4288 = vmatpush.bf16.msra.mxu0 %v3861
    %4289 = vmatpush.bf16.msra.mxu0 %v3857
    %4290 = vmatpush.bf16.msra.mxu0 %v3853
    %4291 = vmatpush.bf16.msra.mxu0 %v3849
    %4292 = vmatpush.bf16.msra.mxu0 %v3845
    %4293 = vmatpush.bf16.msra.mxu0 %v3841
    %4294 = vmatpush.bf16.msra.mxu0 %v3837
    %4295 = vmatmul.bf16.gmra.mxu0 %v2738
    %v4296 = vpop.f32.mrf.mxu0
    %v4297 = vadd.f32 %v4283, %v4296
    %v4298 = vpop.f32.mrf.mxu0
    %v4299 = vadd.f32 %v4285, %v4298
    %4300 = vdwg.mxu0
    %4301 = vmatpush.bf16.msra.mxu0 %v3897
    %4302 = vmatpush.bf16.msra.mxu0 %v3893
    %4303 = vmatpush.bf16.msra.mxu0 %v3889
    %4304 = vmatpush.bf16.msra.mxu0 %v3885
    %4305 = vmatpush.bf16.msra.mxu0 %v3881
    %4306 = vmatpush.bf16.msra.mxu0 %v3877
    %4307 = vmatpush.bf16.msra.mxu0 %v3873
    %4308 = vmatpush.bf16.msra.mxu0 %v3869
    %4309 = vmatmul.bf16.gmra.mxu0 %v2739
    %v4310 = vpop.f32.mrf.mxu0
    %v4311 = vadd.f32 %v4297, %v4310
    %v4312 = vpop.f32.mrf.mxu0
    %v4313 = vadd.f32 %v4299, %v4312
    %4314 = vdwg.mxu0
    %4315 = vmatpush.bf16.msra.mxu0 %v3642
    %4316 = vmatpush.bf16.msra.mxu0 %v3638
    %4317 = vmatpush.bf16.msra.mxu0 %v3634
    %4318 = vmatpush.bf16.msra.mxu0 %v3630
    %4319 = vmatpush.bf16.msra.mxu0 %v3626
    %4320 = vmatpush.bf16.msra.mxu0 %v3622
    %4321 = vmatpush.bf16.msra.mxu0 %v3618
    %4322 = vmatpush.bf16.msra.mxu0 %v3614
    %4323 = vmatmul.bf16.gmra.mxu0 %v2731
    %v4324 = vpop.f32.mrf.mxu0
    %v4325 = vadd.f32 %v2447, %v4324
    %v4326 = vpop.f32.mrf.mxu0
    %v4327 = vadd.f32 %v2449, %v4326
    %4328 = vdwg.mxu0
    %4329 = vmatpush.bf16.msra.mxu0 %v3674
    %4330 = vmatpush.bf16.msra.mxu0 %v3670
    %4331 = vmatpush.bf16.msra.mxu0 %v3666
    %4332 = vmatpush.bf16.msra.mxu0 %v3662
    %4333 = vmatpush.bf16.msra.mxu0 %v3658
    %4334 = vmatpush.bf16.msra.mxu0 %v3654
    %4335 = vmatpush.bf16.msra.mxu0 %v3650
    %4336 = vmatpush.bf16.msra.mxu0 %v3646
    %4337 = vmatmul.bf16.gmra.mxu0 %v2732
    %v4338 = vpop.f32.mrf.mxu0
    %v4339 = vadd.f32 %v4325, %v4338
    %v4340 = vpop.f32.mrf.mxu0
    %v4341 = vadd.f32 %v4327, %v4340
    %4342 = vdwg.mxu0
    %4343 = vmatpush.bf16.msra.mxu0 %v3706
    %4344 = vmatpush.bf16.msra.mxu0 %v3702
    %4345 = vmatpush.bf16.msra.mxu0 %v3698
    %4346 = vmatpush.bf16.msra.mxu0 %v3694
    %4347 = vmatpush.bf16.msra.mxu0 %v3690
    %4348 = vmatpush.bf16.msra.mxu0 %v3686
    %4349 = vmatpush.bf16.msra.mxu0 %v3682
    %4350 = vmatpush.bf16.msra.mxu0 %v3678
    %4351 = vmatmul.bf16.gmra.mxu0 %v2733
    %v4352 = vpop.f32.mrf.mxu0
    %v4353 = vadd.f32 %v4339, %v4352
    %v4354 = vpop.f32.mrf.mxu0
    %v4355 = vadd.f32 %v4341, %v4354
    %4356 = vdwg.mxu0
    %4357 = vmatpush.bf16.msra.mxu0 %v3738
    %4358 = vmatpush.bf16.msra.mxu0 %v3734
    %4359 = vmatpush.bf16.msra.mxu0 %v3730
    %4360 = vmatpush.bf16.msra.mxu0 %v3726
    %4361 = vmatpush.bf16.msra.mxu0 %v3722
    %4362 = vmatpush.bf16.msra.mxu0 %v3718
    %4363 = vmatpush.bf16.msra.mxu0 %v3714
    %4364 = vmatpush.bf16.msra.mxu0 %v3710
    %4365 = vmatmul.bf16.gmra.mxu0 %v2734
    %v4366 = vpop.f32.mrf.mxu0
    %v4367 = vadd.f32 %v4353, %v4366
    %v4368 = vpop.f32.mrf.mxu0
    %v4369 = vadd.f32 %v4355, %v4368
    %4370 = vdwg.mxu0
    %4371 = vmatpush.bf16.msra.mxu0 %v3770
    %4372 = vmatpush.bf16.msra.mxu0 %v3766
    %4373 = vmatpush.bf16.msra.mxu0 %v3762
    %4374 = vmatpush.bf16.msra.mxu0 %v3758
    %4375 = vmatpush.bf16.msra.mxu0 %v3754
    %4376 = vmatpush.bf16.msra.mxu0 %v3750
    %4377 = vmatpush.bf16.msra.mxu0 %v3746
    %4378 = vmatpush.bf16.msra.mxu0 %v3742
    %4379 = vmatmul.bf16.gmra.mxu0 %v2735
    %v4380 = vpop.f32.mrf.mxu0
    %v4381 = vadd.f32 %v4367, %v4380
    %v4382 = vpop.f32.mrf.mxu0
    %v4383 = vadd.f32 %v4369, %v4382
    %4384 = vdwg.mxu0
    %4385 = vmatpush.bf16.msra.mxu0 %v3802
    %4386 = vmatpush.bf16.msra.mxu0 %v3798
    %4387 = vmatpush.bf16.msra.mxu0 %v3794
    %4388 = vmatpush.bf16.msra.mxu0 %v3790
    %4389 = vmatpush.bf16.msra.mxu0 %v3786
    %4390 = vmatpush.bf16.msra.mxu0 %v3782
    %4391 = vmatpush.bf16.msra.mxu0 %v3778
    %4392 = vmatpush.bf16.msra.mxu0 %v3774
    %4393 = vmatmul.bf16.gmra.mxu0 %v2736
    %v4394 = vpop.f32.mrf.mxu0
    %v4395 = vadd.f32 %v4381, %v4394
    %v4396 = vpop.f32.mrf.mxu0
    %v4397 = vadd.f32 %v4383, %v4396
    %4398 = vdwg.mxu0
    %4399 = vmatpush.bf16.msra.mxu0 %v3834
    %4400 = vmatpush.bf16.msra.mxu0 %v3830
    %4401 = vmatpush.bf16.msra.mxu0 %v3826
    %4402 = vmatpush.bf16.msra.mxu0 %v3822
    %4403 = vmatpush.bf16.msra.mxu0 %v3818
    %4404 = vmatpush.bf16.msra.mxu0 %v3814
    %4405 = vmatpush.bf16.msra.mxu0 %v3810
    %4406 = vmatpush.bf16.msra.mxu0 %v3806
    %4407 = vmatmul.bf16.gmra.mxu0 %v2737
    %v4408 = vpop.f32.mrf.mxu0
    %v4409 = vadd.f32 %v4395, %v4408
    %v4410 = vpop.f32.mrf.mxu0
    %v4411 = vadd.f32 %v4397, %v4410
    %4412 = vdwg.mxu0
    %4413 = vmatpush.bf16.msra.mxu0 %v3866
    %4414 = vmatpush.bf16.msra.mxu0 %v3862
    %4415 = vmatpush.bf16.msra.mxu0 %v3858
    %4416 = vmatpush.bf16.msra.mxu0 %v3854
    %4417 = vmatpush.bf16.msra.mxu0 %v3850
    %4418 = vmatpush.bf16.msra.mxu0 %v3846
    %4419 = vmatpush.bf16.msra.mxu0 %v3842
    %4420 = vmatpush.bf16.msra.mxu0 %v3838
    %4421 = vmatmul.bf16.gmra.mxu0 %v2738
    %v4422 = vpop.f32.mrf.mxu0
    %v4423 = vadd.f32 %v4409, %v4422
    %v4424 = vpop.f32.mrf.mxu0
    %v4425 = vadd.f32 %v4411, %v4424
    %4426 = vdwg.mxu0
    %4427 = vmatpush.bf16.msra.mxu0 %v3898
    %4428 = vmatpush.bf16.msra.mxu0 %v3894
    %4429 = vmatpush.bf16.msra.mxu0 %v3890
    %4430 = vmatpush.bf16.msra.mxu0 %v3886
    %4431 = vmatpush.bf16.msra.mxu0 %v3882
    %4432 = vmatpush.bf16.msra.mxu0 %v3878
    %4433 = vmatpush.bf16.msra.mxu0 %v3874
    %4434 = vmatpush.bf16.msra.mxu0 %v3870
    %4435 = vmatmul.bf16.gmra.mxu0 %v2739
    %v4436 = vpop.f32.mrf.mxu0
    %v4437 = vadd.f32 %v4423, %v4436
    %v4438 = vpop.f32.mrf.mxu0
    %v4439 = vadd.f32 %v4425, %v4438
    %4440 = vdwg.mxu0
    %4441 = vmatpush.bf16.msra.mxu0 %v3643
    %4442 = vmatpush.bf16.msra.mxu0 %v3639
    %4443 = vmatpush.bf16.msra.mxu0 %v3635
    %4444 = vmatpush.bf16.msra.mxu0 %v3631
    %4445 = vmatpush.bf16.msra.mxu0 %v3627
    %4446 = vmatpush.bf16.msra.mxu0 %v3623
    %4447 = vmatpush.bf16.msra.mxu0 %v3619
    %4448 = vmatpush.bf16.msra.mxu0 %v3615
    %4449 = vmatmul.bf16.gmra.mxu0 %v2731
    %v4450 = vpop.f32.mrf.mxu0
    %v4451 = vadd.f32 %v2573, %v4450
    %v4452 = vpop.f32.mrf.mxu0
    %v4453 = vadd.f32 %v2575, %v4452
    %4454 = vdwg.mxu0
    %4455 = vmatpush.bf16.msra.mxu0 %v3675
    %4456 = vmatpush.bf16.msra.mxu0 %v3671
    %4457 = vmatpush.bf16.msra.mxu0 %v3667
    %4458 = vmatpush.bf16.msra.mxu0 %v3663
    %4459 = vmatpush.bf16.msra.mxu0 %v3659
    %4460 = vmatpush.bf16.msra.mxu0 %v3655
    %4461 = vmatpush.bf16.msra.mxu0 %v3651
    %4462 = vmatpush.bf16.msra.mxu0 %v3647
    %4463 = vmatmul.bf16.gmra.mxu0 %v2732
    %v4464 = vpop.f32.mrf.mxu0
    %v4465 = vadd.f32 %v4451, %v4464
    %v4466 = vpop.f32.mrf.mxu0
    %v4467 = vadd.f32 %v4453, %v4466
    %4468 = vdwg.mxu0
    %4469 = vmatpush.bf16.msra.mxu0 %v3707
    %4470 = vmatpush.bf16.msra.mxu0 %v3703
    %4471 = vmatpush.bf16.msra.mxu0 %v3699
    %4472 = vmatpush.bf16.msra.mxu0 %v3695
    %4473 = vmatpush.bf16.msra.mxu0 %v3691
    %4474 = vmatpush.bf16.msra.mxu0 %v3687
    %4475 = vmatpush.bf16.msra.mxu0 %v3683
    %4476 = vmatpush.bf16.msra.mxu0 %v3679
    %4477 = vmatmul.bf16.gmra.mxu0 %v2733
    %v4478 = vpop.f32.mrf.mxu0
    %v4479 = vadd.f32 %v4465, %v4478
    %v4480 = vpop.f32.mrf.mxu0
    %v4481 = vadd.f32 %v4467, %v4480
    %4482 = vdwg.mxu0
    %4483 = vmatpush.bf16.msra.mxu0 %v3739
    %4484 = vmatpush.bf16.msra.mxu0 %v3735
    %4485 = vmatpush.bf16.msra.mxu0 %v3731
    %4486 = vmatpush.bf16.msra.mxu0 %v3727
    %4487 = vmatpush.bf16.msra.mxu0 %v3723
    %4488 = vmatpush.bf16.msra.mxu0 %v3719
    %4489 = vmatpush.bf16.msra.mxu0 %v3715
    %4490 = vmatpush.bf16.msra.mxu0 %v3711
    %4491 = vmatmul.bf16.gmra.mxu0 %v2734
    %v4492 = vpop.f32.mrf.mxu0
    %v4493 = vadd.f32 %v4479, %v4492
    %v4494 = vpop.f32.mrf.mxu0
    %v4495 = vadd.f32 %v4481, %v4494
    %4496 = vdwg.mxu0
    %4497 = vmatpush.bf16.msra.mxu0 %v3771
    %4498 = vmatpush.bf16.msra.mxu0 %v3767
    %4499 = vmatpush.bf16.msra.mxu0 %v3763
    %4500 = vmatpush.bf16.msra.mxu0 %v3759
    %4501 = vmatpush.bf16.msra.mxu0 %v3755
    %4502 = vmatpush.bf16.msra.mxu0 %v3751
    %4503 = vmatpush.bf16.msra.mxu0 %v3747
    %4504 = vmatpush.bf16.msra.mxu0 %v3743
    %4505 = vmatmul.bf16.gmra.mxu0 %v2735
    %v4506 = vpop.f32.mrf.mxu0
    %v4507 = vadd.f32 %v4493, %v4506
    %v4508 = vpop.f32.mrf.mxu0
    %v4509 = vadd.f32 %v4495, %v4508
    %4510 = vdwg.mxu0
    %4511 = vmatpush.bf16.msra.mxu0 %v3803
    %4512 = vmatpush.bf16.msra.mxu0 %v3799
    %4513 = vmatpush.bf16.msra.mxu0 %v3795
    %4514 = vmatpush.bf16.msra.mxu0 %v3791
    %4515 = vmatpush.bf16.msra.mxu0 %v3787
    %4516 = vmatpush.bf16.msra.mxu0 %v3783
    %4517 = vmatpush.bf16.msra.mxu0 %v3779
    %4518 = vmatpush.bf16.msra.mxu0 %v3775
    %4519 = vmatmul.bf16.gmra.mxu0 %v2736
    %v4520 = vpop.f32.mrf.mxu0
    %v4521 = vadd.f32 %v4507, %v4520
    %v4522 = vpop.f32.mrf.mxu0
    %v4523 = vadd.f32 %v4509, %v4522
    %4524 = vdwg.mxu0
    %4525 = vmatpush.bf16.msra.mxu0 %v3835
    %4526 = vmatpush.bf16.msra.mxu0 %v3831
    %4527 = vmatpush.bf16.msra.mxu0 %v3827
    %4528 = vmatpush.bf16.msra.mxu0 %v3823
    %4529 = vmatpush.bf16.msra.mxu0 %v3819
    %4530 = vmatpush.bf16.msra.mxu0 %v3815
    %4531 = vmatpush.bf16.msra.mxu0 %v3811
    %4532 = vmatpush.bf16.msra.mxu0 %v3807
    %4533 = vmatmul.bf16.gmra.mxu0 %v2737
    %v4534 = vpop.f32.mrf.mxu0
    %v4535 = vadd.f32 %v4521, %v4534
    %v4536 = vpop.f32.mrf.mxu0
    %v4537 = vadd.f32 %v4523, %v4536
    %4538 = vdwg.mxu0
    %4539 = vmatpush.bf16.msra.mxu0 %v3867
    %4540 = vmatpush.bf16.msra.mxu0 %v3863
    %4541 = vmatpush.bf16.msra.mxu0 %v3859
    %4542 = vmatpush.bf16.msra.mxu0 %v3855
    %4543 = vmatpush.bf16.msra.mxu0 %v3851
    %4544 = vmatpush.bf16.msra.mxu0 %v3847
    %4545 = vmatpush.bf16.msra.mxu0 %v3843
    %4546 = vmatpush.bf16.msra.mxu0 %v3839
    %4547 = vmatmul.bf16.gmra.mxu0 %v2738
    %v4548 = vpop.f32.mrf.mxu0
    %v4549 = vadd.f32 %v4535, %v4548
    %v4550 = vpop.f32.mrf.mxu0
    %v4551 = vadd.f32 %v4537, %v4550
    %4552 = vdwg.mxu0
    %4553 = vmatpush.bf16.msra.mxu0 %v3899
    %4554 = vmatpush.bf16.msra.mxu0 %v3895
    %4555 = vmatpush.bf16.msra.mxu0 %v3891
    %4556 = vmatpush.bf16.msra.mxu0 %v3887
    %4557 = vmatpush.bf16.msra.mxu0 %v3883
    %4558 = vmatpush.bf16.msra.mxu0 %v3879
    %4559 = vmatpush.bf16.msra.mxu0 %v3875
    %4560 = vmatpush.bf16.msra.mxu0 %v3871
    %4561 = vmatmul.bf16.gmra.mxu0 %v2739
    %v4562 = vpop.f32.mrf.mxu0
    %v4563 = vadd.f32 %v4549, %v4562
    %v4564 = vpop.f32.mrf.mxu0
    %v4565 = vadd.f32 %v4551, %v4564
    %4566 = vdwg.mxu0
    %4567 = vmatpush.bf16.msra.mxu0 %v3644
    %4568 = vmatpush.bf16.msra.mxu0 %v3640
    %4569 = vmatpush.bf16.msra.mxu0 %v3636
    %4570 = vmatpush.bf16.msra.mxu0 %v3632
    %4571 = vmatpush.bf16.msra.mxu0 %v3628
    %4572 = vmatpush.bf16.msra.mxu0 %v3624
    %4573 = vmatpush.bf16.msra.mxu0 %v3620
    %4574 = vmatpush.bf16.msra.mxu0 %v3616
    %4575 = vmatmul.bf16.gmra.mxu0 %v2731
    %v4576 = vpop.f32.mrf.mxu0
    %v4577 = vadd.f32 %v2699, %v4576
    %v4578 = vpop.f32.mrf.mxu0
    %v4579 = vadd.f32 %v2701, %v4578
    %4580 = vdwg.mxu0
    %4581 = vmatpush.bf16.msra.mxu0 %v3676
    %4582 = vmatpush.bf16.msra.mxu0 %v3672
    %4583 = vmatpush.bf16.msra.mxu0 %v3668
    %4584 = vmatpush.bf16.msra.mxu0 %v3664
    %4585 = vmatpush.bf16.msra.mxu0 %v3660
    %4586 = vmatpush.bf16.msra.mxu0 %v3656
    %4587 = vmatpush.bf16.msra.mxu0 %v3652
    %4588 = vmatpush.bf16.msra.mxu0 %v3648
    %4589 = vmatmul.bf16.gmra.mxu0 %v2732
    %v4590 = vpop.f32.mrf.mxu0
    %v4591 = vadd.f32 %v4577, %v4590
    %v4592 = vpop.f32.mrf.mxu0
    %v4593 = vadd.f32 %v4579, %v4592
    %4594 = vdwg.mxu0
    %4595 = vmatpush.bf16.msra.mxu0 %v3708
    %4596 = vmatpush.bf16.msra.mxu0 %v3704
    %4597 = vmatpush.bf16.msra.mxu0 %v3700
    %4598 = vmatpush.bf16.msra.mxu0 %v3696
    %4599 = vmatpush.bf16.msra.mxu0 %v3692
    %4600 = vmatpush.bf16.msra.mxu0 %v3688
    %4601 = vmatpush.bf16.msra.mxu0 %v3684
    %4602 = vmatpush.bf16.msra.mxu0 %v3680
    %4603 = vmatmul.bf16.gmra.mxu0 %v2733
    %v4604 = vpop.f32.mrf.mxu0
    %v4605 = vadd.f32 %v4591, %v4604
    %v4606 = vpop.f32.mrf.mxu0
    %v4607 = vadd.f32 %v4593, %v4606
    %4608 = vdwg.mxu0
    %4609 = vmatpush.bf16.msra.mxu0 %v3740
    %4610 = vmatpush.bf16.msra.mxu0 %v3736
    %4611 = vmatpush.bf16.msra.mxu0 %v3732
    %4612 = vmatpush.bf16.msra.mxu0 %v3728
    %4613 = vmatpush.bf16.msra.mxu0 %v3724
    %4614 = vmatpush.bf16.msra.mxu0 %v3720
    %4615 = vmatpush.bf16.msra.mxu0 %v3716
    %4616 = vmatpush.bf16.msra.mxu0 %v3712
    %4617 = vmatmul.bf16.gmra.mxu0 %v2734
    %v4618 = vpop.f32.mrf.mxu0
    %v4619 = vadd.f32 %v4605, %v4618
    %v4620 = vpop.f32.mrf.mxu0
    %v4621 = vadd.f32 %v4607, %v4620
    %4622 = vdwg.mxu0
    %4623 = vmatpush.bf16.msra.mxu0 %v3772
    %4624 = vmatpush.bf16.msra.mxu0 %v3768
    %4625 = vmatpush.bf16.msra.mxu0 %v3764
    %4626 = vmatpush.bf16.msra.mxu0 %v3760
    %4627 = vmatpush.bf16.msra.mxu0 %v3756
    %4628 = vmatpush.bf16.msra.mxu0 %v3752
    %4629 = vmatpush.bf16.msra.mxu0 %v3748
    %4630 = vmatpush.bf16.msra.mxu0 %v3744
    %4631 = vmatmul.bf16.gmra.mxu0 %v2735
    %v4632 = vpop.f32.mrf.mxu0
    %v4633 = vadd.f32 %v4619, %v4632
    %v4634 = vpop.f32.mrf.mxu0
    %v4635 = vadd.f32 %v4621, %v4634
    %4636 = vdwg.mxu0
    %4637 = vmatpush.bf16.msra.mxu0 %v3804
    %4638 = vmatpush.bf16.msra.mxu0 %v3800
    %4639 = vmatpush.bf16.msra.mxu0 %v3796
    %4640 = vmatpush.bf16.msra.mxu0 %v3792
    %4641 = vmatpush.bf16.msra.mxu0 %v3788
    %4642 = vmatpush.bf16.msra.mxu0 %v3784
    %4643 = vmatpush.bf16.msra.mxu0 %v3780
    %4644 = vmatpush.bf16.msra.mxu0 %v3776
    %4645 = vmatmul.bf16.gmra.mxu0 %v2736
    %v4646 = vpop.f32.mrf.mxu0
    %v4647 = vadd.f32 %v4633, %v4646
    %v4648 = vpop.f32.mrf.mxu0
    %v4649 = vadd.f32 %v4635, %v4648
    %4650 = vdwg.mxu0
    %4651 = vmatpush.bf16.msra.mxu0 %v3836
    %4652 = vmatpush.bf16.msra.mxu0 %v3832
    %4653 = vmatpush.bf16.msra.mxu0 %v3828
    %4654 = vmatpush.bf16.msra.mxu0 %v3824
    %4655 = vmatpush.bf16.msra.mxu0 %v3820
    %4656 = vmatpush.bf16.msra.mxu0 %v3816
    %4657 = vmatpush.bf16.msra.mxu0 %v3812
    %4658 = vmatpush.bf16.msra.mxu0 %v3808
    %4659 = vmatmul.bf16.gmra.mxu0 %v2737
    %v4660 = vpop.f32.mrf.mxu0
    %v4661 = vadd.f32 %v4647, %v4660
    %v4662 = vpop.f32.mrf.mxu0
    %v4663 = vadd.f32 %v4649, %v4662
    %4664 = vdwg.mxu0
    %4665 = vmatpush.bf16.msra.mxu0 %v3868
    %4666 = vmatpush.bf16.msra.mxu0 %v3864
    %4667 = vmatpush.bf16.msra.mxu0 %v3860
    %4668 = vmatpush.bf16.msra.mxu0 %v3856
    %4669 = vmatpush.bf16.msra.mxu0 %v3852
    %4670 = vmatpush.bf16.msra.mxu0 %v3848
    %4671 = vmatpush.bf16.msra.mxu0 %v3844
    %4672 = vmatpush.bf16.msra.mxu0 %v3840
    %4673 = vmatmul.bf16.gmra.mxu0 %v2738
    %v4674 = vpop.f32.mrf.mxu0
    %v4675 = vadd.f32 %v4661, %v4674
    %v4676 = vpop.f32.mrf.mxu0
    %v4677 = vadd.f32 %v4663, %v4676
    %4678 = vdwg.mxu0
    %4679 = vmatpush.bf16.msra.mxu0 %v3900
    %4680 = vmatpush.bf16.msra.mxu0 %v3896
    %4681 = vmatpush.bf16.msra.mxu0 %v3892
    %4682 = vmatpush.bf16.msra.mxu0 %v3888
    %4683 = vmatpush.bf16.msra.mxu0 %v3884
    %4684 = vmatpush.bf16.msra.mxu0 %v3880
    %4685 = vmatpush.bf16.msra.mxu0 %v3876
    %4686 = vmatpush.bf16.msra.mxu0 %v3872
    %4687 = vmatmul.bf16.gmra.mxu0 %v2739
    %v4688 = vpop.f32.mrf.mxu0
    %v4689 = vadd.f32 %v4675, %v4688
    %v4690 = vpop.f32.mrf.mxu0
    %v4691 = vadd.f32 %v4677, %v4690
    %4692 = vdwg.mxu0
    %v4693 = vld [vmem:[#allocation10] sm:$0xf]
    %v4695 = vperm.slane %v4693, 0
    %v4696 = vperm.slane %v4693, 1
    %v4697 = vperm.slane %v4693, 2
    %v4698 = vperm.slane %v4693, 3
    %v4703 = vadd.f32 %v4311, %v4695
    %v4704 = vadd.f32 %v4437, %v4696
    %v4705 = vadd.f32 %v4563, %v4697
    %v4706 = vadd.f32 %v4689, %v4698
    %v4707 = vadd.f32 %v4313, %v4695
    %v4708 = vadd.f32 %v4439, %v4696
    %v4709 = vadd.f32 %v4565, %v4697
    %v4710 = vadd.f32 %v4691, %v4698
    %v4711 = vmax.f32 %v4703, 0.0
    %v4712 = vmax.f32 %v4704, 0.0
    %v4713 = vmax.f32 %v4705, 0.0
    %v4714 = vmax.f32 %v4706, 0.0
    %v4715 = vmax.f32 %v4707, 0.0
    %v4716 = vmax.f32 %v4708, 0.0
    %v4717 = vmax.f32 %v4709, 0.0
    %v4718 = vmax.f32 %v4710, 0.0
    %v4719 = vld [vmem:[%s5] sm:$0xff]
    %v4720 = vld [vmem:[%s5 + $0x8] sm:$0xff]
    %v4721 = vld [vmem:[%s5 + $0x10] sm:$0xff]
    %v4722 = vld [vmem:[%s5 + $0x18] sm:$0xff]
    %v4723 = vld [vmem:[%s5 + $0x20] sm:$0xff]
    %v4724 = vld [vmem:[%s5 + $0x28] sm:$0xff]
    %v4725 = vld [vmem:[%s5 + $0x30] sm:$0xff]
    %v4726 = vld [vmem:[%s5 + $0x38] sm:$0xff]
    %v4727 = vld [vmem:[%s5 + $0x40] sm:$0xff]
    %v4728 = vld [vmem:[%s5 + $0x48] sm:$0xff]
    %v4729 = vld [vmem:[%s5 + $0x50] sm:$0xff]
    %v4730 = vld [vmem:[%s5 + $0x58] sm:$0xff]
    %v4731 = vld [vmem:[%s5 + $0x60] sm:$0xff]
    %v4732 = vld [vmem:[%s5 + $0x68] sm:$0xff]
    %v4733 = vld [vmem:[%s5 + $0x70] sm:$0xff]
    %v4734 = vld [vmem:[%s5 + $0x78] sm:$0xff]
    %v4735 = vld [vmem:[%s5 + $0x80] sm:$0xff]
    %v4736 = vld [vmem:[%s5 + $0x88] sm:$0xff]
    %v4737 = vld [vmem:[%s5 + $0x90] sm:$0xff]
    %v4738 = vld [vmem:[%s5 + $0x98] sm:$0xff]
    %v4739 = vld [vmem:[%s5 + $0xa0] sm:$0xff]
    %v4740 = vld [vmem:[%s5 + $0xa8] sm:$0xff]
    %v4741 = vld [vmem:[%s5 + $0xb0] sm:$0xff]
    %v4742 = vld [vmem:[%s5 + $0xb8] sm:$0xff]
    %v4743 = vld [vmem:[%s5 + $0xc0] sm:$0xff]
    %v4744 = vld [vmem:[%s5 + $0xc8] sm:$0xff]
    %v4745 = vld [vmem:[%s5 + $0xd0] sm:$0xff]
    %v4746 = vld [vmem:[%s5 + $0xd8] sm:$0xff]
    %v4747 = vld [vmem:[%s5 + $0xe0] sm:$0xff]
    %v4748 = vld [vmem:[%s5 + $0xe8] sm:$0xff]
    %v4749 = vld [vmem:[%s5 + $0xf0] sm:$0xff]
    %v4750 = vld [vmem:[%s5 + $0xf8] sm:$0xff]
    %v4751 = vld [vmem:[%s5 + $0x100] sm:$0xff]
    %v4752 = vld [vmem:[%s5 + $0x108] sm:$0xff]
    %v4753 = vld [vmem:[%s5 + $0x110] sm:$0xff]
    %v4754 = vld [vmem:[%s5 + $0x118] sm:$0xff]
    %v4755 = vld [vmem:[%s5 + $0x120] sm:$0xff]
    %v4756 = vld [vmem:[%s5 + $0x128] sm:$0xff]
    %v4757 = vld [vmem:[%s5 + $0x130] sm:$0xff]
    %v4758 = vld [vmem:[%s5 + $0x138] sm:$0xff]
    %v4759 = vld [vmem:[%s5 + $0x140] sm:$0xff]
    %v4760 = vld [vmem:[%s5 + $0x148] sm:$0xff]
    %v4761 = vld [vmem:[%s5 + $0x150] sm:$0xff]
    %v4762 = vld [vmem:[%s5 + $0x158] sm:$0xff]
    %v4763 = vld [vmem:[%s5 + $0x160] sm:$0xff]
    %v4764 = vld [vmem:[%s5 + $0x168] sm:$0xff]
    %v4765 = vld [vmem:[%s5 + $0x170] sm:$0xff]
    %v4766 = vld [vmem:[%s5 + $0x178] sm:$0xff]
    %v4767 = vld [vmem:[%s5 + $0x180] sm:$0xff]
    %v4768 = vld [vmem:[%s5 + $0x188] sm:$0xff]
    %v4769 = vld [vmem:[%s5 + $0x190] sm:$0xff]
    %v4770 = vld [vmem:[%s5 + $0x198] sm:$0xff]
    %v4771 = vld [vmem:[%s5 + $0x1a0] sm:$0xff]
    %v4772 = vld [vmem:[%s5 + $0x1a8] sm:$0xff]
    %v4773 = vld [vmem:[%s5 + $0x1b0] sm:$0xff]
    %v4774 = vld [vmem:[%s5 + $0x1b8] sm:$0xff]
    %v4775 = vld [vmem:[%s5 + $0x1c0] sm:$0xff]
    %v4776 = vld [vmem:[%s5 + $0x1c8] sm:$0xff]
    %v4777 = vld [vmem:[%s5 + $0x1d0] sm:$0xff]
    %v4778 = vld [vmem:[%s5 + $0x1d8] sm:$0xff]
    %v4779 = vld [vmem:[%s5 + $0x1e0] sm:$0xff]
    %v4780 = vld [vmem:[%s5 + $0x1e8] sm:$0xff]
    %v4781 = vld [vmem:[%s5 + $0x1f0] sm:$0xff]
    %v4782 = vld [vmem:[%s5 + $0x1f8] sm:$0xff]
    %v4783 = vld [vmem:[#allocation11] sm:$0x1]
    %v4785 = vperm.slane %v4783, 0
    %4787 = vmatpush.msra.mxu0 %v4734
    %4788 = vmatpush.msra.mxu0 %v4733
    %4789 = vmatpush.msra.mxu0 %v4732
    %4790 = vmatpush.msra.mxu0 %v4731
    %4791 = vmatpush.msra.mxu0 %v4730
    %4792 = vmatpush.msra.mxu0 %v4729
    %4793 = vmatpush.msra.mxu0 %v4728
    %4794 = vmatpush.msra.mxu0 %v4727
    %4795 = vmatpush.msra.mxu0 %v4726
    %4796 = vmatpush.msra.mxu0 %v4725
    %4797 = vmatpush.msra.mxu0 %v4724
    %4798 = vmatpush.msra.mxu0 %v4723
    %4799 = vmatpush.msra.mxu0 %v4722
    %4800 = vmatpush.msra.mxu0 %v4721
    %4801 = vmatpush.msra.mxu0 %v4720
    %4802 = vmatpush.msra.mxu0 %v4719
    %4803 = vmatmul.f32.gmra.mxu0 %v4711
    %v4804 = vpop.f32.mrf.mxu0
    %v4805 = vadd.f32 %v4785, %v4804
    %4806 = vmatmul.f32.gmra.mxu0 %v4715
    %v4807 = vpop.f32.mrf.mxu0
    %v4808 = vadd.f32 %v4785, %v4807
    %4809 = vdwg.mxu0
    %4810 = vmatpush.msra.mxu0 %v4750
    %4811 = vmatpush.msra.mxu0 %v4749
    %4812 = vmatpush.msra.mxu0 %v4748
    %4813 = vmatpush.msra.mxu0 %v4747
    %4814 = vmatpush.msra.mxu0 %v4746
    %4815 = vmatpush.msra.mxu0 %v4745
    %4816 = vmatpush.msra.mxu0 %v4744
    %4817 = vmatpush.msra.mxu0 %v4743
    %4818 = vmatpush.msra.mxu0 %v4742
    %4819 = vmatpush.msra.mxu0 %v4741
    %4820 = vmatpush.msra.mxu0 %v4740
    %4821 = vmatpush.msra.mxu0 %v4739
    %4822 = vmatpush.msra.mxu0 %v4738
    %4823 = vmatpush.msra.mxu0 %v4737
    %4824 = vmatpush.msra.mxu0 %v4736
    %4825 = vmatpush.msra.mxu0 %v4735
    %4826 = vmatmul.f32.gmra.mxu0 %v4712
    %v4827 = vpop.f32.mrf.mxu0
    %v4828 = vadd.f32 %v4805, %v4827
    %4829 = vmatmul.f32.gmra.mxu0 %v4716
    %v4830 = vpop.f32.mrf.mxu0
    %v4831 = vadd.f32 %v4808, %v4830
    %4832 = vdwg.mxu0
    %4833 = vmatpush.msra.mxu0 %v4766
    %4834 = vmatpush.msra.mxu0 %v4765
    %4835 = vmatpush.msra.mxu0 %v4764
    %4836 = vmatpush.msra.mxu0 %v4763
    %4837 = vmatpush.msra.mxu0 %v4762
    %4838 = vmatpush.msra.mxu0 %v4761
    %4839 = vmatpush.msra.mxu0 %v4760
    %4840 = vmatpush.msra.mxu0 %v4759
    %4841 = vmatpush.msra.mxu0 %v4758
    %4842 = vmatpush.msra.mxu0 %v4757
    %4843 = vmatpush.msra.mxu0 %v4756
    %4844 = vmatpush.msra.mxu0 %v4755
    %4845 = vmatpush.msra.mxu0 %v4754
    %4846 = vmatpush.msra.mxu0 %v4753
    %4847 = vmatpush.msra.mxu0 %v4752
    %4848 = vmatpush.msra.mxu0 %v4751
    %4849 = vmatmul.f32.gmra.mxu0 %v4713
    %v4850 = vpop.f32.mrf.mxu0
    %v4851 = vadd.f32 %v4828, %v4850
    %4852 = vmatmul.f32.gmra.mxu0 %v4717
    %v4853 = vpop.f32.mrf.mxu0
    %v4854 = vadd.f32 %v4831, %v4853
    %4855 = vdwg.mxu0
    %4856 = vmatpush.msra.mxu0 %v4782
    %4857 = vmatpush.msra.mxu0 %v4781
    %4858 = vmatpush.msra.mxu0 %v4780
    %4859 = vmatpush.msra.mxu0 %v4779
    %4860 = vmatpush.msra.mxu0 %v4778
    %4861 = vmatpush.msra.mxu0 %v4777
    %4862 = vmatpush.msra.mxu0 %v4776
    %4863 = vmatpush.msra.mxu0 %v4775
    %4864 = vmatpush.msra.mxu0 %v4774
    %4865 = vmatpush.msra.mxu0 %v4773
    %4866 = vmatpush.msra.mxu0 %v4772
    %4867 = vmatpush.msra.mxu0 %v4771
    %4868 = vmatpush.msra.mxu0 %v4770
    %4869 = vmatpush.msra.mxu0 %v4769
    %4870 = vmatpush.msra.mxu0 %v4768
    %4871 = vmatpush.msra.mxu0 %v4767
    %4872 = vmatmul.f32.gmra.mxu0 %v4714
    %v4873 = vpop.f32.mrf.mxu0
    %v4874 = vadd.f32 %v4851, %v4873
    %4875 = vmatmul.f32.gmra.mxu0 %v4718
    %v4876 = vpop.f32.mrf.mxu0
    %v4877 = vadd.f32 %v4854, %v4876
    %4878 = vdwg.mxu0
    %vm4879 = vcmask 97280
    %v4880 = vsel %vm4879, %v4874, -inf
    %4881 = vmax.xlane.f32.xlu0 %v4880
    %v4882 = vpop.xlane.xlu0 %4881
    %v4883 = vsel %vm4879, %v4877, -inf
    %4884 = vmax.xlane.f32.xlu0 %v4883
    %v4885 = vpop.xlane.xlu0 %4884
    %v4886 = vsub.f32 %v4874, %v4882
    %v4887 = vsub.f32 %v4877, %v4885
    %v4888 = vmul.f32 %v4886, 1.442695
    %v4889 = vpow.pop %v4888
    %v4890 = vmul.f32 %v4887, 1.442695
    %v4891 = vpow.pop %v4890
    %v4892 = vsel %vm4879, %v4889, 0.0
    %4893 = vadd.xlane.f32.xlu0 %v4892
    %v4894 = vpop.xlane.xlu0 %4893
    %v4895 = vsel %vm4879, %v4891, 0.0
    %4896 = vadd.xlane.f32.xlu0 %v4895
    %v4897 = vpop.xlane.xlu0 %4896
    %v4898 = vrcp.pop %v4894
    %v4899 = vrcp.pop %v4897
    %v4900 = vmul.f32 %v4889, %v4898
    %v4901 = vmul.f32 %v4891, %v4899
    %4902 = vst.msk [vmem:[#allocation13] sm:$0xff] %vm4879, %v4900
    %4903 = vst.msk [vmem:[#allocation13 + $0x8] sm:$0xff] %vm4879, %v4901
    // Predicated region
    $region54: #{tpu_custom_call.1} parent=1 // pred_check
      _
    $region55: #{tpu_custom_call.1} parent=1 // pred_check_branch
      %4905 = sbr.rel (0) target = $region57
    $region56: #{tpu_custom_call.1} parent=1 // pred_region
      %4907 = vsyncadd [#allocation4], 0
      %s4908 = sshll.u32 [#allocation13], 4
      %s4909 = int_to_ptr.vmem [resolvable:$true] %s4908
      %s4910 = sshll.u32 %s7, 4
      %s4911 = int_to_ptr.hbm [resolvable:$true] %s4910
      %4916 = dma.vmem_to_hbm [thread:$0]  %s4909, 256, %s4911, [#allocation4], 128, 128, 8
    $region57: #{tpu_custom_call.1} parent=1 // pred_fallthru
      _
    // Predicated region
    $region58: #{tpu_custom_call.1} parent=1 // pred_check
      _
    $region59: #{tpu_custom_call.1} parent=1 // pred_check_branch
      %4918 = sbr.rel (0) target = $region61
    $region60: #{tpu_custom_call.1} parent=1 // pred_region
      %4920 = dma.done [#allocation4], 256
    $region61: #{tpu_custom_call.1} parent=1 // pred_fallthru
      _
    %4921 = vsyncpa [#allocation3], 1
    %4922 = vsyncpa [#allocation6], 1
    %4923 = vsyncpa [#allocation9], 1
    %4924 = vsyncpa [#allocation12], 1
    %4925 = vsyncpa [#allocation4], 1

</llo_original>
